<compile_context>
chip_gen: v6e
topology: v6e:2x2x1
jax: 0.10.0
libtpu: 0.0.40
codegen_flags: <defaults>
</compile_context>

<pallas_src>
import functools

import jax
import jax.numpy as jnp
from jax.experimental import pallas as pl
from jax.experimental.pallas import tpu as pltpu


# --------------------------- hardware-aware config ---------------------------

@functools.lru_cache(maxsize=None)
def _vmem_limit_bytes():
    cap = None
    try:
        cap = getattr(pltpu.get_tpu_info(), "vmem_capacity_bytes", None)
    except Exception:
        cap = None
    if not cap:
        return 48 * 1024 * 1024              # safe on v5e/v6e (128 MiB) and v7x (64 MiB)
    return int(min(max(cap * 3 // 4, 32 * 1024 * 1024), 96 * 1024 * 1024))


def _detect_buffered1():
    """Feature-detect single-buffered resident blocks (pipeline_mode=pl.Buffered(1))."""
    try:
        def _k(x_ref, o_ref):
            o_ref[...] = x_ref[...] + 1.0
        r = pl.pallas_call(
            _k,
            out_shape=jax.ShapeDtypeStruct((8, 128), jnp.float32),
            grid=(1,),
            in_specs=[pl.BlockSpec((8, 128), lambda i: (0, 0),
                                   pipeline_mode=pl.Buffered(buffer_count=1))],
            out_specs=pl.BlockSpec((8, 128), lambda i: (0, 0)),
        )(jnp.zeros((8, 128), jnp.float32))
        jax.block_until_ready(r)
        return True
    except Exception:
        return False


_BUFFERED1_OK = _detect_buffered1()


def _resident_spec(shape):
    """BlockSpec for a grid-invariant (weight / BN) input: fetched once, single-buffered."""
    index_map = lambda *_: (0,) * len(shape)
    if _BUFFERED1_OK:
        return pl.BlockSpec(shape, index_map, pipeline_mode=pl.Buffered(buffer_count=1))
    return pl.BlockSpec(shape, index_map)


# ----------------------------- Pallas kernels ------------------------------

def _pw_conv_bn_relu_kernel(x_ref, w_ref, bn_ref, o_ref):
    # 1x1x1 conv (bf16 MXU) + BN scale/shift (f32 epilogue) + ReLU.
    acc = jnp.dot(x_ref[...].astype(jnp.bfloat16), w_ref[...],
                  preferred_element_type=jnp.float32)
    o_ref[...] = jnp.maximum(acc * bn_ref[0:1, :] + bn_ref[1:2, :], 0.0).astype(o_ref.dtype)


def _fused_3x3x3_pw_res_kernel(xm_ref, x0_ref, xp_ref, wb_ref, bnb_ref,
                               wc_ref, bnc_ref, res_ref, o_ref, pad_ref):
    """conv1b(3x3x3,p1)+BN+ReLU -> conv1c(1x1x1)+BN+ReLU -> +residual -> ReLU, one (n,t).

    pad_ref is a flat ((H+3)*(W+2), 3*C0) zero-padded bf16 scratch: lane group kt holds the
    temporal slab t+kt-1 with a 1-pixel H/W halo, flattened row-major so each of the 9
    spatial taps is a contiguous row slice (flat-window trick; junk columns dropped in the
    epilogue).  The halo / out-of-range slabs stay zero; the scratch persists across the
    sequential T grid axis.
    """
    t = pl.program_id(1)
    nt = pl.num_programs(1)
    H, W, C0 = x0_ref.shape[2], x0_ref.shape[3], x0_ref.shape[4]
    C1 = wc_ref.shape[1]
    WP = W + 2
    n_rows = pad_ref.shape[0]

    # ---- zeroing: full memset only on the first frame of each sample; on the last frame
    #      only the "t+1" lane group is re-zeroed (everything else is overwritten below).
    @pl.when(t == 0)
    def _():
        pad_ref[...] = jnp.zeros_like(pad_ref)

    @pl.when(t == nt - 1)
    def _():
        pad_ref[:, 2 * C0:3 * C0] = jnp.zeros((n_rows, C0), pad_ref.dtype)

    # ---- copy valid temporal slabs into the scratch interior
    #      (image row h lives at flat rows [(h+1)*WP + 1, (h+1)*WP + 1 + W)).
    def _fill(src_ref, kt):
        for h in range(H):
            base = (h + 1) * WP + 1
            pad_ref[base:base + W, kt * C0:(kt + 1) * C0] = (
                src_ref[0, 0, h].astype(pad_ref.dtype))

    @pl.when(t > 0)
    def _():
        _fill(xm_ref, 0)

    _fill(x0_ref, 1)

    @pl.when(t < nt - 1)
    def _():
        _fill(xp_ref, 2)

    # ---- conv1b via 9 accumulating MXU dots (K = 3*C0), row-chunked so the f32 accumulator
    #      stays vreg-resident across all taps; then conv1c, residual add and outer ReLU.
    rh_max = max(1, min(H, 32768 // max(1, WP * C0)))
    for r0 in range(0, H, rh_max):
        rh = min(rh_max, H - r0)
        m = rh * WP
        acc = jnp.zeros((m, C0), jnp.float32)
        for kh in range(3):
            for kw in range(3):
                start = (r0 + kh) * WP + kw
                acc = acc + jnp.dot(pad_ref[start:start + m, :], wb_ref[kh * 3 + kw],
                                    preferred_element_type=jnp.float32)
        y = jnp.maximum(acc * bnb_ref[0:1, :] + bnb_ref[1:2, :], 0.0)   # conv1b BN + ReLU
        z = jnp.dot(y.astype(jnp.bfloat16), wc_ref[...],
                    preferred_element_type=jnp.float32)
        z = jnp.maximum(z * bnc_ref[0:1, :] + bnc_ref[1:2, :], 0.0)     # conv1c BN + ReLU
        z = z.reshape(rh, WP, C1)[:, :W, :]                             # drop junk columns
        res = res_ref[0, 0, r0:r0 + rh].astype(jnp.float32)
        o_ref[0, 0, r0:r0 + rh] = jnp.maximum(z + res, 0.0).astype(o_ref.dtype)


# ------------------------------- wrappers -----------------------------------

def _fold_bn(p, eps=1e-5):
    scale = p["gamma"] / jnp.sqrt(p["var"] + eps)
    shift = p["beta"] - p["mean"] * scale
    return scale, shift


def _pick_tm(m):
    for tm in (1024, 512, 256, 128):
        if m % tm == 0:
            return tm
    return 128


def _pointwise_conv_bn_relu(x_cl, p, stride_hw=1, out_dtype=jnp.bfloat16):
    """SpatioTemporalConv with 1x1x1 kernel, stride (1,s,s), padding 0: conv + BN + ReLU."""
    if stride_hw != 1:
        # TODO(synk): fold the spatial subsampling into the Pallas index map instead.
        x_cl = x_cl[:, :, ::stride_hw, ::stride_hw, :]
    n, t, h, w, c = x_cl.shape
    cout = p["w"].shape[0]
    wm = p["w"].reshape(cout, c).T.astype(jnp.bfloat16)          # raw weights, bf16
    bn = jnp.stack(_fold_bn(p)).astype(jnp.float32)              # (2, cout): scale, shift

    x2d = x_cl.reshape(n * t * h * w, c)
    m = x2d.shape[0]
    tm = _pick_tm(m)
    mp = pl.cdiv(m, tm) * tm
    if mp != m:  # not hit for the shapes used here (kept for generality)
        x2d = jnp.pad(x2d, ((0, mp - m), (0, 0)))

    out = pl.pallas_call(
        _pw_conv_bn_relu_kernel,
        out_shape=jax.ShapeDtypeStruct((mp, cout), out_dtype),
        grid=(mp // tm,),
        in_specs=[
            pl.BlockSpec((tm, c), lambda i: (i, 0)),             # activation row tile
            _resident_spec((c, cout)),                           # weights (resident)
            _resident_spec((2, cout)),                           # BN scale/shift
        ],
        out_specs=pl.BlockSpec((tm, cout), lambda i: (i, 0)),
        compiler_params=pltpu.CompilerParams(
            dimension_semantics=("parallel",),
            vmem_limit_bytes=_vmem_limit_bytes()),
    )(x2d, wm, bn)
    if mp != m:
        out = out[:m]
    return out.reshape(n, t, h, w, cout)


def _fused_conv1b_conv1c_residual(y_cl, pb, pc, res_cl):
    """conv1b(3x3x3,p1)+BN+ReLU -> conv1c(1x1x1)+BN+ReLU -> +res -> ReLU in one kernel."""
    n, t, h, w, c0 = y_cl.shape
    c1 = pc["w"].shape[0]

    # (Cout,Cin,kT,kH,kW) -> (kH,kW,kT,Cin,Cout) -> (9, 3*Cin, Cout): kt packed into K.
    wb = jnp.transpose(pb["w"], (3, 4, 2, 1, 0)).reshape(9, 3 * c0, c0).astype(jnp.bfloat16)
    bnb = jnp.stack(_fold_bn(pb)).astype(jnp.float32)            # (2, c0)
    wc = pc["w"].reshape(c1, c0).T.astype(jnp.bfloat16)          # (c0, c1)
    bnc = jnp.stack(_fold_bn(pc)).astype(jnp.float32)            # (2, c1)

    plane = lambda i, j: (i, j, 0, 0, 0)
    prev_plane = lambda i, j: (i, jnp.maximum(j - 1, 0), 0, 0, 0)     # T halo (clamped)
    next_plane = lambda i, j: (i, jnp.minimum(j + 1, t - 1), 0, 0, 0)
    n_pad_rows = (h + 3) * (w + 2)

    return pl.pallas_call(
        _fused_3x3x3_pw_res_kernel,
        out_shape=jax.ShapeDtypeStruct((n, t, h, w, c1), jnp.float32),
        grid=(n, t),
        in_specs=[
            pl.BlockSpec((1, 1, h, w, c0), prev_plane),          # t-1 slab
            pl.BlockSpec((1, 1, h, w, c0), plane),               # t   slab
            pl.BlockSpec((1, 1, h, w, c0), next_plane),          # t+1 slab
            _resident_spec((9, 3 * c0, c0)),                     # conv1b weights
            _resident_spec((2, c0)),                             # conv1b BN scale/shift
            _resident_spec((c0, c1)),                            # conv1c weights
            _resident_spec((2, c1)),                             # conv1c BN scale/shift
            pl.BlockSpec((1, 1, h, w, c1), plane),               # residual
        ],
        out_specs=pl.BlockSpec((1, 1, h, w, c1), plane),
        scratch_shapes=[pltpu.VMEM((n_pad_rows, 3 * c0), jnp.bfloat16)],
        compiler_params=pltpu.CompilerParams(
            # T must be sequential: the padded scratch carries the zero halo across t.
            dimension_semantics=("parallel", "arbitrary"),
            vmem_limit_bytes=_vmem_limit_bytes()),
    )(y_cl, y_cl, y_cl, wb, bnb, wc, bnc, res_cl)


# ------------------------------ block forward -------------------------------

def spatio_temporal_res_block(x_ncthw, params, downsample):
    # TODO(synk): when chaining blocks, keep activations NTHWC and hoist these transposes.
    x_cl = jnp.transpose(x_ncthw, (0, 2, 3, 4, 1))               # NCTHW -> NTHWC
    if downsample:
        res_cl = _pointwise_conv_bn_relu(x_cl, params["conv2"], stride_hw=2)
        y_cl = _pointwise_conv_bn_relu(x_cl, params["conv1a"], stride_hw=2)
    else:
        res_cl = x_cl                                            # identity residual (f32)
        y_cl = _pointwise_conv_bn_relu(x_cl, params["conv1a"], stride_hw=1)
    out_cl = _fused_conv1b_conv1c_residual(y_cl, params["conv1b"], params["conv1c"], res_cl)
    return jnp.transpose(out_cl, (0, 4, 1, 2, 3))                # NTHWC -> NCTHW


# --------------------------- deterministic params ---------------------------

def _init_stconv(key, cin, cout, k):
    ks = jax.random.split(key, 5)
    fan_in = cin * k * k * k
    bound = 1.0 / (fan_in ** 0.5)
    w = jax.random.uniform(ks[0], (cout, cin, k, k, k), jnp.float32, -bound, bound)
    gamma = 1.0 + 0.05 * jax.random.normal(ks[1], (cout,), jnp.float32)
    beta = 0.05 * jax.random.normal(ks[2], (cout,), jnp.float32)
    mean = 0.05 * jax.random.normal(ks[3], (cout,), jnp.float32)
    var = 1.0 + 0.1 * jax.random.uniform(ks[4], (cout,), jnp.float32)
    return dict(w=w, gamma=gamma, beta=beta, mean=mean, var=var)


def init_block_params(key, in_channels, out_channels, downsample):
    c0, c1 = out_channels
    k1, k2, k3, k4 = jax.random.split(key, 4)
    cin_a = in_channels if downsample else c1
    return dict(
        conv1a=_init_stconv(k1, cin_a, c0, 1),
        conv1b=_init_stconv(k2, c0, c0, 3),
        conv1c=_init_stconv(k3, c0, c1, 1),
        conv2=_init_stconv(k4, in_channels, c1, 1),
    )


# ------------------------------ JAX reference -------------------------------

def _ref_stconv(x, p, stride, padding):
    y = jax.lax.conv_general_dilated(
        x, p["w"], window_strides=stride,
        padding=[(padding[0],) * 2, (padding[1],) * 2, (padding[2],) * 2],
        dimension_numbers=("NCDHW", "OIDHW", "NCDHW"),
        precision=jax.lax.Precision.HIGHEST)
    scale, shift = _fold_bn(p)
    y = y * scale[None, :, None, None, None] + shift[None, :, None, None, None]
    return jnp.maximum(y, 0.0)


def _ref_block(x, params, downsample):
    if downsample:
        res = _ref_stconv(x, params["conv2"], (1, 2, 2), (0, 0, 0))
        y = _ref_stconv(x, params["conv1a"], (1, 2, 2), (0, 0, 0))
    else:
        res = x
        y = _ref_stconv(x, params["conv1a"], (1, 1, 1), (0, 0, 0))
    y = _ref_stconv(y, params["conv1b"], (1, 1, 1), (1, 1, 1))
    y = _ref_stconv(y, params["conv1c"], (1, 1, 1), (0, 0, 0))
    return jnp.maximum(y + res, 0.0)


# ----------------------------------- main ------------------------------------

if __name__ == "__main__":
    key = jax.random.PRNGKey(0)
    kx, kp1, kp2 = jax.random.split(key, 3)

    block = jax.jit(spatio_temporal_res_block, static_argnames=("downsample",))

    # downsample=True: exercises conv1a/b/c and the conv2 residual branch.
    N, Cin, T, H, W = 2, 4, 8, 16, 16
    out_channels = (8, 8)
    x = jax.random.normal(kx, (N, Cin, T, H, W), jnp.float32)
    params_d = init_block_params(kp1, Cin, out_channels, downsample=True)
    out_d = jax.block_until_ready(block(x, params_d, downsample=True))
    ref_d = _ref_block(x, params_d, True)
    assert out_d.shape == (N, out_channels[1], T, H // 2, W // 2)
    # bf16 MXU inputs -> slightly looser tolerance vs the f32 HIGHEST reference.
    assert bool(jnp.allclose(out_d, ref_d, atol=3e-2, rtol=3e-2)), \
        float(jnp.max(jnp.abs(out_d - ref_d)))

    # downsample=False: identity residual (input channels must equal out_channels[1]).
    x2 = jax.random.normal(kx, (N, out_channels[1], T, H, W), jnp.float32)
    params_n = init_block_params(kp2, out_channels[1], out_channels, downsample=False)
    out_n = jax.block_until_ready(block(x2, params_n, downsample=False))
    ref_n = _ref_block(x2, params_n, False)
    assert out_n.shape == x2.shape
    assert bool(jnp.allclose(out_n, ref_n, atol=3e-2, rtol=3e-2)), \
        float(jnp.max(jnp.abs(out_n - ref_n)))

    print("KERNEL_OK")
</pallas_src>

<mosaic_0001>
module attributes {stable_mosaic.version = 11 : i64} {
  func.func @_k(%arg0: i32, %arg1: memref<8x128xf32, #tpu.memory_space<vmem>>, %arg2: memref<8x128xf32, #tpu.memory_space<vmem>>) attributes {dimension_semantics = [#tpu.dimension_semantics<arbitrary>], iteration_bounds = array<i64: 1>, scalar_prefetch = 0 : i64, scratch_operands = 0 : i64, tpu.core_type = #tpu.core_type<tc>, window_params = [{pipeline_mode = #tpu.pipeline_mode<synchronous>, transform_indices = @transform_0, window_bounds = array<i64: 8, 128>}, {pipeline_mode = #tpu.pipeline_mode<synchronous>, transform_indices = @transform_1, window_bounds = array<i64: 8, 128>}]} {
    %c0 = arith.constant 0 : index
    %c0_0 = arith.constant 0 : index
    %0 = vector.load %arg1[%c0, %c0_0] : memref<8x128xf32, #tpu.memory_space<vmem>>, vector<8x128xf32>
    %cst = arith.constant 1.000000e+00 : f32
    %1 = vector.broadcast %cst : f32 to vector<8x128xf32>
    %2 = arith.addf %0, %1 : vector<8x128xf32>
    %c0_1 = arith.constant 0 : index
    %c0_2 = arith.constant 0 : index
    %3 = vector.load %arg2[%c0_1, %c0_2] : memref<8x128xf32, #tpu.memory_space<vmem>>, vector<8x128xf32>
    tpu.vector_store %arg2[%c0_1, %c0_2], %2 {strides = array<i32>} : memref<8x128xf32, #tpu.memory_space<vmem>>, vector<8x128xf32>,
    return
  }
  func.func @transform_0(%arg0: i32) -> (i32, i32) {
    %c0_i32 = arith.constant 0 : i32
    %c0_i32_0 = arith.constant 0 : i32
    %c0_i32_1 = arith.constant 0 : i32
    return %c0_i32, %c0_i32_0 : i32, i32
  }
  func.func @transform_1(%arg0: i32) -> (i32, i32) {
    %c0_i32 = arith.constant 0 : i32
    %c0_i32_0 = arith.constant 0 : i32
    %c0_i32_1 = arith.constant 0 : i32
    return %c0_i32, %c0_i32_0 : i32, i32
  }
}

module attributes {stable_mosaic.version = 11 : i64} {
  func.func @_pw_conv_bn_relu_kernel(%arg0: i32, %arg1: memref<1024x4xf32, #tpu.memory_space<vmem>>, %arg2: memref<4x8xbf16, #tpu.memory_space<vmem>>, %arg3: memref<2x8xf32, #tpu.memory_space<vmem>>, %arg4: memref<1024x8xbf16, #tpu.memory_space<vmem>>) attributes {dimension_semantics = [#tpu.dimension_semantics<parallel>], iteration_bounds = array<i64: 1>, scalar_prefetch = 0 : i64, scratch_operands = 0 : i64, tpu.core_type = #tpu.core_type<tc>, window_params = [{transform_indices = @transform_0, window_bounds = array<i64: 1024, 4>}, {pipeline_mode = #tpu.pipeline_mode<synchronous>, transform_indices = @transform_1, window_bounds = array<i64: 4, 8>}, {pipeline_mode = #tpu.pipeline_mode<synchronous>, transform_indices = @transform_2, window_bounds = array<i64: 2, 8>}, {transform_indices = @transform_3, window_bounds = array<i64: 1024, 8>}]} {
    %c0 = arith.constant 0 : index
    %c0_0 = arith.constant 0 : index
    %0 = vector.load %arg1[%c0, %c0_0] : memref<1024x4xf32, #tpu.memory_space<vmem>>, vector<1024x4xf32>
    %1 = arith.truncf %0 : vector<1024x4xf32> to vector<1024x4xbf16>
    %c0_1 = arith.constant 0 : index
    %c0_2 = arith.constant 0 : index
    %2 = vector.load %arg2[%c0_1, %c0_2] : memref<4x8xbf16, #tpu.memory_space<vmem>>, vector<4x8xbf16>
    %cst = arith.constant dense<0.000000e+00> : vector<1024x8xf32>
    %3 = tpu.matmul %1, %2, %cst {dimension_numbers = #tpu.dot_dimension_numbers<[1], [0], [0], [1], [0, 0, 1, 1], [], []>} : vector<1024x4xbf16>, vector<4x8xbf16>, vector<1024x8xf32> -> vector<1024x8xf32>
    %c0_3 = arith.constant 0 : index
    %c0_4 = arith.constant 0 : index
    %4 = vector.load %arg3[%c0_3, %c0_4] : memref<2x8xf32, #tpu.memory_space<vmem>>, vector<1x8xf32>
    %5 = vector.broadcast %4 : vector<1x8xf32> to vector<1024x8xf32>
    %6 = arith.mulf %3, %5 : vector<1024x8xf32>
    %c1 = arith.constant 1 : index
    %c0_5 = arith.constant 0 : index
    %7 = vector.load %arg3[%c1, %c0_5] : memref<2x8xf32, #tpu.memory_space<vmem>>, vector<1x8xf32>
    %8 = vector.broadcast %7 : vector<1x8xf32> to vector<1024x8xf32>
    %9 = arith.addf %6, %8 : vector<1024x8xf32>
    %cst_6 = arith.constant 0.000000e+00 : f32
    %10 = vector.broadcast %cst_6 : f32 to vector<1024x8xf32>
    %11 = arith.maximumf %9, %10 : vector<1024x8xf32>
    %12 = arith.truncf %11 : vector<1024x8xf32> to vector<1024x8xbf16>
    %c0_7 = arith.constant 0 : index
    %c0_8 = arith.constant 0 : index
    %13 = vector.load %arg4[%c0_7, %c0_8] : memref<1024x8xbf16, #tpu.memory_space<vmem>>, vector<1024x8xbf16>
    tpu.vector_store %arg4[%c0_7, %c0_8], %12 {strides = array<i32>} : memref<1024x8xbf16, #tpu.memory_space<vmem>>, vector<1024x8xbf16>,
    return
  }
  func.func @transform_0(%arg0: i32) -> (i32, i32) {
    %c0_i32 = arith.constant 0 : i32
    %c0_i32_0 = arith.constant 0 : i32
    return %arg0, %c0_i32 : i32, i32
  }
  func.func @transform_1(%arg0: i32) -> (i32, i32) {
    %c0_i32 = arith.constant 0 : i32
    %c0_i32_0 = arith.constant 0 : i32
    %c0_i32_1 = arith.constant 0 : i32
    return %c0_i32, %c0_i32_0 : i32, i32
  }
  func.func @transform_2(%arg0: i32) -> (i32, i32) {
    %c0_i32 = arith.constant 0 : i32
    %c0_i32_0 = arith.constant 0 : i32
    %c0_i32_1 = arith.constant 0 : i32
    return %c0_i32, %c0_i32_0 : i32, i32
  }
  func.func @transform_3(%arg0: i32) -> (i32, i32) {
    %c0_i32 = arith.constant 0 : i32
    %c0_i32_0 = arith.constant 0 : i32
    return %arg0, %c0_i32 : i32, i32
  }
}

module attributes {stable_mosaic.version = 11 : i64} {
  func.func @_fused_3x3x3_pw_res_kernel(%arg0: i32, %arg1: i32, %arg2: memref<1x1x8x8x8xbf16, #tpu.memory_space<vmem>>, %arg3: memref<1x1x8x8x8xbf16, #tpu.memory_space<vmem>>, %arg4: memref<1x1x8x8x8xbf16, #tpu.memory_space<vmem>>, %arg5: memref<9x24x8xbf16, #tpu.memory_space<vmem>>, %arg6: memref<2x8xf32, #tpu.memory_space<vmem>>, %arg7: memref<8x8xbf16, #tpu.memory_space<vmem>>, %arg8: memref<2x8xf32, #tpu.memory_space<vmem>>, %arg9: memref<1x1x8x8x8xbf16, #tpu.memory_space<vmem>>, %arg10: memref<1x1x8x8x8xf32, #tpu.memory_space<vmem>>, %arg11: memref<110x24xbf16, #tpu.memory_space<vmem>>) attributes {dimension_semantics = [#tpu.dimension_semantics<parallel>, #tpu.dimension_semantics<arbitrary>], iteration_bounds = array<i64: 2, 8>, scalar_prefetch = 0 : i64, scratch_operands = 1 : i64, tpu.core_type = #tpu.core_type<tc>, window_params = [{transform_indices = @transform_0, window_bounds = array<i64: 1, 1, 8, 8, 8>}, {transform_indices = @transform_1, window_bounds = array<i64: 1, 1, 8, 8, 8>}, {transform_indices = @transform_2, window_bounds = array<i64: 1, 1, 8, 8, 8>}, {pipeline_mode = #tpu.pipeline_mode<synchronous>, transform_indices = @transform_3, window_bounds = array<i64: 9, 24, 8>}, {pipeline_mode = #tpu.pipeline_mode<synchronous>, transform_indices = @transform_4, window_bounds = array<i64: 2, 8>}, {pipeline_mode = #tpu.pipeline_mode<synchronous>, transform_indices = @transform_5, window_bounds = array<i64: 8, 8>}, {pipeline_mode = #tpu.pipeline_mode<synchronous>, transform_indices = @transform_6, window_bounds = array<i64: 2, 8>}, {transform_indices = @transform_7, window_bounds = array<i64: 1, 1, 8, 8, 8>}, {transform_indices = @transform_8, window_bounds = array<i64: 1, 1, 8, 8, 8>}]} {
    %c0_i32 = arith.constant 0 : i32
    %0 = arith.cmpi eq, %arg1, %c0_i32 : i32
    %1 = arith.extui %0 : i1 to i32
    %c0_i32_0 = arith.constant 0 : i32
    %2 = arith.cmpi ne, %1, %c0_i32_0 : i32
    scf.if %2 {
      %cst_119 = arith.constant 0.000000e+00 : bf16
      %112 = vector.broadcast %cst_119 : bf16 to vector<110x24xbf16>
      %c0_120 = arith.constant 0 : index
      %c0_121 = arith.constant 0 : index
      %113 = vector.load %arg11[%c0_120, %c0_121] : memref<110x24xbf16, #tpu.memory_space<vmem>>, vector<110x24xbf16>
      tpu.vector_store %arg11[%c0_120, %c0_121], %112 {strides = array<i32>} : memref<110x24xbf16, #tpu.memory_space<vmem>>, vector<110x24xbf16>,
    } else {
    }
    %c7_i32 = arith.constant 7 : i32
    %3 = arith.cmpi eq, %arg1, %c7_i32 : i32
    %4 = arith.extui %3 : i1 to i32
    %c0_i32_1 = arith.constant 0 : i32
    %5 = arith.cmpi ne, %4, %c0_i32_1 : i32
    scf.if %5 {
      %cst_119 = arith.constant 0.000000e+00 : bf16
      %112 = vector.broadcast %cst_119 : bf16 to vector<110x8xbf16>
      %c0_120 = arith.constant 0 : index
      %c16 = arith.constant 16 : index
      %113 = vector.load %arg11[%c0_120, %c16] : memref<110x24xbf16, #tpu.memory_space<vmem>>, vector<110x8xbf16>
      tpu.vector_store %arg11[%c0_120, %c16], %112 {strides = array<i32>} : memref<110x24xbf16, #tpu.memory_space<vmem>>, vector<110x8xbf16>,
    } else {
    }
    %c0_i32_2 = arith.constant 0 : i32
    %6 = arith.cmpi sgt, %arg1, %c0_i32_2 : i32
    %7 = arith.extui %6 : i1 to i32
    %c0_i32_3 = arith.constant 0 : i32
    %8 = arith.cmpi ne, %7, %c0_i32_3 : i32
    scf.if %8 {
      %c0_119 = arith.constant 0 : index
      %c0_120 = arith.constant 0 : index
      %c0_121 = arith.constant 0 : index
      %c0_122 = arith.constant 0 : index
      %c0_123 = arith.constant 0 : index
      %112 = vector.load %arg2[%c0_119, %c0_120, %c0_121, %c0_122, %c0_123] : memref<1x1x8x8x8xbf16, #tpu.memory_space<vmem>>, vector<1x1x1x8x8xbf16>
      %113 = vector.shape_cast %112 : vector<1x1x1x8x8xbf16> to vector<8x8xbf16>
      %c11_124 = arith.constant 11 : index
      %c0_125 = arith.constant 0 : index
      %114 = vector.load %arg11[%c11_124, %c0_125] : memref<110x24xbf16, #tpu.memory_space<vmem>>, vector<8x8xbf16>
      tpu.vector_store %arg11[%c11_124, %c0_125], %113 {strides = array<i32>} : memref<110x24xbf16, #tpu.memory_space<vmem>>, vector<8x8xbf16>,
      %c0_126 = arith.constant 0 : index
      %c0_127 = arith.constant 0 : index
      %c1_128 = arith.constant 1 : index
      %c0_129 = arith.constant 0 : index
      %c0_130 = arith.constant 0 : index
      %115 = vector.load %arg2[%c0_126, %c0_127, %c1_128, %c0_129, %c0_130] : memref<1x1x8x8x8xbf16, #tpu.memory_space<vmem>>, vector<1x1x1x8x8xbf16>
      %116 = vector.shape_cast %115 : vector<1x1x1x8x8xbf16> to vector<8x8xbf16>
      %c21_131 = arith.constant 21 : index
      %c0_132 = arith.constant 0 : index
      %117 = vector.load %arg11[%c21_131, %c0_132] : memref<110x24xbf16, #tpu.memory_space<vmem>>, vector<8x8xbf16>
      tpu.vector_store %arg11[%c21_131, %c0_132], %116 {strides = array<i32>} : memref<110x24xbf16, #tpu.memory_space<vmem>>, vector<8x8xbf16>,
      %c0_133 = arith.constant 0 : index
      %c0_134 = arith.constant 0 : index
      %c2_135 = arith.constant 2 : index
      %c0_136 = arith.constant 0 : index
      %c0_137 = arith.constant 0 : index
      %118 = vector.load %arg2[%c0_133, %c0_134, %c2_135, %c0_136, %c0_137] : memref<1x1x8x8x8xbf16, #tpu.memory_space<vmem>>, vector<1x1x1x8x8xbf16>
      %119 = vector.shape_cast %118 : vector<1x1x1x8x8xbf16> to vector<8x8xbf16>
      %c31_138 = arith.constant 31 : index
      %c0_139 = arith.constant 0 : index
      %120 = vector.load %arg11[%c31_138, %c0_139] : memref<110x24xbf16, #tpu.memory_space<vmem>>, vector<8x8xbf16>
      tpu.vector_store %arg11[%c31_138, %c0_139], %119 {strides = array<i32>} : memref<110x24xbf16, #tpu.memory_space<vmem>>, vector<8x8xbf16>,
      %c0_140 = arith.constant 0 : index
      %c0_141 = arith.constant 0 : index
      %c3_142 = arith.constant 3 : index
      %c0_143 = arith.constant 0 : index
      %c0_144 = arith.constant 0 : index
      %121 = vector.load %arg2[%c0_140, %c0_141, %c3_142, %c0_143, %c0_144] : memref<1x1x8x8x8xbf16, #tpu.memory_space<vmem>>, vector<1x1x1x8x8xbf16>
      %122 = vector.shape_cast %121 : vector<1x1x1x8x8xbf16> to vector<8x8xbf16>
      %c41_145 = arith.constant 41 : index
      %c0_146 = arith.constant 0 : index
      %123 = vector.load %arg11[%c41_145, %c0_146] : memref<110x24xbf16, #tpu.memory_space<vmem>>, vector<8x8xbf16>
      tpu.vector_store %arg11[%c41_145, %c0_146], %122 {strides = array<i32>} : memref<110x24xbf16, #tpu.memory_space<vmem>>, vector<8x8xbf16>,
      %c0_147 = arith.constant 0 : index
      %c0_148 = arith.constant 0 : index
      %c4_149 = arith.constant 4 : index
      %c0_150 = arith.constant 0 : index
      %c0_151 = arith.constant 0 : index
      %124 = vector.load %arg2[%c0_147, %c0_148, %c4_149, %c0_150, %c0_151] : memref<1x1x8x8x8xbf16, #tpu.memory_space<vmem>>, vector<1x1x1x8x8xbf16>
      %125 = vector.shape_cast %124 : vector<1x1x1x8x8xbf16> to vector<8x8xbf16>
      %c51_152 = arith.constant 51 : index
      %c0_153 = arith.constant 0 : index
      %126 = vector.load %arg11[%c51_152, %c0_153] : memref<110x24xbf16, #tpu.memory_space<vmem>>, vector<8x8xbf16>
      tpu.vector_store %arg11[%c51_152, %c0_153], %125 {strides = array<i32>} : memref<110x24xbf16, #tpu.memory_space<vmem>>, vector<8x8xbf16>,
      %c0_154 = arith.constant 0 : index
      %c0_155 = arith.constant 0 : index
      %c5_156 = arith.constant 5 : index
      %c0_157 = arith.constant 0 : index
      %c0_158 = arith.constant 0 : index
      %127 = vector.load %arg2[%c0_154, %c0_155, %c5_156, %c0_157, %c0_158] : memref<1x1x8x8x8xbf16, #tpu.memory_space<vmem>>, vector<1x1x1x8x8xbf16>
      %128 = vector.shape_cast %127 : vector<1x1x1x8x8xbf16> to vector<8x8xbf16>
      %c61_159 = arith.constant 61 : index
      %c0_160 = arith.constant 0 : index
      %129 = vector.load %arg11[%c61_159, %c0_160] : memref<110x24xbf16, #tpu.memory_space<vmem>>, vector<8x8xbf16>
      tpu.vector_store %arg11[%c61_159, %c0_160], %128 {strides = array<i32>} : memref<110x24xbf16, #tpu.memory_space<vmem>>, vector<8x8xbf16>,
      %c0_161 = arith.constant 0 : index
      %c0_162 = arith.constant 0 : index
      %c6_163 = arith.constant 6 : index
      %c0_164 = arith.constant 0 : index
      %c0_165 = arith.constant 0 : index
      %130 = vector.load %arg2[%c0_161, %c0_162, %c6_163, %c0_164, %c0_165] : memref<1x1x8x8x8xbf16, #tpu.memory_space<vmem>>, vector<1x1x1x8x8xbf16>
      %131 = vector.shape_cast %130 : vector<1x1x1x8x8xbf16> to vector<8x8xbf16>
      %c71_166 = arith.constant 71 : index
      %c0_167 = arith.constant 0 : index
      %132 = vector.load %arg11[%c71_166, %c0_167] : memref<110x24xbf16, #tpu.memory_space<vmem>>, vector<8x8xbf16>
      tpu.vector_store %arg11[%c71_166, %c0_167], %131 {strides = array<i32>} : memref<110x24xbf16, #tpu.memory_space<vmem>>, vector<8x8xbf16>,
      %c0_168 = arith.constant 0 : index
      %c0_169 = arith.constant 0 : index
      %c7_170 = arith.constant 7 : index
      %c0_171 = arith.constant 0 : index
      %c0_172 = arith.constant 0 : index
      %133 = vector.load %arg2[%c0_168, %c0_169, %c7_170, %c0_171, %c0_172] : memref<1x1x8x8x8xbf16, #tpu.memory_space<vmem>>, vector<1x1x1x8x8xbf16>
      %134 = vector.shape_cast %133 : vector<1x1x1x8x8xbf16> to vector<8x8xbf16>
      %c81_173 = arith.constant 81 : index
      %c0_174 = arith.constant 0 : index
      %135 = vector.load %arg11[%c81_173, %c0_174] : memref<110x24xbf16, #tpu.memory_space<vmem>>, vector<8x8xbf16>
      tpu.vector_store %arg11[%c81_173, %c0_174], %134 {strides = array<i32>} : memref<110x24xbf16, #tpu.memory_space<vmem>>, vector<8x8xbf16>,
    } else {
    }
    %c0 = arith.constant 0 : index
    %c0_4 = arith.constant 0 : index
    %c0_5 = arith.constant 0 : index
    %c0_6 = arith.constant 0 : index
    %c0_7 = arith.constant 0 : index
    %9 = vector.load %arg3[%c0, %c0_4, %c0_5, %c0_6, %c0_7] : memref<1x1x8x8x8xbf16, #tpu.memory_space<vmem>>, vector<1x1x1x8x8xbf16>
    %10 = vector.shape_cast %9 : vector<1x1x1x8x8xbf16> to vector<8x8xbf16>
    %c11 = arith.constant 11 : index
    %c8 = arith.constant 8 : index
    %11 = vector.load %arg11[%c11, %c8] : memref<110x24xbf16, #tpu.memory_space<vmem>>, vector<8x8xbf16>
    tpu.vector_store %arg11[%c11, %c8], %10 {strides = array<i32>} : memref<110x24xbf16, #tpu.memory_space<vmem>>, vector<8x8xbf16>,
    %c0_8 = arith.constant 0 : index
    %c0_9 = arith.constant 0 : index
    %c1 = arith.constant 1 : index
    %c0_10 = arith.constant 0 : index
    %c0_11 = arith.constant 0 : index
    %12 = vector.load %arg3[%c0_8, %c0_9, %c1, %c0_10, %c0_11] : memref<1x1x8x8x8xbf16, #tpu.memory_space<vmem>>, vector<1x1x1x8x8xbf16>
    %13 = vector.shape_cast %12 : vector<1x1x1x8x8xbf16> to vector<8x8xbf16>
    %c21 = arith.constant 21 : index
    %c8_12 = arith.constant 8 : index
    %14 = vector.load %arg11[%c21, %c8_12] : memref<110x24xbf16, #tpu.memory_space<vmem>>, vector<8x8xbf16>
    tpu.vector_store %arg11[%c21, %c8_12], %13 {strides = array<i32>} : memref<110x24xbf16, #tpu.memory_space<vmem>>, vector<8x8xbf16>,
    %c0_13 = arith.constant 0 : index
    %c0_14 = arith.constant 0 : index
    %c2 = arith.constant 2 : index
    %c0_15 = arith.constant 0 : index
    %c0_16 = arith.constant 0 : index
    %15 = vector.load %arg3[%c0_13, %c0_14, %c2, %c0_15, %c0_16] : memref<1x1x8x8x8xbf16, #tpu.memory_space<vmem>>, vector<1x1x1x8x8xbf16>
    %16 = vector.shape_cast %15 : vector<1x1x1x8x8xbf16> to vector<8x8xbf16>
    %c31 = arith.constant 31 : index
    %c8_17 = arith.constant 8 : index
    %17 = vector.load %arg11[%c31, %c8_17] : memref<110x24xbf16, #tpu.memory_space<vmem>>, vector<8x8xbf16>
    tpu.vector_store %arg11[%c31, %c8_17], %16 {strides = array<i32>} : memref<110x24xbf16, #tpu.memory_space<vmem>>, vector<8x8xbf16>,
    %c0_18 = arith.constant 0 : index
    %c0_19 = arith.constant 0 : index
    %c3 = arith.constant 3 : index
    %c0_20 = arith.constant 0 : index
    %c0_21 = arith.constant 0 : index
    %18 = vector.load %arg3[%c0_18, %c0_19, %c3, %c0_20, %c0_21] : memref<1x1x8x8x8xbf16, #tpu.memory_space<vmem>>, vector<1x1x1x8x8xbf16>
    %19 = vector.shape_cast %18 : vector<1x1x1x8x8xbf16> to vector<8x8xbf16>
    %c41 = arith.constant 41 : index
    %c8_22 = arith.constant 8 : index
    %20 = vector.load %arg11[%c41, %c8_22] : memref<110x24xbf16, #tpu.memory_space<vmem>>, vector<8x8xbf16>
    tpu.vector_store %arg11[%c41, %c8_22], %19 {strides = array<i32>} : memref<110x24xbf16, #tpu.memory_space<vmem>>, vector<8x8xbf16>,
    %c0_23 = arith.constant 0 : index
    %c0_24 = arith.constant 0 : index
    %c4 = arith.constant 4 : index
    %c0_25 = arith.constant 0 : index
    %c0_26 = arith.constant 0 : index
    %21 = vector.load %arg3[%c0_23, %c0_24, %c4, %c0_25, %c0_26] : memref<1x1x8x8x8xbf16, #tpu.memory_space<vmem>>, vector<1x1x1x8x8xbf16>
    %22 = vector.shape_cast %21 : vector<1x1x1x8x8xbf16> to vector<8x8xbf16>
    %c51 = arith.constant 51 : index
    %c8_27 = arith.constant 8 : index
    %23 = vector.load %arg11[%c51, %c8_27] : memref<110x24xbf16, #tpu.memory_space<vmem>>, vector<8x8xbf16>
    tpu.vector_store %arg11[%c51, %c8_27], %22 {strides = array<i32>} : memref<110x24xbf16, #tpu.memory_space<vmem>>, vector<8x8xbf16>,
    %c0_28 = arith.constant 0 : index
    %c0_29 = arith.constant 0 : index
    %c5 = arith.constant 5 : index
    %c0_30 = arith.constant 0 : index
    %c0_31 = arith.constant 0 : index
    %24 = vector.load %arg3[%c0_28, %c0_29, %c5, %c0_30, %c0_31] : memref<1x1x8x8x8xbf16, #tpu.memory_space<vmem>>, vector<1x1x1x8x8xbf16>
    %25 = vector.shape_cast %24 : vector<1x1x1x8x8xbf16> to vector<8x8xbf16>
    %c61 = arith.constant 61 : index
    %c8_32 = arith.constant 8 : index
    %26 = vector.load %arg11[%c61, %c8_32] : memref<110x24xbf16, #tpu.memory_space<vmem>>, vector<8x8xbf16>
    tpu.vector_store %arg11[%c61, %c8_32], %25 {strides = array<i32>} : memref<110x24xbf16, #tpu.memory_space<vmem>>, vector<8x8xbf16>,
    %c0_33 = arith.constant 0 : index
    %c0_34 = arith.constant 0 : index
    %c6 = arith.constant 6 : index
    %c0_35 = arith.constant 0 : index
    %c0_36 = arith.constant 0 : index
    %27 = vector.load %arg3[%c0_33, %c0_34, %c6, %c0_35, %c0_36] : memref<1x1x8x8x8xbf16, #tpu.memory_space<vmem>>, vector<1x1x1x8x8xbf16>
    %28 = vector.shape_cast %27 : vector<1x1x1x8x8xbf16> to vector<8x8xbf16>
    %c71 = arith.constant 71 : index
    %c8_37 = arith.constant 8 : index
    %29 = vector.load %arg11[%c71, %c8_37] : memref<110x24xbf16, #tpu.memory_space<vmem>>, vector<8x8xbf16>
    tpu.vector_store %arg11[%c71, %c8_37], %28 {strides = array<i32>} : memref<110x24xbf16, #tpu.memory_space<vmem>>, vector<8x8xbf16>,
    %c0_38 = arith.constant 0 : index
    %c0_39 = arith.constant 0 : index
    %c7 = arith.constant 7 : index
    %c0_40 = arith.constant 0 : index
    %c0_41 = arith.constant 0 : index
    %30 = vector.load %arg3[%c0_38, %c0_39, %c7, %c0_40, %c0_41] : memref<1x1x8x8x8xbf16, #tpu.memory_space<vmem>>, vector<1x1x1x8x8xbf16>
    %31 = vector.shape_cast %30 : vector<1x1x1x8x8xbf16> to vector<8x8xbf16>
    %c81 = arith.constant 81 : index
    %c8_42 = arith.constant 8 : index
    %32 = vector.load %arg11[%c81, %c8_42] : memref<110x24xbf16, #tpu.memory_space<vmem>>, vector<8x8xbf16>
    tpu.vector_store %arg11[%c81, %c8_42], %31 {strides = array<i32>} : memref<110x24xbf16, #tpu.memory_space<vmem>>, vector<8x8xbf16>,
    %c7_i32_43 = arith.constant 7 : i32
    %33 = arith.cmpi slt, %arg1, %c7_i32_43 : i32
    %34 = arith.extui %33 : i1 to i32
    %c0_i32_44 = arith.constant 0 : i32
    %35 = arith.cmpi ne, %34, %c0_i32_44 : i32
    scf.if %35 {
      %c0_119 = arith.constant 0 : index
      %c0_120 = arith.constant 0 : index
      %c0_121 = arith.constant 0 : index
      %c0_122 = arith.constant 0 : index
      %c0_123 = arith.constant 0 : index
      %112 = vector.load %arg4[%c0_119, %c0_120, %c0_121, %c0_122, %c0_123] : memref<1x1x8x8x8xbf16, #tpu.memory_space<vmem>>, vector<1x1x1x8x8xbf16>
      %113 = vector.shape_cast %112 : vector<1x1x1x8x8xbf16> to vector<8x8xbf16>
      %c11_124 = arith.constant 11 : index
      %c16 = arith.constant 16 : index
      %114 = vector.load %arg11[%c11_124, %c16] : memref<110x24xbf16, #tpu.memory_space<vmem>>, vector<8x8xbf16>
      tpu.vector_store %arg11[%c11_124, %c16], %113 {strides = array<i32>} : memref<110x24xbf16, #tpu.memory_space<vmem>>, vector<8x8xbf16>,
      %c0_125 = arith.constant 0 : index
      %c0_126 = arith.constant 0 : index
      %c1_127 = arith.constant 1 : index
      %c0_128 = arith.constant 0 : index
      %c0_129 = arith.constant 0 : index
      %115 = vector.load %arg4[%c0_125, %c0_126, %c1_127, %c0_128, %c0_129] : memref<1x1x8x8x8xbf16, #tpu.memory_space<vmem>>, vector<1x1x1x8x8xbf16>
      %116 = vector.shape_cast %115 : vector<1x1x1x8x8xbf16> to vector<8x8xbf16>
      %c21_130 = arith.constant 21 : index
      %c16_131 = arith.constant 16 : index
      %117 = vector.load %arg11[%c21_130, %c16_131] : memref<110x24xbf16, #tpu.memory_space<vmem>>, vector<8x8xbf16>
      tpu.vector_store %arg11[%c21_130, %c16_131], %116 {strides = array<i32>} : memref<110x24xbf16, #tpu.memory_space<vmem>>, vector<8x8xbf16>,
      %c0_132 = arith.constant 0 : index
      %c0_133 = arith.constant 0 : index
      %c2_134 = arith.constant 2 : index
      %c0_135 = arith.constant 0 : index
      %c0_136 = arith.constant 0 : index
      %118 = vector.load %arg4[%c0_132, %c0_133, %c2_134, %c0_135, %c0_136] : memref<1x1x8x8x8xbf16, #tpu.memory_space<vmem>>, vector<1x1x1x8x8xbf16>
      %119 = vector.shape_cast %118 : vector<1x1x1x8x8xbf16> to vector<8x8xbf16>
      %c31_137 = arith.constant 31 : index
      %c16_138 = arith.constant 16 : index
      %120 = vector.load %arg11[%c31_137, %c16_138] : memref<110x24xbf16, #tpu.memory_space<vmem>>, vector<8x8xbf16>
      tpu.vector_store %arg11[%c31_137, %c16_138], %119 {strides = array<i32>} : memref<110x24xbf16, #tpu.memory_space<vmem>>, vector<8x8xbf16>,
      %c0_139 = arith.constant 0 : index
      %c0_140 = arith.constant 0 : index
      %c3_141 = arith.constant 3 : index
      %c0_142 = arith.constant 0 : index
      %c0_143 = arith.constant 0 : index
      %121 = vector.load %arg4[%c0_139, %c0_140, %c3_141, %c0_142, %c0_143] : memref<1x1x8x8x8xbf16, #tpu.memory_space<vmem>>, vector<1x1x1x8x8xbf16>
      %122 = vector.shape_cast %121 : vector<1x1x1x8x8xbf16> to vector<8x8xbf16>
      %c41_144 = arith.constant 41 : index
      %c16_145 = arith.constant 16 : index
      %123 = vector.load %arg11[%c41_144, %c16_145] : memref<110x24xbf16, #tpu.memory_space<vmem>>, vector<8x8xbf16>
      tpu.vector_store %arg11[%c41_144, %c16_145], %122 {strides = array<i32>} : memref<110x24xbf16, #tpu.memory_space<vmem>>, vector<8x8xbf16>,
      %c0_146 = arith.constant 0 : index
      %c0_147 = arith.constant 0 : index
      %c4_148 = arith.constant 4 : index
      %c0_149 = arith.constant 0 : index
      %c0_150 = arith.constant 0 : index
      %124 = vector.load %arg4[%c0_146, %c0_147, %c4_148, %c0_149, %c0_150] : memref<1x1x8x8x8xbf16, #tpu.memory_space<vmem>>, vector<1x1x1x8x8xbf16>
      %125 = vector.shape_cast %124 : vector<1x1x1x8x8xbf16> to vector<8x8xbf16>
      %c51_151 = arith.constant 51 : index
      %c16_152 = arith.constant 16 : index
      %126 = vector.load %arg11[%c51_151, %c16_152] : memref<110x24xbf16, #tpu.memory_space<vmem>>, vector<8x8xbf16>
      tpu.vector_store %arg11[%c51_151, %c16_152], %125 {strides = array<i32>} : memref<110x24xbf16, #tpu.memory_space<vmem>>, vector<8x8xbf16>,
      %c0_153 = arith.constant 0 : index
      %c0_154 = arith.constant 0 : index
      %c5_155 = arith.constant 5 : index
      %c0_156 = arith.constant 0 : index
      %c0_157 = arith.constant 0 : index
      %127 = vector.load %arg4[%c0_153, %c0_154, %c5_155, %c0_156, %c0_157] : memref<1x1x8x8x8xbf16, #tpu.memory_space<vmem>>, vector<1x1x1x8x8xbf16>
      %128 = vector.shape_cast %127 : vector<1x1x1x8x8xbf16> to vector<8x8xbf16>
      %c61_158 = arith.constant 61 : index
      %c16_159 = arith.constant 16 : index
      %129 = vector.load %arg11[%c61_158, %c16_159] : memref<110x24xbf16, #tpu.memory_space<vmem>>, vector<8x8xbf16>
      tpu.vector_store %arg11[%c61_158, %c16_159], %128 {strides = array<i32>} : memref<110x24xbf16, #tpu.memory_space<vmem>>, vector<8x8xbf16>,
      %c0_160 = arith.constant 0 : index
      %c0_161 = arith.constant 0 : index
      %c6_162 = arith.constant 6 : index
      %c0_163 = arith.constant 0 : index
      %c0_164 = arith.constant 0 : index
      %130 = vector.load %arg4[%c0_160, %c0_161, %c6_162, %c0_163, %c0_164] : memref<1x1x8x8x8xbf16, #tpu.memory_space<vmem>>, vector<1x1x1x8x8xbf16>
      %131 = vector.shape_cast %130 : vector<1x1x1x8x8xbf16> to vector<8x8xbf16>
      %c71_165 = arith.constant 71 : index
      %c16_166 = arith.constant 16 : index
      %132 = vector.load %arg11[%c71_165, %c16_166] : memref<110x24xbf16, #tpu.memory_space<vmem>>, vector<8x8xbf16>
      tpu.vector_store %arg11[%c71_165, %c16_166], %131 {strides = array<i32>} : memref<110x24xbf16, #tpu.memory_space<vmem>>, vector<8x8xbf16>,
      %c0_167 = arith.constant 0 : index
      %c0_168 = arith.constant 0 : index
      %c7_169 = arith.constant 7 : index
      %c0_170 = arith.constant 0 : index
      %c0_171 = arith.constant 0 : index
      %133 = vector.load %arg4[%c0_167, %c0_168, %c7_169, %c0_170, %c0_171] : memref<1x1x8x8x8xbf16, #tpu.memory_space<vmem>>, vector<1x1x1x8x8xbf16>
      %134 = vector.shape_cast %133 : vector<1x1x1x8x8xbf16> to vector<8x8xbf16>
      %c81_172 = arith.constant 81 : index
      %c16_173 = arith.constant 16 : index
      %135 = vector.load %arg11[%c81_172, %c16_173] : memref<110x24xbf16, #tpu.memory_space<vmem>>, vector<8x8xbf16>
      tpu.vector_store %arg11[%c81_172, %c16_173], %134 {strides = array<i32>} : memref<110x24xbf16, #tpu.memory_space<vmem>>, vector<8x8xbf16>,
    } else {
    }
    %cst = arith.constant 0.000000e+00 : f32
    %36 = vector.broadcast %cst : f32 to vector<80x8xf32>
    %c0_45 = arith.constant 0 : index
    %c0_46 = arith.constant 0 : index
    %37 = vector.load %arg11[%c0_45, %c0_46] : memref<110x24xbf16, #tpu.memory_space<vmem>>, vector<80x24xbf16>
    %c0_47 = arith.constant 0 : index
    %c0_48 = arith.constant 0 : index
    %c0_49 = arith.constant 0 : index
    %38 = vector.load %arg5[%c0_47, %c0_48, %c0_49] : memref<9x24x8xbf16, #tpu.memory_space<vmem>>, vector<1x24x8xbf16>
    %39 = vector.shape_cast %38 : vector<1x24x8xbf16> to vector<24x8xbf16>
    %cst_50 = arith.constant dense<0.000000e+00> : vector<80x8xf32>
    %40 = tpu.matmul %37, %39, %cst_50 {dimension_numbers = #tpu.dot_dimension_numbers<[1], [0], [0], [1], [0, 0, 1, 1], [], []>} : vector<80x24xbf16>, vector<24x8xbf16>, vector<80x8xf32> -> vector<80x8xf32>
    %41 = arith.addf %36, %40 : vector<80x8xf32>
    %c1_51 = arith.constant 1 : index
    %c0_52 = arith.constant 0 : index
    %42 = vector.load %arg11[%c1_51, %c0_52] : memref<110x24xbf16, #tpu.memory_space<vmem>>, vector<80x24xbf16>
    %c1_53 = arith.constant 1 : index
    %c0_54 = arith.constant 0 : index
    %c0_55 = arith.constant 0 : index
    %43 = vector.load %arg5[%c1_53, %c0_54, %c0_55] : memref<9x24x8xbf16, #tpu.memory_space<vmem>>, vector<1x24x8xbf16>
    %44 = vector.shape_cast %43 : vector<1x24x8xbf16> to vector<24x8xbf16>
    %cst_56 = arith.constant dense<0.000000e+00> : vector<80x8xf32>
    %45 = tpu.matmul %42, %44, %cst_56 {dimension_numbers = #tpu.dot_dimension_numbers<[1], [0], [0], [1], [0, 0, 1, 1], [], []>} : vector<80x24xbf16>, vector<24x8xbf16>, vector<80x8xf32> -> vector<80x8xf32>
    %46 = arith.addf %41, %45 : vector<80x8xf32>
    %c2_57 = arith.constant 2 : index
    %c0_58 = arith.constant 0 : index
    %47 = vector.load %arg11[%c2_57, %c0_58] : memref<110x24xbf16, #tpu.memory_space<vmem>>, vector<80x24xbf16>
    %c2_59 = arith.constant 2 : index
    %c0_60 = arith.constant 0 : index
    %c0_61 = arith.constant 0 : index
    %48 = vector.load %arg5[%c2_59, %c0_60, %c0_61] : memref<9x24x8xbf16, #tpu.memory_space<vmem>>, vector<1x24x8xbf16>
    %49 = vector.shape_cast %48 : vector<1x24x8xbf16> to vector<24x8xbf16>
    %cst_62 = arith.constant dense<0.000000e+00> : vector<80x8xf32>
    %50 = tpu.matmul %47, %49, %cst_62 {dimension_numbers = #tpu.dot_dimension_numbers<[1], [0], [0], [1], [0, 0, 1, 1], [], []>} : vector<80x24xbf16>, vector<24x8xbf16>, vector<80x8xf32> -> vector<80x8xf32>
    %51 = arith.addf %46, %50 : vector<80x8xf32>
    %c10 = arith.constant 10 : index
    %c0_63 = arith.constant 0 : index
    %52 = vector.load %arg11[%c10, %c0_63] : memref<110x24xbf16, #tpu.memory_space<vmem>>, vector<80x24xbf16>
    %c3_64 = arith.constant 3 : index
    %c0_65 = arith.constant 0 : index
    %c0_66 = arith.constant 0 : index
    %53 = vector.load %arg5[%c3_64, %c0_65, %c0_66] : memref<9x24x8xbf16, #tpu.memory_space<vmem>>, vector<1x24x8xbf16>
    %54 = vector.shape_cast %53 : vector<1x24x8xbf16> to vector<24x8xbf16>
    %cst_67 = arith.constant dense<0.000000e+00> : vector<80x8xf32>
    %55 = tpu.matmul %52, %54, %cst_67 {dimension_numbers = #tpu.dot_dimension_numbers<[1], [0], [0], [1], [0, 0, 1, 1], [], []>} : vector<80x24xbf16>, vector<24x8xbf16>, vector<80x8xf32> -> vector<80x8xf32>
    %56 = arith.addf %51, %55 : vector<80x8xf32>
    %c11_68 = arith.constant 11 : index
    %c0_69 = arith.constant 0 : index
    %57 = vector.load %arg11[%c11_68, %c0_69] : memref<110x24xbf16, #tpu.memory_space<vmem>>, vector<80x24xbf16>
    %c4_70 = arith.constant 4 : index
    %c0_71 = arith.constant 0 : index
    %c0_72 = arith.constant 0 : index
    %58 = vector.load %arg5[%c4_70, %c0_71, %c0_72] : memref<9x24x8xbf16, #tpu.memory_space<vmem>>, vector<1x24x8xbf16>
    %59 = vector.shape_cast %58 : vector<1x24x8xbf16> to vector<24x8xbf16>
    %cst_73 = arith.constant dense<0.000000e+00> : vector<80x8xf32>
    %60 = tpu.matmul %57, %59, %cst_73 {dimension_numbers = #tpu.dot_dimension_numbers<[1], [0], [0], [1], [0, 0, 1, 1], [], []>} : vector<80x24xbf16>, vector<24x8xbf16>, vector<80x8xf32> -> vector<80x8xf32>
    %61 = arith.addf %56, %60 : vector<80x8xf32>
    %c12 = arith.constant 12 : index
    %c0_74 = arith.constant 0 : index
    %62 = vector.load %arg11[%c12, %c0_74] : memref<110x24xbf16, #tpu.memory_space<vmem>>, vector<80x24xbf16>
    %c5_75 = arith.constant 5 : index
    %c0_76 = arith.constant 0 : index
    %c0_77 = arith.constant 0 : index
    %63 = vector.load %arg5[%c5_75, %c0_76, %c0_77] : memref<9x24x8xbf16, #tpu.memory_space<vmem>>, vector<1x24x8xbf16>
    %64 = vector.shape_cast %63 : vector<1x24x8xbf16> to vector<24x8xbf16>
    %cst_78 = arith.constant dense<0.000000e+00> : vector<80x8xf32>
    %65 = tpu.matmul %62, %64, %cst_78 {dimension_numbers = #tpu.dot_dimension_numbers<[1], [0], [0], [1], [0, 0, 1, 1], [], []>} : vector<80x24xbf16>, vector<24x8xbf16>, vector<80x8xf32> -> vector<80x8xf32>
    %66 = arith.addf %61, %65 : vector<80x8xf32>
    %c20 = arith.constant 20 : index
    %c0_79 = arith.constant 0 : index
    %67 = vector.load %arg11[%c20, %c0_79] : memref<110x24xbf16, #tpu.memory_space<vmem>>, vector<80x24xbf16>
    %c6_80 = arith.constant 6 : index
    %c0_81 = arith.constant 0 : index
    %c0_82 = arith.constant 0 : index
    %68 = vector.load %arg5[%c6_80, %c0_81, %c0_82] : memref<9x24x8xbf16, #tpu.memory_space<vmem>>, vector<1x24x8xbf16>
    %69 = vector.shape_cast %68 : vector<1x24x8xbf16> to vector<24x8xbf16>
    %cst_83 = arith.constant dense<0.000000e+00> : vector<80x8xf32>
    %70 = tpu.matmul %67, %69, %cst_83 {dimension_numbers = #tpu.dot_dimension_numbers<[1], [0], [0], [1], [0, 0, 1, 1], [], []>} : vector<80x24xbf16>, vector<24x8xbf16>, vector<80x8xf32> -> vector<80x8xf32>
    %71 = arith.addf %66, %70 : vector<80x8xf32>
    %c21_84 = arith.constant 21 : index
    %c0_85 = arith.constant 0 : index
    %72 = vector.load %arg11[%c21_84, %c0_85] : memref<110x24xbf16, #tpu.memory_space<vmem>>, vector<80x24xbf16>
    %c7_86 = arith.constant 7 : index
    %c0_87 = arith.constant 0 : index
    %c0_88 = arith.constant 0 : index
    %73 = vector.load %arg5[%c7_86, %c0_87, %c0_88] : memref<9x24x8xbf16, #tpu.memory_space<vmem>>, vector<1x24x8xbf16>
    %74 = vector.shape_cast %73 : vector<1x24x8xbf16> to vector<24x8xbf16>
    %cst_89 = arith.constant dense<0.000000e+00> : vector<80x8xf32>
    %75 = tpu.matmul %72, %74, %cst_89 {dimension_numbers = #tpu.dot_dimension_numbers<[1], [0], [0], [1], [0, 0, 1, 1], [], []>} : vector<80x24xbf16>, vector<24x8xbf16>, vector<80x8xf32> -> vector<80x8xf32>
    %76 = arith.addf %71, %75 : vector<80x8xf32>
    %c22 = arith.constant 22 : index
    %c0_90 = arith.constant 0 : index
    %77 = vector.load %arg11[%c22, %c0_90] : memref<110x24xbf16, #tpu.memory_space<vmem>>, vector<80x24xbf16>
    %c8_91 = arith.constant 8 : index
    %c0_92 = arith.constant 0 : index
    %c0_93 = arith.constant 0 : index
    %78 = vector.load %arg5[%c8_91, %c0_92, %c0_93] : memref<9x24x8xbf16, #tpu.memory_space<vmem>>, vector<1x24x8xbf16>
    %79 = vector.shape_cast %78 : vector<1x24x8xbf16> to vector<24x8xbf16>
    %cst_94 = arith.constant dense<0.000000e+00> : vector<80x8xf32>
    %80 = tpu.matmul %77, %79, %cst_94 {dimension_numbers = #tpu.dot_dimension_numbers<[1], [0], [0], [1], [0, 0, 1, 1], [], []>} : vector<80x24xbf16>, vector<24x8xbf16>, vector<80x8xf32> -> vector<80x8xf32>
    %81 = arith.addf %76, %80 : vector<80x8xf32>
    %c0_95 = arith.constant 0 : index
    %c0_96 = arith.constant 0 : index
    %82 = vector.load %arg6[%c0_95, %c0_96] : memref<2x8xf32, #tpu.memory_space<vmem>>, vector<1x8xf32>
    %83 = vector.broadcast %82 : vector<1x8xf32> to vector<80x8xf32>
    %84 = arith.mulf %81, %83 : vector<80x8xf32>
    %c1_97 = arith.constant 1 : index
    %c0_98 = arith.constant 0 : index
    %85 = vector.load %arg6[%c1_97, %c0_98] : memref<2x8xf32, #tpu.memory_space<vmem>>, vector<1x8xf32>
    %86 = vector.broadcast %85 : vector<1x8xf32> to vector<80x8xf32>
    %87 = arith.addf %84, %86 : vector<80x8xf32>
    %cst_99 = arith.constant 0.000000e+00 : f32
    %88 = vector.broadcast %cst_99 : f32 to vector<80x8xf32>
    %89 = arith.maximumf %87, %88 : vector<80x8xf32>
    %90 = arith.truncf %89 : vector<80x8xf32> to vector<80x8xbf16>
    %c0_100 = arith.constant 0 : index
    %c0_101 = arith.constant 0 : index
    %91 = vector.load %arg7[%c0_100, %c0_101] : memref<8x8xbf16, #tpu.memory_space<vmem>>, vector<8x8xbf16>
    %cst_102 = arith.constant dense<0.000000e+00> : vector<80x8xf32>
    %92 = tpu.matmul %90, %91, %cst_102 {dimension_numbers = #tpu.dot_dimension_numbers<[1], [0], [0], [1], [0, 0, 1, 1], [], []>} : vector<80x8xbf16>, vector<8x8xbf16>, vector<80x8xf32> -> vector<80x8xf32>
    %c0_103 = arith.constant 0 : index
    %c0_104 = arith.constant 0 : index
    %93 = vector.load %arg8[%c0_103, %c0_104] : memref<2x8xf32, #tpu.memory_space<vmem>>, vector<1x8xf32>
    %94 = vector.broadcast %93 : vector<1x8xf32> to vector<80x8xf32>
    %95 = arith.mulf %92, %94 : vector<80x8xf32>
    %c1_105 = arith.constant 1 : index
    %c0_106 = arith.constant 0 : index
    %96 = vector.load %arg8[%c1_105, %c0_106] : memref<2x8xf32, #tpu.memory_space<vmem>>, vector<1x8xf32>
    %97 = vector.broadcast %96 : vector<1x8xf32> to vector<80x8xf32>
    %98 = arith.addf %95, %97 : vector<80x8xf32>
    %cst_107 = arith.constant 0.000000e+00 : f32
    %99 = vector.broadcast %cst_107 : f32 to vector<80x8xf32>
    %100 = arith.maximumf %98, %99 : vector<80x8xf32>
    %101 = vector.shape_cast %100 : vector<80x8xf32> to vector<8x10x8xf32>
    %102 = vector.extract_strided_slice %101 {offsets = [0, 0, 0], sizes = [8, 8, 8], strides = [1, 1, 1]} : vector<8x10x8xf32> to vector<8x8x8xf32>
    %c0_108 = arith.constant 0 : index
    %c0_109 = arith.constant 0 : index
    %c0_110 = arith.constant 0 : index
    %c0_111 = arith.constant 0 : index
    %c0_112 = arith.constant 0 : index
    %103 = vector.load %arg9[%c0_108, %c0_109, %c0_110, %c0_111, %c0_112] : memref<1x1x8x8x8xbf16, #tpu.memory_space<vmem>>, vector<1x1x8x8x8xbf16>
    %104 = vector.shape_cast %103 : vector<1x1x8x8x8xbf16> to vector<8x8x8xbf16>
    %105 = arith.extf %104 : vector<8x8x8xbf16> to vector<8x8x8xf32>
    %106 = arith.addf %102, %105 : vector<8x8x8xf32>
    %cst_113 = arith.constant 0.000000e+00 : f32
    %107 = vector.broadcast %cst_113 : f32 to vector<8x8x8xf32>
    %108 = arith.maximumf %106, %107 : vector<8x8x8xf32>
    %c0_114 = arith.constant 0 : index
    %c0_115 = arith.constant 0 : index
    %c0_116 = arith.constant 0 : index
    %c0_117 = arith.constant 0 : index
    %c0_118 = arith.constant 0 : index
    %109 = vector.load %arg10[%c0_114, %c0_115, %c0_116, %c0_117, %c0_118] : memref<1x1x8x8x8xf32, #tpu.memory_space<vmem>>, vector<1x1x8x8x8xf32>
    %110 = vector.shape_cast %109 : vector<1x1x8x8x8xf32> to vector<8x8x8xf32>
    %111 = vector.shape_cast %108 : vector<8x8x8xf32> to vector<1x1x8x8x8xf32>
    tpu.vector_store %arg10[%c0_114, %c0_115, %c0_116, %c0_117, %c0_118], %111 {strides = array<i32>} : memref<1x1x8x8x8xf32, #tpu.memory_space<vmem>>, vector<1x1x8x8x8xf32>,
    return
  }
  func.func @transform_0(%arg0: i32, %arg1: i32) -> (i32, i32, i32, i32, i32) {
    %c1_i32 = arith.constant 1 : i32
    %0 = arith.subi %arg1, %c1_i32 : i32
    %c0_i32 = arith.constant 0 : i32
    %1 = arith.maxsi %0, %c0_i32 : i32
    %c0_i32_0 = arith.constant 0 : i32
    %c0_i32_1 = arith.constant 0 : i32
    %c0_i32_2 = arith.constant 0 : i32
    %c0_i32_3 = arith.constant 0 : i32
    return %arg0, %1, %c0_i32_0, %c0_i32_1, %c0_i32_2 : i32, i32, i32, i32, i32
  }
  func.func @transform_1(%arg0: i32, %arg1: i32) -> (i32, i32, i32, i32, i32) {
    %c0_i32 = arith.constant 0 : i32
    %c0_i32_0 = arith.constant 0 : i32
    %c0_i32_1 = arith.constant 0 : i32
    %c0_i32_2 = arith.constant 0 : i32
    return %arg0, %arg1, %c0_i32, %c0_i32_0, %c0_i32_1 : i32, i32, i32, i32, i32
  }
  func.func @transform_2(%arg0: i32, %arg1: i32) -> (i32, i32, i32, i32, i32) {
    %c1_i32 = arith.constant 1 : i32
    %0 = arith.addi %arg1, %c1_i32 : i32
    %c7_i32 = arith.constant 7 : i32
    %1 = arith.minsi %0, %c7_i32 : i32
    %c0_i32 = arith.constant 0 : i32
    %c0_i32_0 = arith.constant 0 : i32
    %c0_i32_1 = arith.constant 0 : i32
    %c0_i32_2 = arith.constant 0 : i32
    return %arg0, %1, %c0_i32, %c0_i32_0, %c0_i32_1 : i32, i32, i32, i32, i32
  }
  func.func @transform_3(%arg0: i32, %arg1: i32) -> (i32, i32, i32) {
    %c0_i32 = arith.constant 0 : i32
    %c0_i32_0 = arith.constant 0 : i32
    %c0_i32_1 = arith.constant 0 : i32
    %c0_i32_2 = arith.constant 0 : i32
    return %c0_i32, %c0_i32_0, %c0_i32_1 : i32, i32, i32
  }
  func.func @transform_4(%arg0: i32, %arg1: i32) -> (i32, i32) {
    %c0_i32 = arith.constant 0 : i32
    %c0_i32_0 = arith.constant 0 : i32
    %c0_i32_1 = arith.constant 0 : i32
    return %c0_i32, %c0_i32_0 : i32, i32
  }
  func.func @transform_5(%arg0: i32, %arg1: i32) -> (i32, i32) {
    %c0_i32 = arith.constant 0 : i32
    %c0_i32_0 = arith.constant 0 : i32
    %c0_i32_1 = arith.constant 0 : i32
    return %c0_i32, %c0_i32_0 : i32, i32
  }
  func.func @transform_6(%arg0: i32, %arg1: i32) -> (i32, i32) {
    %c0_i32 = arith.constant 0 : i32
    %c0_i32_0 = arith.constant 0 : i32
    %c0_i32_1 = arith.constant 0 : i32
    return %c0_i32, %c0_i32_0 : i32, i32
  }
  func.func @transform_7(%arg0: i32, %arg1: i32) -> (i32, i32, i32, i32, i32) {
    %c0_i32 = arith.constant 0 : i32
    %c0_i32_0 = arith.constant 0 : i32
    %c0_i32_1 = arith.constant 0 : i32
    %c0_i32_2 = arith.constant 0 : i32
    return %arg0, %arg1, %c0_i32, %c0_i32_0, %c0_i32_1 : i32, i32, i32, i32, i32
  }
  func.func @transform_8(%arg0: i32, %arg1: i32) -> (i32, i32, i32, i32, i32) {
    %c0_i32 = arith.constant 0 : i32
    %c0_i32_0 = arith.constant 0 : i32
    %c0_i32_1 = arith.constant 0 : i32
    %c0_i32_2 = arith.constant 0 : i32
    return %arg0, %arg1, %c0_i32, %c0_i32_0, %c0_i32_1 : i32, i32, i32, i32, i32
  }
}

</mosaic_0001>

<llo_original>
// kernel: tpu_custom_call.1
$region0: #{tpu_custom_call.1}
  #allocation0 [shape = 'u32[]', space=smem, size = 0x4, offset = 0x4, fixed_abs, tag = 'smem constant byte address 0x4 - core index']
  #allocation1 [shape = 'u32[144,128]{1,0:T(1,128)}', space=vmem, size = 0x12000, scoped, tag = 'internal scratch']
  %s0 = inlined_call_operand.hbm [shape: f32[8,128], index: 0, kind: input, shape index: {}]
  %s1 = inlined_call_operand.hbm [shape: f32[8,128], index: 1, kind: output, shape index: {}]
  %s2 = sld [smem:[#allocation0]]
  $region18: #{tpu_custom_call.1} parent=0
    _
  %s4 = ssub.s32 1, %s2
  %s5 = scalar_select 0, %s4, %s2
  $region1: #{tpu_custom_call.1} parent=0
    #allocation2 [shape = 'u8[4096]{0}', space=vmem, size = 0x1000, scoped, tag = 'input window, operand 0, single buffered']
    #allocation3 [shape = 's32[1]{0}', space=sflag, size = 0x4, scoped, tag = 'scoped memory for tpu_custom_call.1']
    #allocation4 [shape = 's32[1]{0}', space=sflag, size = 0x4, scoped, tag = 'scoped memory for tpu_custom_call.1']
    #allocation5 [shape = 'u8[4096]{0}', space=vmem, size = 0x1000, scoped, tag = 'output window, operand 0, single buffered']
    %6 = vsyncpa [#allocation3], 0
    %7 = vsyncpa [#allocation4], 0
    // Predicated region
    $region2: #{tpu_custom_call.1} parent=1 // pred_check
      _
    $region3: #{tpu_custom_call.1} parent=1 // pred_check_branch
      %9 = sbr.rel (0) target = $region5
    $region4: #{tpu_custom_call.1} parent=1 // pred_region
      %s11 = ssub.s32 128, 128
      %12 = vsyncadd [#allocation3], %s11
      %s14 = sshll.u32 [#allocation2], 4
      %s15 = int_to_ptr.vmem [resolvable:$true] %s14
      %17 = dma.hbm_to_vmem [thread:$0]  %s0, 128, %s15, [#allocation3]
    $region5: #{tpu_custom_call.1} parent=1 // pred_fallthru
      _
    // Predicated region
    $region6: #{tpu_custom_call.1} parent=1 // pred_check
      _
    $region7: #{tpu_custom_call.1} parent=1 // pred_check_branch
      %19 = sbr.rel (0) target = $region9
    $region8: #{tpu_custom_call.1} parent=1 // pred_region
      %20 = dma.done [#allocation3], 128
    $region9: #{tpu_custom_call.1} parent=1 // pred_fallthru
      _
    %v21 = vld [vmem:[#allocation2] sm:$0xff]
    %v22 = vadd.f32 %v21, 1.0
    %23 = vst [vmem:[#allocation5] sm:$0xff] %v22
    // Predicated region
    $region10: #{tpu_custom_call.1} parent=1 // pred_check
      _
    $region11: #{tpu_custom_call.1} parent=1 // pred_check_branch
      %25 = sbr.rel (0) target = $region13
    $region12: #{tpu_custom_call.1} parent=1 // pred_region
      %s27 = ssub.s32 128, 128
      %28 = vsyncadd [#allocation4], %s27
      %s30 = sshll.u32 [#allocation5], 4
      %s31 = int_to_ptr.vmem [resolvable:$true] %s30
      %33 = dma.vmem_to_hbm [thread:$0]  %s31, 128, %s1, [#allocation4]
    $region13: #{tpu_custom_call.1} parent=1 // pred_fallthru
      _
    // Predicated region
    $region14: #{tpu_custom_call.1} parent=1 // pred_check
      _
    $region15: #{tpu_custom_call.1} parent=1 // pred_check_branch
      %35 = sbr.rel (0) target = $region17
    $region16: #{tpu_custom_call.1} parent=1 // pred_region
      %36 = dma.done [#allocation4], 128
    $region17: #{tpu_custom_call.1} parent=1 // pred_fallthru
      _
    %37 = vsyncpa [#allocation3], 1
    %38 = vsyncpa [#allocation4], 1

// kernel: spatio_temporal_res_block.3
$region0: #{spatio_temporal_res_block.3}
  #allocation0 [shape = 'u32[]', space=smem, size = 0x4, offset = 0x4, fixed_abs, tag = 'smem constant byte address 0x4 - core index']
  #allocation1 [shape = 'u32[144,128]{1,0:T(1,128)}', space=vmem, size = 0x12000, scoped, tag = 'internal scratch']
  %s0 = inlined_call_operand.vmem [shape: f32[1024,4], index: 0, kind: input, shape index: {}]
  %s1 = inlined_call_operand.vmem [shape: bf16[4,8], index: 1, kind: input, shape index: {}]
  %s2 = inlined_call_operand.vmem [shape: f32[2,8], index: 2, kind: input, shape index: {}]
  %s3 = inlined_call_operand.vmem [shape: bf16[1024,8], index: 3, kind: output, shape index: {}]
  %s4 = sld [smem:[#allocation0]]
  $region22: #{spatio_temporal_res_block.3} parent=0
    _
  %s6 = ssub.s32 1, %s4
  %s7 = scalar_select 0, %s6, %s4
  // Predicated region
  $region2: #{spatio_temporal_res_block.3} parent=0 // pred_check
    _
  $region3: #{spatio_temporal_res_block.3} parent=0 // pred_check_branch
    %9 = sbr.rel (0) target = $region5
  $region4: #{spatio_temporal_res_block.3} parent=0 // pred_region
    _
  $region5: #{spatio_temporal_res_block.3} parent=0 // pred_fallthru
    _
  // Predicated region
  $region6: #{spatio_temporal_res_block.3} parent=0 // pred_check
    _
  $region7: #{spatio_temporal_res_block.3} parent=0 // pred_check_branch
    %11 = sbr.rel (0) target = $region9
  $region8: #{spatio_temporal_res_block.3} parent=0 // pred_region
    _
  $region9: #{spatio_temporal_res_block.3} parent=0 // pred_fallthru
    _
  // Predicated region
  $region10: #{spatio_temporal_res_block.3} parent=0 // pred_check
    _
  $region11: #{spatio_temporal_res_block.3} parent=0 // pred_check_branch
    %13 = sbr.rel (0) target = $region13
  $region12: #{spatio_temporal_res_block.3} parent=0 // pred_region
    _
  $region13: #{spatio_temporal_res_block.3} parent=0 // pred_fallthru
    _
  %v15 = vld [vmem:[%s0] sm:$0xff]
  %v16 = vld [vmem:[%s0 + $0x8] sm:$0xff]
  %v17 = vld [vmem:[%s0 + $0x10] sm:$0xff]
  %v18 = vld [vmem:[%s0 + $0x18] sm:$0xff]
  %v19 = vld [vmem:[%s0 + $0x20] sm:$0xff]
  %v20 = vld [vmem:[%s0 + $0x28] sm:$0xff]
  %v21 = vld [vmem:[%s0 + $0x30] sm:$0xff]
  %v22 = vld [vmem:[%s0 + $0x38] sm:$0xff]
  %v23 = vld [vmem:[%s0 + $0x40] sm:$0xff]
  %v24 = vld [vmem:[%s0 + $0x48] sm:$0xff]
  %v25 = vld [vmem:[%s0 + $0x50] sm:$0xff]
  %v26 = vld [vmem:[%s0 + $0x58] sm:$0xff]
  %v27 = vld [vmem:[%s0 + $0x60] sm:$0xff]
  %v28 = vld [vmem:[%s0 + $0x68] sm:$0xff]
  %v29 = vld [vmem:[%s0 + $0x70] sm:$0xff]
  %v30 = vld [vmem:[%s0 + $0x78] sm:$0xff]
  %v31 = vld [vmem:[%s0 + $0x80] sm:$0xff]
  %v32 = vld [vmem:[%s0 + $0x88] sm:$0xff]
  %v33 = vld [vmem:[%s0 + $0x90] sm:$0xff]
  %v34 = vld [vmem:[%s0 + $0x98] sm:$0xff]
  %v35 = vld [vmem:[%s0 + $0xa0] sm:$0xff]
  %v36 = vld [vmem:[%s0 + $0xa8] sm:$0xff]
  %v37 = vld [vmem:[%s0 + $0xb0] sm:$0xff]
  %v38 = vld [vmem:[%s0 + $0xb8] sm:$0xff]
  %v39 = vld [vmem:[%s0 + $0xc0] sm:$0xff]
  %v40 = vld [vmem:[%s0 + $0xc8] sm:$0xff]
  %v41 = vld [vmem:[%s0 + $0xd0] sm:$0xff]
  %v42 = vld [vmem:[%s0 + $0xd8] sm:$0xff]
  %v43 = vld [vmem:[%s0 + $0xe0] sm:$0xff]
  %v44 = vld [vmem:[%s0 + $0xe8] sm:$0xff]
  %v45 = vld [vmem:[%s0 + $0xf0] sm:$0xff]
  %v46 = vld [vmem:[%s0 + $0xf8] sm:$0xff]
  %v47 = vld [vmem:[%s0 + $0x100] sm:$0xff]
  %v48 = vld [vmem:[%s0 + $0x108] sm:$0xff]
  %v49 = vld [vmem:[%s0 + $0x110] sm:$0xff]
  %v50 = vld [vmem:[%s0 + $0x118] sm:$0xff]
  %v51 = vld [vmem:[%s0 + $0x120] sm:$0xff]
  %v52 = vld [vmem:[%s0 + $0x128] sm:$0xff]
  %v53 = vld [vmem:[%s0 + $0x130] sm:$0xff]
  %v54 = vld [vmem:[%s0 + $0x138] sm:$0xff]
  %v55 = vld [vmem:[%s0 + $0x140] sm:$0xff]
  %v56 = vld [vmem:[%s0 + $0x148] sm:$0xff]
  %v57 = vld [vmem:[%s0 + $0x150] sm:$0xff]
  %v58 = vld [vmem:[%s0 + $0x158] sm:$0xff]
  %v59 = vld [vmem:[%s0 + $0x160] sm:$0xff]
  %v60 = vld [vmem:[%s0 + $0x168] sm:$0xff]
  %v61 = vld [vmem:[%s0 + $0x170] sm:$0xff]
  %v62 = vld [vmem:[%s0 + $0x178] sm:$0xff]
  %v63 = vld [vmem:[%s0 + $0x180] sm:$0xff]
  %v64 = vld [vmem:[%s0 + $0x188] sm:$0xff]
  %v65 = vld [vmem:[%s0 + $0x190] sm:$0xff]
  %v66 = vld [vmem:[%s0 + $0x198] sm:$0xff]
  %v67 = vld [vmem:[%s0 + $0x1a0] sm:$0xff]
  %v68 = vld [vmem:[%s0 + $0x1a8] sm:$0xff]
  %v69 = vld [vmem:[%s0 + $0x1b0] sm:$0xff]
  %v70 = vld [vmem:[%s0 + $0x1b8] sm:$0xff]
  %v71 = vld [vmem:[%s0 + $0x1c0] sm:$0xff]
  %v72 = vld [vmem:[%s0 + $0x1c8] sm:$0xff]
  %v73 = vld [vmem:[%s0 + $0x1d0] sm:$0xff]
  %v74 = vld [vmem:[%s0 + $0x1d8] sm:$0xff]
  %v75 = vld [vmem:[%s0 + $0x1e0] sm:$0xff]
  %v76 = vld [vmem:[%s0 + $0x1e8] sm:$0xff]
  %v77 = vld [vmem:[%s0 + $0x1f0] sm:$0xff]
  %v78 = vld [vmem:[%s0 + $0x1f8] sm:$0xff]
  %v79 = vld [vmem:[%s0 + $0x200] sm:$0xff]
  %v80 = vld [vmem:[%s0 + $0x208] sm:$0xff]
  %v81 = vld [vmem:[%s0 + $0x210] sm:$0xff]
  %v82 = vld [vmem:[%s0 + $0x218] sm:$0xff]
  %v83 = vld [vmem:[%s0 + $0x220] sm:$0xff]
  %v84 = vld [vmem:[%s0 + $0x228] sm:$0xff]
  %v85 = vld [vmem:[%s0 + $0x230] sm:$0xff]
  %v86 = vld [vmem:[%s0 + $0x238] sm:$0xff]
  %v87 = vld [vmem:[%s0 + $0x240] sm:$0xff]
  %v88 = vld [vmem:[%s0 + $0x248] sm:$0xff]
  %v89 = vld [vmem:[%s0 + $0x250] sm:$0xff]
  %v90 = vld [vmem:[%s0 + $0x258] sm:$0xff]
  %v91 = vld [vmem:[%s0 + $0x260] sm:$0xff]
  %v92 = vld [vmem:[%s0 + $0x268] sm:$0xff]
  %v93 = vld [vmem:[%s0 + $0x270] sm:$0xff]
  %v94 = vld [vmem:[%s0 + $0x278] sm:$0xff]
  %v95 = vld [vmem:[%s0 + $0x280] sm:$0xff]
  %v96 = vld [vmem:[%s0 + $0x288] sm:$0xff]
  %v97 = vld [vmem:[%s0 + $0x290] sm:$0xff]
  %v98 = vld [vmem:[%s0 + $0x298] sm:$0xff]
  %v99 = vld [vmem:[%s0 + $0x2a0] sm:$0xff]
  %v100 = vld [vmem:[%s0 + $0x2a8] sm:$0xff]
  %v101 = vld [vmem:[%s0 + $0x2b0] sm:$0xff]
  %v102 = vld [vmem:[%s0 + $0x2b8] sm:$0xff]
  %v103 = vld [vmem:[%s0 + $0x2c0] sm:$0xff]
  %v104 = vld [vmem:[%s0 + $0x2c8] sm:$0xff]
  %v105 = vld [vmem:[%s0 + $0x2d0] sm:$0xff]
  %v106 = vld [vmem:[%s0 + $0x2d8] sm:$0xff]
  %v107 = vld [vmem:[%s0 + $0x2e0] sm:$0xff]
  %v108 = vld [vmem:[%s0 + $0x2e8] sm:$0xff]
  %v109 = vld [vmem:[%s0 + $0x2f0] sm:$0xff]
  %v110 = vld [vmem:[%s0 + $0x2f8] sm:$0xff]
  %v111 = vld [vmem:[%s0 + $0x300] sm:$0xff]
  %v112 = vld [vmem:[%s0 + $0x308] sm:$0xff]
  %v113 = vld [vmem:[%s0 + $0x310] sm:$0xff]
  %v114 = vld [vmem:[%s0 + $0x318] sm:$0xff]
  %v115 = vld [vmem:[%s0 + $0x320] sm:$0xff]
  %v116 = vld [vmem:[%s0 + $0x328] sm:$0xff]
  %v117 = vld [vmem:[%s0 + $0x330] sm:$0xff]
  %v118 = vld [vmem:[%s0 + $0x338] sm:$0xff]
  %v119 = vld [vmem:[%s0 + $0x340] sm:$0xff]
  %v120 = vld [vmem:[%s0 + $0x348] sm:$0xff]
  %v121 = vld [vmem:[%s0 + $0x350] sm:$0xff]
  %v122 = vld [vmem:[%s0 + $0x358] sm:$0xff]
  %v123 = vld [vmem:[%s0 + $0x360] sm:$0xff]
  %v124 = vld [vmem:[%s0 + $0x368] sm:$0xff]
  %v125 = vld [vmem:[%s0 + $0x370] sm:$0xff]
  %v126 = vld [vmem:[%s0 + $0x378] sm:$0xff]
  %v127 = vld [vmem:[%s0 + $0x380] sm:$0xff]
  %v128 = vld [vmem:[%s0 + $0x388] sm:$0xff]
  %v129 = vld [vmem:[%s0 + $0x390] sm:$0xff]
  %v130 = vld [vmem:[%s0 + $0x398] sm:$0xff]
  %v131 = vld [vmem:[%s0 + $0x3a0] sm:$0xff]
  %v132 = vld [vmem:[%s0 + $0x3a8] sm:$0xff]
  %v133 = vld [vmem:[%s0 + $0x3b0] sm:$0xff]
  %v134 = vld [vmem:[%s0 + $0x3b8] sm:$0xff]
  %v135 = vld [vmem:[%s0 + $0x3c0] sm:$0xff]
  %v136 = vld [vmem:[%s0 + $0x3c8] sm:$0xff]
  %v137 = vld [vmem:[%s0 + $0x3d0] sm:$0xff]
  %v138 = vld [vmem:[%s0 + $0x3d8] sm:$0xff]
  %v139 = vld [vmem:[%s0 + $0x3e0] sm:$0xff]
  %v140 = vld [vmem:[%s0 + $0x3e8] sm:$0xff]
  %v141 = vld [vmem:[%s0 + $0x3f0] sm:$0xff]
  %v142 = vld [vmem:[%s0 + $0x3f8] sm:$0xff]
  %v143 = vpack.c.bf16 %v16, %v15
  %v144 = vpack.c.bf16 %v18, %v17
  %v145 = vpack.c.bf16 %v20, %v19
  %v146 = vpack.c.bf16 %v22, %v21
  %v147 = vpack.c.bf16 %v24, %v23
  %v148 = vpack.c.bf16 %v26, %v25
  %v149 = vpack.c.bf16 %v28, %v27
  %v150 = vpack.c.bf16 %v30, %v29
  %v151 = vpack.c.bf16 %v32, %v31
  %v152 = vpack.c.bf16 %v34, %v33
  %v153 = vpack.c.bf16 %v36, %v35
  %v154 = vpack.c.bf16 %v38, %v37
  %v155 = vpack.c.bf16 %v40, %v39
  %v156 = vpack.c.bf16 %v42, %v41
  %v157 = vpack.c.bf16 %v44, %v43
  %v158 = vpack.c.bf16 %v46, %v45
  %v159 = vpack.c.bf16 %v48, %v47
  %v160 = vpack.c.bf16 %v50, %v49
  %v161 = vpack.c.bf16 %v52, %v51
  %v162 = vpack.c.bf16 %v54, %v53
  %v163 = vpack.c.bf16 %v56, %v55
  %v164 = vpack.c.bf16 %v58, %v57
  %v165 = vpack.c.bf16 %v60, %v59
  %v166 = vpack.c.bf16 %v62, %v61
  %v167 = vpack.c.bf16 %v64, %v63
  %v168 = vpack.c.bf16 %v66, %v65
  %v169 = vpack.c.bf16 %v68, %v67
  %v170 = vpack.c.bf16 %v70, %v69
  %v171 = vpack.c.bf16 %v72, %v71
  %v172 = vpack.c.bf16 %v74, %v73
  %v173 = vpack.c.bf16 %v76, %v75
  %v174 = vpack.c.bf16 %v78, %v77
  %v175 = vpack.c.bf16 %v80, %v79
  %v176 = vpack.c.bf16 %v82, %v81
  %v177 = vpack.c.bf16 %v84, %v83
  %v178 = vpack.c.bf16 %v86, %v85
  %v179 = vpack.c.bf16 %v88, %v87
  %v180 = vpack.c.bf16 %v90, %v89
  %v181 = vpack.c.bf16 %v92, %v91
  %v182 = vpack.c.bf16 %v94, %v93
  %v183 = vpack.c.bf16 %v96, %v95
  %v184 = vpack.c.bf16 %v98, %v97
  %v185 = vpack.c.bf16 %v100, %v99
  %v186 = vpack.c.bf16 %v102, %v101
  %v187 = vpack.c.bf16 %v104, %v103
  %v188 = vpack.c.bf16 %v106, %v105
  %v189 = vpack.c.bf16 %v108, %v107
  %v190 = vpack.c.bf16 %v110, %v109
  %v191 = vpack.c.bf16 %v112, %v111
  %v192 = vpack.c.bf16 %v114, %v113
  %v193 = vpack.c.bf16 %v116, %v115
  %v194 = vpack.c.bf16 %v118, %v117
  %v195 = vpack.c.bf16 %v120, %v119
  %v196 = vpack.c.bf16 %v122, %v121
  %v197 = vpack.c.bf16 %v124, %v123
  %v198 = vpack.c.bf16 %v126, %v125
  %v199 = vpack.c.bf16 %v128, %v127
  %v200 = vpack.c.bf16 %v130, %v129
  %v201 = vpack.c.bf16 %v132, %v131
  %v202 = vpack.c.bf16 %v134, %v133
  %v203 = vpack.c.bf16 %v136, %v135
  %v204 = vpack.c.bf16 %v138, %v137
  %v205 = vpack.c.bf16 %v140, %v139
  %v206 = vpack.c.bf16 %v142, %v141
  %v207 = vld [vmem:[%s1] sm:$0x3]
  %vm208 = vcmask 31744
  %v210 = vsel %vm208, %v143, 0
  %v213 = vsel %vm208, %v144, 0
  %v216 = vsel %vm208, %v145, 0
  %v219 = vsel %vm208, %v146, 0
  %v222 = vsel %vm208, %v147, 0
  %v225 = vsel %vm208, %v148, 0
  %v228 = vsel %vm208, %v149, 0
  %v231 = vsel %vm208, %v150, 0
  %v234 = vsel %vm208, %v151, 0
  %v237 = vsel %vm208, %v152, 0
  %v240 = vsel %vm208, %v153, 0
  %v243 = vsel %vm208, %v154, 0
  %v246 = vsel %vm208, %v155, 0
  %v249 = vsel %vm208, %v156, 0
  %v252 = vsel %vm208, %v157, 0
  %v255 = vsel %vm208, %v158, 0
  %v258 = vsel %vm208, %v159, 0
  %v261 = vsel %vm208, %v160, 0
  %v264 = vsel %vm208, %v161, 0
  %v267 = vsel %vm208, %v162, 0
  %v270 = vsel %vm208, %v163, 0
  %v273 = vsel %vm208, %v164, 0
  %v276 = vsel %vm208, %v165, 0
  %v279 = vsel %vm208, %v166, 0
  %v282 = vsel %vm208, %v167, 0
  %v285 = vsel %vm208, %v168, 0
  %v288 = vsel %vm208, %v169, 0
  %v291 = vsel %vm208, %v170, 0
  %v294 = vsel %vm208, %v171, 0
  %v297 = vsel %vm208, %v172, 0
  %v300 = vsel %vm208, %v173, 0
  %v303 = vsel %vm208, %v174, 0
  %v306 = vsel %vm208, %v175, 0
  %v309 = vsel %vm208, %v176, 0
  %v312 = vsel %vm208, %v177, 0
  %v315 = vsel %vm208, %v178, 0
  %v318 = vsel %vm208, %v179, 0
  %v321 = vsel %vm208, %v180, 0
  %v324 = vsel %vm208, %v181, 0
  %v327 = vsel %vm208, %v182, 0
  %v330 = vsel %vm208, %v183, 0
  %v333 = vsel %vm208, %v184, 0
  %v336 = vsel %vm208, %v185, 0
  %v339 = vsel %vm208, %v186, 0
  %v342 = vsel %vm208, %v187, 0
  %v345 = vsel %vm208, %v188, 0
  %v348 = vsel %vm208, %v189, 0
  %v351 = vsel %vm208, %v190, 0
  %v354 = vsel %vm208, %v191, 0
  %v357 = vsel %vm208, %v192, 0
  %v360 = vsel %vm208, %v193, 0
  %v363 = vsel %vm208, %v194, 0
  %v366 = vsel %vm208, %v195, 0
  %v369 = vsel %vm208, %v196, 0
  %v372 = vsel %vm208, %v197, 0
  %v375 = vsel %vm208, %v198, 0
  %v378 = vsel %vm208, %v199, 0
  %v381 = vsel %vm208, %v200, 0
  %v384 = vsel %vm208, %v201, 0
  %v387 = vsel %vm208, %v202, 0
  %v390 = vsel %vm208, %v203, 0
  %v393 = vsel %vm208, %v204, 0
  %v396 = vsel %vm208, %v205, 0
  %v399 = vsel %vm208, %v206, 0
  %vm401 = vcmask 1041408
  %v403 = vsel %vm401, %v207, 0
  %405 = vmatprep.subr.bf16.mxu0 0
  %406 = vmatpush1.bf16.msra.mxu0 0
  %407 = vmatprep.subr.bf16.mxu0 0
  %408 = vmatpush1.bf16.msra.mxu0 0
  %409 = vmatprep.subr.bf16.mxu0 0
  %410 = vmatpush1.bf16.msra.mxu0 0
  %411 = vmatprep.subr.bf16.mxu0 0
  %412 = vmatpush1.bf16.msra.mxu0 0
  %413 = vmatprep.subr.bf16.mxu0 0
  %414 = vmatpush1.bf16.msra.mxu0 0
  %415 = vmatprep.subr.bf16.mxu0 0
  %416 = vmatpush1.bf16.msra.mxu0 0
  %417 = vmatprep.subr.bf16.mxu0 0
  %418 = vmatpush1.bf16.msra.mxu0 0
  %419 = vmatprep.subr.bf16.mxu0 0
  %420 = vmatpush1.bf16.msra.mxu0 %v403
  %421 = vmatprep.subr.bf16.mxu0 0
  %422 = vmatpush2.bf16.msra.mxu0 0
  %423 = vmatprep.subr.bf16.mxu0 0
  %424 = vmatpush2.bf16.msra.mxu0 0
  %425 = vmatprep.subr.bf16.mxu0 0
  %426 = vmatpush2.bf16.msra.mxu0 0
  %427 = vmatprep.subr.bf16.mxu0 0
  %428 = vmatpush2.bf16.msra.mxu0 0
  %429 = vmatprep.subr.bf16.mxu0 0
  %430 = vmatpush2.bf16.msra.mxu0 0
  %431 = vmatprep.subr.bf16.mxu0 0
  %432 = vmatpush2.bf16.msra.mxu0 0
  %433 = vmatprep.subr.bf16.mxu0 0
  %434 = vmatpush2.bf16.msra.mxu0 0
  %435 = vmatprep.subr.bf16.mxu0 0
  %436 = vmatpush2.bf16.msra.mxu0 0
  %437 = vmatprep.mubr.bf16.mxu0 0
  %438 = vmatmul.mubr.bf16.gmra.mxu0 %v210
  %v439 = vpop.f32.mrf.mxu0
  %v440 = vadd.f32 0.0, %v439
  %v441 = vpop.f32.mrf.mxu0
  %v442 = vpop.f32.mrf.mxu0
  %v443 = vadd.f32 0.0, %v442
  %v444 = vpop.f32.mrf.mxu0
  %445 = vmatprep.mubr.bf16.mxu0 0
  %446 = vmatmul.mubr.bf16.gmra.mxu0 %v213
  %v447 = vpop.f32.mrf.mxu0
  %v448 = vadd.f32 0.0, %v447
  %v449 = vpop.f32.mrf.mxu0
  %v450 = vpop.f32.mrf.mxu0
  %v451 = vadd.f32 0.0, %v450
  %v452 = vpop.f32.mrf.mxu0
  %453 = vmatprep.mubr.bf16.mxu0 0
  %454 = vmatmul.mubr.bf16.gmra.mxu0 %v216
  %v455 = vpop.f32.mrf.mxu0
  %v456 = vadd.f32 0.0, %v455
  %v457 = vpop.f32.mrf.mxu0
  %v458 = vpop.f32.mrf.mxu0
  %v459 = vadd.f32 0.0, %v458
  %v460 = vpop.f32.mrf.mxu0
  %461 = vmatprep.mubr.bf16.mxu0 0
  %462 = vmatmul.mubr.bf16.gmra.mxu0 %v219
  %v463 = vpop.f32.mrf.mxu0
  %v464 = vadd.f32 0.0, %v463
  %v465 = vpop.f32.mrf.mxu0
  %v466 = vpop.f32.mrf.mxu0
  %v467 = vadd.f32 0.0, %v466
  %v468 = vpop.f32.mrf.mxu0
  %469 = vmatprep.mubr.bf16.mxu0 0
  %470 = vmatmul.mubr.bf16.gmra.mxu0 %v222
  %v471 = vpop.f32.mrf.mxu0
  %v472 = vadd.f32 0.0, %v471
  %v473 = vpop.f32.mrf.mxu0
  %v474 = vpop.f32.mrf.mxu0
  %v475 = vadd.f32 0.0, %v474
  %v476 = vpop.f32.mrf.mxu0
  %477 = vmatprep.mubr.bf16.mxu0 0
  %478 = vmatmul.mubr.bf16.gmra.mxu0 %v225
  %v479 = vpop.f32.mrf.mxu0
  %v480 = vadd.f32 0.0, %v479
  %v481 = vpop.f32.mrf.mxu0
  %v482 = vpop.f32.mrf.mxu0
  %v483 = vadd.f32 0.0, %v482
  %v484 = vpop.f32.mrf.mxu0
  %485 = vmatprep.mubr.bf16.mxu0 0
  %486 = vmatmul.mubr.bf16.gmra.mxu0 %v228
  %v487 = vpop.f32.mrf.mxu0
  %v488 = vadd.f32 0.0, %v487
  %v489 = vpop.f32.mrf.mxu0
  %v490 = vpop.f32.mrf.mxu0
  %v491 = vadd.f32 0.0, %v490
  %v492 = vpop.f32.mrf.mxu0
  %493 = vmatprep.mubr.bf16.mxu0 0
  %494 = vmatmul.mubr.bf16.gmra.mxu0 %v231
  %v495 = vpop.f32.mrf.mxu0
  %v496 = vadd.f32 0.0, %v495
  %v497 = vpop.f32.mrf.mxu0
  %v498 = vpop.f32.mrf.mxu0
  %v499 = vadd.f32 0.0, %v498
  %v500 = vpop.f32.mrf.mxu0
  %501 = vmatprep.mubr.bf16.mxu0 0
  %502 = vmatmul.mubr.bf16.gmra.mxu0 %v234
  %v503 = vpop.f32.mrf.mxu0
  %v504 = vadd.f32 0.0, %v503
  %v505 = vpop.f32.mrf.mxu0
  %v506 = vpop.f32.mrf.mxu0
  %v507 = vadd.f32 0.0, %v506
  %v508 = vpop.f32.mrf.mxu0
  %509 = vmatprep.mubr.bf16.mxu0 0
  %510 = vmatmul.mubr.bf16.gmra.mxu0 %v237
  %v511 = vpop.f32.mrf.mxu0
  %v512 = vadd.f32 0.0, %v511
  %v513 = vpop.f32.mrf.mxu0
  %v514 = vpop.f32.mrf.mxu0
  %v515 = vadd.f32 0.0, %v514
  %v516 = vpop.f32.mrf.mxu0
  %517 = vmatprep.mubr.bf16.mxu0 0
  %518 = vmatmul.mubr.bf16.gmra.mxu0 %v240
  %v519 = vpop.f32.mrf.mxu0
  %v520 = vadd.f32 0.0, %v519
  %v521 = vpop.f32.mrf.mxu0
  %v522 = vpop.f32.mrf.mxu0
  %v523 = vadd.f32 0.0, %v522
  %v524 = vpop.f32.mrf.mxu0
  %525 = vmatprep.mubr.bf16.mxu0 0
  %526 = vmatmul.mubr.bf16.gmra.mxu0 %v243
  %v527 = vpop.f32.mrf.mxu0
  %v528 = vadd.f32 0.0, %v527
  %v529 = vpop.f32.mrf.mxu0
  %v530 = vpop.f32.mrf.mxu0
  %v531 = vadd.f32 0.0, %v530
  %v532 = vpop.f32.mrf.mxu0
  %533 = vmatprep.mubr.bf16.mxu0 0
  %534 = vmatmul.mubr.bf16.gmra.mxu0 %v246
  %v535 = vpop.f32.mrf.mxu0
  %v536 = vadd.f32 0.0, %v535
  %v537 = vpop.f32.mrf.mxu0
  %v538 = vpop.f32.mrf.mxu0
  %v539 = vadd.f32 0.0, %v538
  %v540 = vpop.f32.mrf.mxu0
  %541 = vmatprep.mubr.bf16.mxu0 0
  %542 = vmatmul.mubr.bf16.gmra.mxu0 %v249
  %v543 = vpop.f32.mrf.mxu0
  %v544 = vadd.f32 0.0, %v543
  %v545 = vpop.f32.mrf.mxu0
  %v546 = vpop.f32.mrf.mxu0
  %v547 = vadd.f32 0.0, %v546
  %v548 = vpop.f32.mrf.mxu0
  %549 = vmatprep.mubr.bf16.mxu0 0
  %550 = vmatmul.mubr.bf16.gmra.mxu0 %v252
  %v551 = vpop.f32.mrf.mxu0
  %v552 = vadd.f32 0.0, %v551
  %v553 = vpop.f32.mrf.mxu0
  %v554 = vpop.f32.mrf.mxu0
  %v555 = vadd.f32 0.0, %v554
  %v556 = vpop.f32.mrf.mxu0
  %557 = vmatprep.mubr.bf16.mxu0 0
  %558 = vmatmul.mubr.bf16.gmra.mxu0 %v255
  %v559 = vpop.f32.mrf.mxu0
  %v560 = vadd.f32 0.0, %v559
  %v561 = vpop.f32.mrf.mxu0
  %v562 = vpop.f32.mrf.mxu0
  %v563 = vadd.f32 0.0, %v562
  %v564 = vpop.f32.mrf.mxu0
  %565 = vmatprep.mubr.bf16.mxu0 0
  %566 = vmatmul.mubr.bf16.gmra.mxu0 %v258
  %v567 = vpop.f32.mrf.mxu0
  %v568 = vadd.f32 0.0, %v567
  %v569 = vpop.f32.mrf.mxu0
  %v570 = vpop.f32.mrf.mxu0
  %v571 = vadd.f32 0.0, %v570
  %v572 = vpop.f32.mrf.mxu0
  %573 = vmatprep.mubr.bf16.mxu0 0
  %574 = vmatmul.mubr.bf16.gmra.mxu0 %v261
  %v575 = vpop.f32.mrf.mxu0
  %v576 = vadd.f32 0.0, %v575
  %v577 = vpop.f32.mrf.mxu0
  %v578 = vpop.f32.mrf.mxu0
  %v579 = vadd.f32 0.0, %v578
  %v580 = vpop.f32.mrf.mxu0
  %581 = vmatprep.mubr.bf16.mxu0 0
  %582 = vmatmul.mubr.bf16.gmra.mxu0 %v264
  %v583 = vpop.f32.mrf.mxu0
  %v584 = vadd.f32 0.0, %v583
  %v585 = vpop.f32.mrf.mxu0
  %v586 = vpop.f32.mrf.mxu0
  %v587 = vadd.f32 0.0, %v586
  %v588 = vpop.f32.mrf.mxu0
  %589 = vmatprep.mubr.bf16.mxu0 0
  %590 = vmatmul.mubr.bf16.gmra.mxu0 %v267
  %v591 = vpop.f32.mrf.mxu0
  %v592 = vadd.f32 0.0, %v591
  %v593 = vpop.f32.mrf.mxu0
  %v594 = vpop.f32.mrf.mxu0
  %v595 = vadd.f32 0.0, %v594
  %v596 = vpop.f32.mrf.mxu0
  %597 = vmatprep.mubr.bf16.mxu0 0
  %598 = vmatmul.mubr.bf16.gmra.mxu0 %v270
  %v599 = vpop.f32.mrf.mxu0
  %v600 = vadd.f32 0.0, %v599
  %v601 = vpop.f32.mrf.mxu0
  %v602 = vpop.f32.mrf.mxu0
  %v603 = vadd.f32 0.0, %v602
  %v604 = vpop.f32.mrf.mxu0
  %605 = vmatprep.mubr.bf16.mxu0 0
  %606 = vmatmul.mubr.bf16.gmra.mxu0 %v273
  %v607 = vpop.f32.mrf.mxu0
  %v608 = vadd.f32 0.0, %v607
  %v609 = vpop.f32.mrf.mxu0
  %v610 = vpop.f32.mrf.mxu0
  %v611 = vadd.f32 0.0, %v610
  %v612 = vpop.f32.mrf.mxu0
  %613 = vmatprep.mubr.bf16.mxu0 0
  %614 = vmatmul.mubr.bf16.gmra.mxu0 %v276
  %v615 = vpop.f32.mrf.mxu0
  %v616 = vadd.f32 0.0, %v615
  %v617 = vpop.f32.mrf.mxu0
  %v618 = vpop.f32.mrf.mxu0
  %v619 = vadd.f32 0.0, %v618
  %v620 = vpop.f32.mrf.mxu0
  %621 = vmatprep.mubr.bf16.mxu0 0
  %622 = vmatmul.mubr.bf16.gmra.mxu0 %v279
  %v623 = vpop.f32.mrf.mxu0
  %v624 = vadd.f32 0.0, %v623
  %v625 = vpop.f32.mrf.mxu0
  %v626 = vpop.f32.mrf.mxu0
  %v627 = vadd.f32 0.0, %v626
  %v628 = vpop.f32.mrf.mxu0
  %629 = vmatprep.mubr.bf16.mxu0 0
  %630 = vmatmul.mubr.bf16.gmra.mxu0 %v282
  %v631 = vpop.f32.mrf.mxu0
  %v632 = vadd.f32 0.0, %v631
  %v633 = vpop.f32.mrf.mxu0
  %v634 = vpop.f32.mrf.mxu0
  %v635 = vadd.f32 0.0, %v634
  %v636 = vpop.f32.mrf.mxu0
  %637 = vmatprep.mubr.bf16.mxu0 0
  %638 = vmatmul.mubr.bf16.gmra.mxu0 %v285
  %v639 = vpop.f32.mrf.mxu0
  %v640 = vadd.f32 0.0, %v639
  %v641 = vpop.f32.mrf.mxu0
  %v642 = vpop.f32.mrf.mxu0
  %v643 = vadd.f32 0.0, %v642
  %v644 = vpop.f32.mrf.mxu0
  %645 = vmatprep.mubr.bf16.mxu0 0
  %646 = vmatmul.mubr.bf16.gmra.mxu0 %v288
  %v647 = vpop.f32.mrf.mxu0
  %v648 = vadd.f32 0.0, %v647
  %v649 = vpop.f32.mrf.mxu0
  %v650 = vpop.f32.mrf.mxu0
  %v651 = vadd.f32 0.0, %v650
  %v652 = vpop.f32.mrf.mxu0
  %653 = vmatprep.mubr.bf16.mxu0 0
  %654 = vmatmul.mubr.bf16.gmra.mxu0 %v291
  %v655 = vpop.f32.mrf.mxu0
  %v656 = vadd.f32 0.0, %v655
  %v657 = vpop.f32.mrf.mxu0
  %v658 = vpop.f32.mrf.mxu0
  %v659 = vadd.f32 0.0, %v658
  %v660 = vpop.f32.mrf.mxu0
  %661 = vmatprep.mubr.bf16.mxu0 0
  %662 = vmatmul.mubr.bf16.gmra.mxu0 %v294
  %v663 = vpop.f32.mrf.mxu0
  %v664 = vadd.f32 0.0, %v663
  %v665 = vpop.f32.mrf.mxu0
  %v666 = vpop.f32.mrf.mxu0
  %v667 = vadd.f32 0.0, %v666
  %v668 = vpop.f32.mrf.mxu0
  %669 = vmatprep.mubr.bf16.mxu0 0
  %670 = vmatmul.mubr.bf16.gmra.mxu0 %v297
  %v671 = vpop.f32.mrf.mxu0
  %v672 = vadd.f32 0.0, %v671
  %v673 = vpop.f32.mrf.mxu0
  %v674 = vpop.f32.mrf.mxu0
  %v675 = vadd.f32 0.0, %v674
  %v676 = vpop.f32.mrf.mxu0
  %677 = vmatprep.mubr.bf16.mxu0 0
  %678 = vmatmul.mubr.bf16.gmra.mxu0 %v300
  %v679 = vpop.f32.mrf.mxu0
  %v680 = vadd.f32 0.0, %v679
  %v681 = vpop.f32.mrf.mxu0
  %v682 = vpop.f32.mrf.mxu0
  %v683 = vadd.f32 0.0, %v682
  %v684 = vpop.f32.mrf.mxu0
  %685 = vmatprep.mubr.bf16.mxu0 0
  %686 = vmatmul.mubr.bf16.gmra.mxu0 %v303
  %v687 = vpop.f32.mrf.mxu0
  %v688 = vadd.f32 0.0, %v687
  %v689 = vpop.f32.mrf.mxu0
  %v690 = vpop.f32.mrf.mxu0
  %v691 = vadd.f32 0.0, %v690
  %v692 = vpop.f32.mrf.mxu0
  %693 = vmatprep.mubr.bf16.mxu0 0
  %694 = vmatmul.mubr.bf16.gmra.mxu0 %v306
  %v695 = vpop.f32.mrf.mxu0
  %v696 = vadd.f32 0.0, %v695
  %v697 = vpop.f32.mrf.mxu0
  %v698 = vpop.f32.mrf.mxu0
  %v699 = vadd.f32 0.0, %v698
  %v700 = vpop.f32.mrf.mxu0
  %701 = vmatprep.mubr.bf16.mxu0 0
  %702 = vmatmul.mubr.bf16.gmra.mxu0 %v309
  %v703 = vpop.f32.mrf.mxu0
  %v704 = vadd.f32 0.0, %v703
  %v705 = vpop.f32.mrf.mxu0
  %v706 = vpop.f32.mrf.mxu0
  %v707 = vadd.f32 0.0, %v706
  %v708 = vpop.f32.mrf.mxu0
  %709 = vmatprep.mubr.bf16.mxu0 0
  %710 = vmatmul.mubr.bf16.gmra.mxu0 %v312
  %v711 = vpop.f32.mrf.mxu0
  %v712 = vadd.f32 0.0, %v711
  %v713 = vpop.f32.mrf.mxu0
  %v714 = vpop.f32.mrf.mxu0
  %v715 = vadd.f32 0.0, %v714
  %v716 = vpop.f32.mrf.mxu0
  %717 = vmatprep.mubr.bf16.mxu0 0
  %718 = vmatmul.mubr.bf16.gmra.mxu0 %v315
  %v719 = vpop.f32.mrf.mxu0
  %v720 = vadd.f32 0.0, %v719
  %v721 = vpop.f32.mrf.mxu0
  %v722 = vpop.f32.mrf.mxu0
  %v723 = vadd.f32 0.0, %v722
  %v724 = vpop.f32.mrf.mxu0
  %725 = vmatprep.mubr.bf16.mxu0 0
  %726 = vmatmul.mubr.bf16.gmra.mxu0 %v318
  %v727 = vpop.f32.mrf.mxu0
  %v728 = vadd.f32 0.0, %v727
  %v729 = vpop.f32.mrf.mxu0
  %v730 = vpop.f32.mrf.mxu0
  %v731 = vadd.f32 0.0, %v730
  %v732 = vpop.f32.mrf.mxu0
  %733 = vmatprep.mubr.bf16.mxu0 0
  %734 = vmatmul.mubr.bf16.gmra.mxu0 %v321
  %v735 = vpop.f32.mrf.mxu0
  %v736 = vadd.f32 0.0, %v735
  %v737 = vpop.f32.mrf.mxu0
  %v738 = vpop.f32.mrf.mxu0
  %v739 = vadd.f32 0.0, %v738
  %v740 = vpop.f32.mrf.mxu0
  %741 = vmatprep.mubr.bf16.mxu0 0
  %742 = vmatmul.mubr.bf16.gmra.mxu0 %v324
  %v743 = vpop.f32.mrf.mxu0
  %v744 = vadd.f32 0.0, %v743
  %v745 = vpop.f32.mrf.mxu0
  %v746 = vpop.f32.mrf.mxu0
  %v747 = vadd.f32 0.0, %v746
  %v748 = vpop.f32.mrf.mxu0
  %749 = vmatprep.mubr.bf16.mxu0 0
  %750 = vmatmul.mubr.bf16.gmra.mxu0 %v327
  %v751 = vpop.f32.mrf.mxu0
  %v752 = vadd.f32 0.0, %v751
  %v753 = vpop.f32.mrf.mxu0
  %v754 = vpop.f32.mrf.mxu0
  %v755 = vadd.f32 0.0, %v754
  %v756 = vpop.f32.mrf.mxu0
  %757 = vmatprep.mubr.bf16.mxu0 0
  %758 = vmatmul.mubr.bf16.gmra.mxu0 %v330
  %v759 = vpop.f32.mrf.mxu0
  %v760 = vadd.f32 0.0, %v759
  %v761 = vpop.f32.mrf.mxu0
  %v762 = vpop.f32.mrf.mxu0
  %v763 = vadd.f32 0.0, %v762
  %v764 = vpop.f32.mrf.mxu0
  %765 = vmatprep.mubr.bf16.mxu0 0
  %766 = vmatmul.mubr.bf16.gmra.mxu0 %v333
  %v767 = vpop.f32.mrf.mxu0
  %v768 = vadd.f32 0.0, %v767
  %v769 = vpop.f32.mrf.mxu0
  %v770 = vpop.f32.mrf.mxu0
  %v771 = vadd.f32 0.0, %v770
  %v772 = vpop.f32.mrf.mxu0
  %773 = vmatprep.mubr.bf16.mxu0 0
  %774 = vmatmul.mubr.bf16.gmra.mxu0 %v336
  %v775 = vpop.f32.mrf.mxu0
  %v776 = vadd.f32 0.0, %v775
  %v777 = vpop.f32.mrf.mxu0
  %v778 = vpop.f32.mrf.mxu0
  %v779 = vadd.f32 0.0, %v778
  %v780 = vpop.f32.mrf.mxu0
  %781 = vmatprep.mubr.bf16.mxu0 0
  %782 = vmatmul.mubr.bf16.gmra.mxu0 %v339
  %v783 = vpop.f32.mrf.mxu0
  %v784 = vadd.f32 0.0, %v783
  %v785 = vpop.f32.mrf.mxu0
  %v786 = vpop.f32.mrf.mxu0
  %v787 = vadd.f32 0.0, %v786
  %v788 = vpop.f32.mrf.mxu0
  %789 = vmatprep.mubr.bf16.mxu0 0
  %790 = vmatmul.mubr.bf16.gmra.mxu0 %v342
  %v791 = vpop.f32.mrf.mxu0
  %v792 = vadd.f32 0.0, %v791
  %v793 = vpop.f32.mrf.mxu0
  %v794 = vpop.f32.mrf.mxu0
  %v795 = vadd.f32 0.0, %v794
  %v796 = vpop.f32.mrf.mxu0
  %797 = vmatprep.mubr.bf16.mxu0 0
  %798 = vmatmul.mubr.bf16.gmra.mxu0 %v345
  %v799 = vpop.f32.mrf.mxu0
  %v800 = vadd.f32 0.0, %v799
  %v801 = vpop.f32.mrf.mxu0
  %v802 = vpop.f32.mrf.mxu0
  %v803 = vadd.f32 0.0, %v802
  %v804 = vpop.f32.mrf.mxu0
  %805 = vmatprep.mubr.bf16.mxu0 0
  %806 = vmatmul.mubr.bf16.gmra.mxu0 %v348
  %v807 = vpop.f32.mrf.mxu0
  %v808 = vadd.f32 0.0, %v807
  %v809 = vpop.f32.mrf.mxu0
  %v810 = vpop.f32.mrf.mxu0
  %v811 = vadd.f32 0.0, %v810
  %v812 = vpop.f32.mrf.mxu0
  %813 = vmatprep.mubr.bf16.mxu0 0
  %814 = vmatmul.mubr.bf16.gmra.mxu0 %v351
  %v815 = vpop.f32.mrf.mxu0
  %v816 = vadd.f32 0.0, %v815
  %v817 = vpop.f32.mrf.mxu0
  %v818 = vpop.f32.mrf.mxu0
  %v819 = vadd.f32 0.0, %v818
  %v820 = vpop.f32.mrf.mxu0
  %821 = vmatprep.mubr.bf16.mxu0 0
  %822 = vmatmul.mubr.bf16.gmra.mxu0 %v354
  %v823 = vpop.f32.mrf.mxu0
  %v824 = vadd.f32 0.0, %v823
  %v825 = vpop.f32.mrf.mxu0
  %v826 = vpop.f32.mrf.mxu0
  %v827 = vadd.f32 0.0, %v826
  %v828 = vpop.f32.mrf.mxu0
  %829 = vmatprep.mubr.bf16.mxu0 0
  %830 = vmatmul.mubr.bf16.gmra.mxu0 %v357
  %v831 = vpop.f32.mrf.mxu0
  %v832 = vadd.f32 0.0, %v831
  %v833 = vpop.f32.mrf.mxu0
  %v834 = vpop.f32.mrf.mxu0
  %v835 = vadd.f32 0.0, %v834
  %v836 = vpop.f32.mrf.mxu0
  %837 = vmatprep.mubr.bf16.mxu0 0
  %838 = vmatmul.mubr.bf16.gmra.mxu0 %v360
  %v839 = vpop.f32.mrf.mxu0
  %v840 = vadd.f32 0.0, %v839
  %v841 = vpop.f32.mrf.mxu0
  %v842 = vpop.f32.mrf.mxu0
  %v843 = vadd.f32 0.0, %v842
  %v844 = vpop.f32.mrf.mxu0
  %845 = vmatprep.mubr.bf16.mxu0 0
  %846 = vmatmul.mubr.bf16.gmra.mxu0 %v363
  %v847 = vpop.f32.mrf.mxu0
  %v848 = vadd.f32 0.0, %v847
  %v849 = vpop.f32.mrf.mxu0
  %v850 = vpop.f32.mrf.mxu0
  %v851 = vadd.f32 0.0, %v850
  %v852 = vpop.f32.mrf.mxu0
  %853 = vmatprep.mubr.bf16.mxu0 0
  %854 = vmatmul.mubr.bf16.gmra.mxu0 %v366
  %v855 = vpop.f32.mrf.mxu0
  %v856 = vadd.f32 0.0, %v855
  %v857 = vpop.f32.mrf.mxu0
  %v858 = vpop.f32.mrf.mxu0
  %v859 = vadd.f32 0.0, %v858
  %v860 = vpop.f32.mrf.mxu0
  %861 = vmatprep.mubr.bf16.mxu0 0
  %862 = vmatmul.mubr.bf16.gmra.mxu0 %v369
  %v863 = vpop.f32.mrf.mxu0
  %v864 = vadd.f32 0.0, %v863
  %v865 = vpop.f32.mrf.mxu0
  %v866 = vpop.f32.mrf.mxu0
  %v867 = vadd.f32 0.0, %v866
  %v868 = vpop.f32.mrf.mxu0
  %869 = vmatprep.mubr.bf16.mxu0 0
  %870 = vmatmul.mubr.bf16.gmra.mxu0 %v372
  %v871 = vpop.f32.mrf.mxu0
  %v872 = vadd.f32 0.0, %v871
  %v873 = vpop.f32.mrf.mxu0
  %v874 = vpop.f32.mrf.mxu0
  %v875 = vadd.f32 0.0, %v874
  %v876 = vpop.f32.mrf.mxu0
  %877 = vmatprep.mubr.bf16.mxu0 0
  %878 = vmatmul.mubr.bf16.gmra.mxu0 %v375
  %v879 = vpop.f32.mrf.mxu0
  %v880 = vadd.f32 0.0, %v879
  %v881 = vpop.f32.mrf.mxu0
  %v882 = vpop.f32.mrf.mxu0
  %v883 = vadd.f32 0.0, %v882
  %v884 = vpop.f32.mrf.mxu0
  %885 = vmatprep.mubr.bf16.mxu0 0
  %886 = vmatmul.mubr.bf16.gmra.mxu0 %v378
  %v887 = vpop.f32.mrf.mxu0
  %v888 = vadd.f32 0.0, %v887
  %v889 = vpop.f32.mrf.mxu0
  %v890 = vpop.f32.mrf.mxu0
  %v891 = vadd.f32 0.0, %v890
  %v892 = vpop.f32.mrf.mxu0
  %893 = vmatprep.mubr.bf16.mxu0 0
  %894 = vmatmul.mubr.bf16.gmra.mxu0 %v381
  %v895 = vpop.f32.mrf.mxu0
  %v896 = vadd.f32 0.0, %v895
  %v897 = vpop.f32.mrf.mxu0
  %v898 = vpop.f32.mrf.mxu0
  %v899 = vadd.f32 0.0, %v898
  %v900 = vpop.f32.mrf.mxu0
  %901 = vmatprep.mubr.bf16.mxu0 0
  %902 = vmatmul.mubr.bf16.gmra.mxu0 %v384
  %v903 = vpop.f32.mrf.mxu0
  %v904 = vadd.f32 0.0, %v903
  %v905 = vpop.f32.mrf.mxu0
  %v906 = vpop.f32.mrf.mxu0
  %v907 = vadd.f32 0.0, %v906
  %v908 = vpop.f32.mrf.mxu0
  %909 = vmatprep.mubr.bf16.mxu0 0
  %910 = vmatmul.mubr.bf16.gmra.mxu0 %v387
  %v911 = vpop.f32.mrf.mxu0
  %v912 = vadd.f32 0.0, %v911
  %v913 = vpop.f32.mrf.mxu0
  %v914 = vpop.f32.mrf.mxu0
  %v915 = vadd.f32 0.0, %v914
  %v916 = vpop.f32.mrf.mxu0
  %917 = vmatprep.mubr.bf16.mxu0 0
  %918 = vmatmul.mubr.bf16.gmra.mxu0 %v390
  %v919 = vpop.f32.mrf.mxu0
  %v920 = vadd.f32 0.0, %v919
  %v921 = vpop.f32.mrf.mxu0
  %v922 = vpop.f32.mrf.mxu0
  %v923 = vadd.f32 0.0, %v922
  %v924 = vpop.f32.mrf.mxu0
  %925 = vmatprep.mubr.bf16.mxu0 0
  %926 = vmatmul.mubr.bf16.gmra.mxu0 %v393
  %v927 = vpop.f32.mrf.mxu0
  %v928 = vadd.f32 0.0, %v927
  %v929 = vpop.f32.mrf.mxu0
  %v930 = vpop.f32.mrf.mxu0
  %v931 = vadd.f32 0.0, %v930
  %v932 = vpop.f32.mrf.mxu0
  %933 = vmatprep.mubr.bf16.mxu0 0
  %934 = vmatmul.mubr.bf16.gmra.mxu0 %v396
  %v935 = vpop.f32.mrf.mxu0
  %v936 = vadd.f32 0.0, %v935
  %v937 = vpop.f32.mrf.mxu0
  %v938 = vpop.f32.mrf.mxu0
  %v939 = vadd.f32 0.0, %v938
  %v940 = vpop.f32.mrf.mxu0
  %941 = vmatprep.mubr.bf16.mxu0 0
  %942 = vmatmul.mubr.bf16.gmra.mxu0 %v399
  %v943 = vpop.f32.mrf.mxu0
  %v944 = vadd.f32 0.0, %v943
  %v945 = vpop.f32.mrf.mxu0
  %v946 = vpop.f32.mrf.mxu0
  %v947 = vadd.f32 0.0, %v946
  %v948 = vpop.f32.mrf.mxu0
  %949 = vdwg.mxu0
  %v950 = vld [vmem:[%s2] sm:$0x1]
  %v951 = vlaneseq
  %v952 = vshrl.u32 %v951, 7
  %v953 = vsub.s32 0, %v952
  %v954 = vrot.slane %v950, %v953
  %v955 = vmul.f32 %v440, %v954
  %v956 = vmul.f32 %v443, %v954
  %v957 = vmul.f32 %v448, %v954
  %v958 = vmul.f32 %v451, %v954
  %v959 = vmul.f32 %v456, %v954
  %v960 = vmul.f32 %v459, %v954
  %v961 = vmul.f32 %v464, %v954
  %v962 = vmul.f32 %v467, %v954
  %v963 = vmul.f32 %v472, %v954
  %v964 = vmul.f32 %v475, %v954
  %v965 = vmul.f32 %v480, %v954
  %v966 = vmul.f32 %v483, %v954
  %v967 = vmul.f32 %v488, %v954
  %v968 = vmul.f32 %v491, %v954
  %v969 = vmul.f32 %v496, %v954
  %v970 = vmul.f32 %v499, %v954
  %v971 = vmul.f32 %v504, %v954
  %v972 = vmul.f32 %v507, %v954
  %v973 = vmul.f32 %v512, %v954
  %v974 = vmul.f32 %v515, %v954
  %v975 = vmul.f32 %v520, %v954
  %v976 = vmul.f32 %v523, %v954
  %v977 = vmul.f32 %v528, %v954
  %v978 = vmul.f32 %v531, %v954
  %v979 = vmul.f32 %v536, %v954
  %v980 = vmul.f32 %v539, %v954
  %v981 = vmul.f32 %v544, %v954
  %v982 = vmul.f32 %v547, %v954
  %v983 = vmul.f32 %v552, %v954
  %v984 = vmul.f32 %v555, %v954
  %v985 = vmul.f32 %v560, %v954
  %v986 = vmul.f32 %v563, %v954
  %v987 = vmul.f32 %v568, %v954
  %v988 = vmul.f32 %v571, %v954
  %v989 = vmul.f32 %v576, %v954
  %v990 = vmul.f32 %v579, %v954
  %v991 = vmul.f32 %v584, %v954
  %v992 = vmul.f32 %v587, %v954
  %v993 = vmul.f32 %v592, %v954
  %v994 = vmul.f32 %v595, %v954
  %v995 = vmul.f32 %v600, %v954
  %v996 = vmul.f32 %v603, %v954
  %v997 = vmul.f32 %v608, %v954
  %v998 = vmul.f32 %v611, %v954
  %v999 = vmul.f32 %v616, %v954
  %v1000 = vmul.f32 %v619, %v954
  %v1001 = vmul.f32 %v624, %v954
  %v1002 = vmul.f32 %v627, %v954
  %v1003 = vmul.f32 %v632, %v954
  %v1004 = vmul.f32 %v635, %v954
  %v1005 = vmul.f32 %v640, %v954
  %v1006 = vmul.f32 %v643, %v954
  %v1007 = vmul.f32 %v648, %v954
  %v1008 = vmul.f32 %v651, %v954
  %v1009 = vmul.f32 %v656, %v954
  %v1010 = vmul.f32 %v659, %v954
  %v1011 = vmul.f32 %v664, %v954
  %v1012 = vmul.f32 %v667, %v954
  %v1013 = vmul.f32 %v672, %v954
  %v1014 = vmul.f32 %v675, %v954
  %v1015 = vmul.f32 %v680, %v954
  %v1016 = vmul.f32 %v683, %v954
  %v1017 = vmul.f32 %v688, %v954
  %v1018 = vmul.f32 %v691, %v954
  %v1019 = vmul.f32 %v696, %v954
  %v1020 = vmul.f32 %v699, %v954
  %v1021 = vmul.f32 %v704, %v954
  %v1022 = vmul.f32 %v707, %v954
  %v1023 = vmul.f32 %v712, %v954
  %v1024 = vmul.f32 %v715, %v954
  %v1025 = vmul.f32 %v720, %v954
  %v1026 = vmul.f32 %v723, %v954
  %v1027 = vmul.f32 %v728, %v954
  %v1028 = vmul.f32 %v731, %v954
  %v1029 = vmul.f32 %v736, %v954
  %v1030 = vmul.f32 %v739, %v954
  %v1031 = vmul.f32 %v744, %v954
  %v1032 = vmul.f32 %v747, %v954
  %v1033 = vmul.f32 %v752, %v954
  %v1034 = vmul.f32 %v755, %v954
  %v1035 = vmul.f32 %v760, %v954
  %v1036 = vmul.f32 %v763, %v954
  %v1037 = vmul.f32 %v768, %v954
  %v1038 = vmul.f32 %v771, %v954
  %v1039 = vmul.f32 %v776, %v954
  %v1040 = vmul.f32 %v779, %v954
  %v1041 = vmul.f32 %v784, %v954
  %v1042 = vmul.f32 %v787, %v954
  %v1043 = vmul.f32 %v792, %v954
  %v1044 = vmul.f32 %v795, %v954
  %v1045 = vmul.f32 %v800, %v954
  %v1046 = vmul.f32 %v803, %v954
  %v1047 = vmul.f32 %v808, %v954
  %v1048 = vmul.f32 %v811, %v954
  %v1049 = vmul.f32 %v816, %v954
  %v1050 = vmul.f32 %v819, %v954
  %v1051 = vmul.f32 %v824, %v954
  %v1052 = vmul.f32 %v827, %v954
  %v1053 = vmul.f32 %v832, %v954
  %v1054 = vmul.f32 %v835, %v954
  %v1055 = vmul.f32 %v840, %v954
  %v1056 = vmul.f32 %v843, %v954
  %v1057 = vmul.f32 %v848, %v954
  %v1058 = vmul.f32 %v851, %v954
  %v1059 = vmul.f32 %v856, %v954
  %v1060 = vmul.f32 %v859, %v954
  %v1061 = vmul.f32 %v864, %v954
  %v1062 = vmul.f32 %v867, %v954
  %v1063 = vmul.f32 %v872, %v954
  %v1064 = vmul.f32 %v875, %v954
  %v1065 = vmul.f32 %v880, %v954
  %v1066 = vmul.f32 %v883, %v954
  %v1067 = vmul.f32 %v888, %v954
  %v1068 = vmul.f32 %v891, %v954
  %v1069 = vmul.f32 %v896, %v954
  %v1070 = vmul.f32 %v899, %v954
  %v1071 = vmul.f32 %v904, %v954
  %v1072 = vmul.f32 %v907, %v954
  %v1073 = vmul.f32 %v912, %v954
  %v1074 = vmul.f32 %v915, %v954
  %v1075 = vmul.f32 %v920, %v954
  %v1076 = vmul.f32 %v923, %v954
  %v1077 = vmul.f32 %v928, %v954
  %v1078 = vmul.f32 %v931, %v954
  %v1079 = vmul.f32 %v936, %v954
  %v1080 = vmul.f32 %v939, %v954
  %v1081 = vmul.f32 %v944, %v954
  %v1082 = vmul.f32 %v947, %v954
  %v1083 = vld [vmem:[%s2 + $0x1] sm:$0x1]
  %v1084 = vlaneseq
  %v1085 = vshrl.u32 %v1084, 7
  %v1086 = vsub.s32 0, %v1085
  %v1087 = vrot.slane %v1083, %v1086
  %v1088 = vadd.f32 %v955, %v1087
  %v1089 = vadd.f32 %v956, %v1087
  %v1090 = vadd.f32 %v957, %v1087
  %v1091 = vadd.f32 %v958, %v1087
  %v1092 = vadd.f32 %v959, %v1087
  %v1093 = vadd.f32 %v960, %v1087
  %v1094 = vadd.f32 %v961, %v1087
  %v1095 = vadd.f32 %v962, %v1087
  %v1096 = vadd.f32 %v963, %v1087
  %v1097 = vadd.f32 %v964, %v1087
  %v1098 = vadd.f32 %v965, %v1087
  %v1099 = vadd.f32 %v966, %v1087
  %v1100 = vadd.f32 %v967, %v1087
  %v1101 = vadd.f32 %v968, %v1087
  %v1102 = vadd.f32 %v969, %v1087
  %v1103 = vadd.f32 %v970, %v1087
  %v1104 = vadd.f32 %v971, %v1087
  %v1105 = vadd.f32 %v972, %v1087
  %v1106 = vadd.f32 %v973, %v1087
  %v1107 = vadd.f32 %v974, %v1087
  %v1108 = vadd.f32 %v975, %v1087
  %v1109 = vadd.f32 %v976, %v1087
  %v1110 = vadd.f32 %v977, %v1087
  %v1111 = vadd.f32 %v978, %v1087
  %v1112 = vadd.f32 %v979, %v1087
  %v1113 = vadd.f32 %v980, %v1087
  %v1114 = vadd.f32 %v981, %v1087
  %v1115 = vadd.f32 %v982, %v1087
  %v1116 = vadd.f32 %v983, %v1087
  %v1117 = vadd.f32 %v984, %v1087
  %v1118 = vadd.f32 %v985, %v1087
  %v1119 = vadd.f32 %v986, %v1087
  %v1120 = vadd.f32 %v987, %v1087
  %v1121 = vadd.f32 %v988, %v1087
  %v1122 = vadd.f32 %v989, %v1087
  %v1123 = vadd.f32 %v990, %v1087
  %v1124 = vadd.f32 %v991, %v1087
  %v1125 = vadd.f32 %v992, %v1087
  %v1126 = vadd.f32 %v993, %v1087
  %v1127 = vadd.f32 %v994, %v1087
  %v1128 = vadd.f32 %v995, %v1087
  %v1129 = vadd.f32 %v996, %v1087
  %v1130 = vadd.f32 %v997, %v1087
  %v1131 = vadd.f32 %v998, %v1087
  %v1132 = vadd.f32 %v999, %v1087
  %v1133 = vadd.f32 %v1000, %v1087
  %v1134 = vadd.f32 %v1001, %v1087
  %v1135 = vadd.f32 %v1002, %v1087
  %v1136 = vadd.f32 %v1003, %v1087
  %v1137 = vadd.f32 %v1004, %v1087
  %v1138 = vadd.f32 %v1005, %v1087
  %v1139 = vadd.f32 %v1006, %v1087
  %v1140 = vadd.f32 %v1007, %v1087
  %v1141 = vadd.f32 %v1008, %v1087
  %v1142 = vadd.f32 %v1009, %v1087
  %v1143 = vadd.f32 %v1010, %v1087
  %v1144 = vadd.f32 %v1011, %v1087
  %v1145 = vadd.f32 %v1012, %v1087
  %v1146 = vadd.f32 %v1013, %v1087
  %v1147 = vadd.f32 %v1014, %v1087
  %v1148 = vadd.f32 %v1015, %v1087
  %v1149 = vadd.f32 %v1016, %v1087
  %v1150 = vadd.f32 %v1017, %v1087
  %v1151 = vadd.f32 %v1018, %v1087
  %v1152 = vadd.f32 %v1019, %v1087
  %v1153 = vadd.f32 %v1020, %v1087
  %v1154 = vadd.f32 %v1021, %v1087
  %v1155 = vadd.f32 %v1022, %v1087
  %v1156 = vadd.f32 %v1023, %v1087
  %v1157 = vadd.f32 %v1024, %v1087
  %v1158 = vadd.f32 %v1025, %v1087
  %v1159 = vadd.f32 %v1026, %v1087
  %v1160 = vadd.f32 %v1027, %v1087
  %v1161 = vadd.f32 %v1028, %v1087
  %v1162 = vadd.f32 %v1029, %v1087
  %v1163 = vadd.f32 %v1030, %v1087
  %v1164 = vadd.f32 %v1031, %v1087
  %v1165 = vadd.f32 %v1032, %v1087
  %v1166 = vadd.f32 %v1033, %v1087
  %v1167 = vadd.f32 %v1034, %v1087
  %v1168 = vadd.f32 %v1035, %v1087
  %v1169 = vadd.f32 %v1036, %v1087
  %v1170 = vadd.f32 %v1037, %v1087
  %v1171 = vadd.f32 %v1038, %v1087
  %v1172 = vadd.f32 %v1039, %v1087
  %v1173 = vadd.f32 %v1040, %v1087
  %v1174 = vadd.f32 %v1041, %v1087
  %v1175 = vadd.f32 %v1042, %v1087
  %v1176 = vadd.f32 %v1043, %v1087
  %v1177 = vadd.f32 %v1044, %v1087
  %v1178 = vadd.f32 %v1045, %v1087
  %v1179 = vadd.f32 %v1046, %v1087
  %v1180 = vadd.f32 %v1047, %v1087
  %v1181 = vadd.f32 %v1048, %v1087
  %v1182 = vadd.f32 %v1049, %v1087
  %v1183 = vadd.f32 %v1050, %v1087
  %v1184 = vadd.f32 %v1051, %v1087
  %v1185 = vadd.f32 %v1052, %v1087
  %v1186 = vadd.f32 %v1053, %v1087
  %v1187 = vadd.f32 %v1054, %v1087
  %v1188 = vadd.f32 %v1055, %v1087
  %v1189 = vadd.f32 %v1056, %v1087
  %v1190 = vadd.f32 %v1057, %v1087
  %v1191 = vadd.f32 %v1058, %v1087
  %v1192 = vadd.f32 %v1059, %v1087
  %v1193 = vadd.f32 %v1060, %v1087
  %v1194 = vadd.f32 %v1061, %v1087
  %v1195 = vadd.f32 %v1062, %v1087
  %v1196 = vadd.f32 %v1063, %v1087
  %v1197 = vadd.f32 %v1064, %v1087
  %v1198 = vadd.f32 %v1065, %v1087
  %v1199 = vadd.f32 %v1066, %v1087
  %v1200 = vadd.f32 %v1067, %v1087
  %v1201 = vadd.f32 %v1068, %v1087
  %v1202 = vadd.f32 %v1069, %v1087
  %v1203 = vadd.f32 %v1070, %v1087
  %v1204 = vadd.f32 %v1071, %v1087
  %v1205 = vadd.f32 %v1072, %v1087
  %v1206 = vadd.f32 %v1073, %v1087
  %v1207 = vadd.f32 %v1074, %v1087
  %v1208 = vadd.f32 %v1075, %v1087
  %v1209 = vadd.f32 %v1076, %v1087
  %v1210 = vadd.f32 %v1077, %v1087
  %v1211 = vadd.f32 %v1078, %v1087
  %v1212 = vadd.f32 %v1079, %v1087
  %v1213 = vadd.f32 %v1080, %v1087
  %v1214 = vadd.f32 %v1081, %v1087
  %v1215 = vadd.f32 %v1082, %v1087
  %v1216 = vmax.f32 %v1088, 0.0
  %v1217 = vmax.f32 %v1089, 0.0
  %v1218 = vmax.f32 %v1090, 0.0
  %v1219 = vmax.f32 %v1091, 0.0
  %v1220 = vmax.f32 %v1092, 0.0
  %v1221 = vmax.f32 %v1093, 0.0
  %v1222 = vmax.f32 %v1094, 0.0
  %v1223 = vmax.f32 %v1095, 0.0
  %v1224 = vmax.f32 %v1096, 0.0
  %v1225 = vmax.f32 %v1097, 0.0
  %v1226 = vmax.f32 %v1098, 0.0
  %v1227 = vmax.f32 %v1099, 0.0
  %v1228 = vmax.f32 %v1100, 0.0
  %v1229 = vmax.f32 %v1101, 0.0
  %v1230 = vmax.f32 %v1102, 0.0
  %v1231 = vmax.f32 %v1103, 0.0
  %v1232 = vmax.f32 %v1104, 0.0
  %v1233 = vmax.f32 %v1105, 0.0
  %v1234 = vmax.f32 %v1106, 0.0
  %v1235 = vmax.f32 %v1107, 0.0
  %v1236 = vmax.f32 %v1108, 0.0
  %v1237 = vmax.f32 %v1109, 0.0
  %v1238 = vmax.f32 %v1110, 0.0
  %v1239 = vmax.f32 %v1111, 0.0
  %v1240 = vmax.f32 %v1112, 0.0
  %v1241 = vmax.f32 %v1113, 0.0
  %v1242 = vmax.f32 %v1114, 0.0
  %v1243 = vmax.f32 %v1115, 0.0
  %v1244 = vmax.f32 %v1116, 0.0
  %v1245 = vmax.f32 %v1117, 0.0
  %v1246 = vmax.f32 %v1118, 0.0
  %v1247 = vmax.f32 %v1119, 0.0
  %v1248 = vmax.f32 %v1120, 0.0
  %v1249 = vmax.f32 %v1121, 0.0
  %v1250 = vmax.f32 %v1122, 0.0
  %v1251 = vmax.f32 %v1123, 0.0
  %v1252 = vmax.f32 %v1124, 0.0
  %v1253 = vmax.f32 %v1125, 0.0
  %v1254 = vmax.f32 %v1126, 0.0
  %v1255 = vmax.f32 %v1127, 0.0
  %v1256 = vmax.f32 %v1128, 0.0
  %v1257 = vmax.f32 %v1129, 0.0
  %v1258 = vmax.f32 %v1130, 0.0
  %v1259 = vmax.f32 %v1131, 0.0
  %v1260 = vmax.f32 %v1132, 0.0
  %v1261 = vmax.f32 %v1133, 0.0
  %v1262 = vmax.f32 %v1134, 0.0
  %v1263 = vmax.f32 %v1135, 0.0
  %v1264 = vmax.f32 %v1136, 0.0
  %v1265 = vmax.f32 %v1137, 0.0
  %v1266 = vmax.f32 %v1138, 0.0
  %v1267 = vmax.f32 %v1139, 0.0
  %v1268 = vmax.f32 %v1140, 0.0
  %v1269 = vmax.f32 %v1141, 0.0
  %v1270 = vmax.f32 %v1142, 0.0
  %v1271 = vmax.f32 %v1143, 0.0
  %v1272 = vmax.f32 %v1144, 0.0
  %v1273 = vmax.f32 %v1145, 0.0
  %v1274 = vmax.f32 %v1146, 0.0
  %v1275 = vmax.f32 %v1147, 0.0
  %v1276 = vmax.f32 %v1148, 0.0
  %v1277 = vmax.f32 %v1149, 0.0
  %v1278 = vmax.f32 %v1150, 0.0
  %v1279 = vmax.f32 %v1151, 0.0
  %v1280 = vmax.f32 %v1152, 0.0
  %v1281 = vmax.f32 %v1153, 0.0
  %v1282 = vmax.f32 %v1154, 0.0
  %v1283 = vmax.f32 %v1155, 0.0
  %v1284 = vmax.f32 %v1156, 0.0
  %v1285 = vmax.f32 %v1157, 0.0
  %v1286 = vmax.f32 %v1158, 0.0
  %v1287 = vmax.f32 %v1159, 0.0
  %v1288 = vmax.f32 %v1160, 0.0
  %v1289 = vmax.f32 %v1161, 0.0
  %v1290 = vmax.f32 %v1162, 0.0
  %v1291 = vmax.f32 %v1163, 0.0
  %v1292 = vmax.f32 %v1164, 0.0
  %v1293 = vmax.f32 %v1165, 0.0
  %v1294 = vmax.f32 %v1166, 0.0
  %v1295 = vmax.f32 %v1167, 0.0
  %v1296 = vmax.f32 %v1168, 0.0
  %v1297 = vmax.f32 %v1169, 0.0
  %v1298 = vmax.f32 %v1170, 0.0
  %v1299 = vmax.f32 %v1171, 0.0
  %v1300 = vmax.f32 %v1172, 0.0
  %v1301 = vmax.f32 %v1173, 0.0
  %v1302 = vmax.f32 %v1174, 0.0
  %v1303 = vmax.f32 %v1175, 0.0
  %v1304 = vmax.f32 %v1176, 0.0
  %v1305 = vmax.f32 %v1177, 0.0
  %v1306 = vmax.f32 %v1178, 0.0
  %v1307 = vmax.f32 %v1179, 0.0
  %v1308 = vmax.f32 %v1180, 0.0
  %v1309 = vmax.f32 %v1181, 0.0
  %v1310 = vmax.f32 %v1182, 0.0
  %v1311 = vmax.f32 %v1183, 0.0
  %v1312 = vmax.f32 %v1184, 0.0
  %v1313 = vmax.f32 %v1185, 0.0
  %v1314 = vmax.f32 %v1186, 0.0
  %v1315 = vmax.f32 %v1187, 0.0
  %v1316 = vmax.f32 %v1188, 0.0
  %v1317 = vmax.f32 %v1189, 0.0
  %v1318 = vmax.f32 %v1190, 0.0
  %v1319 = vmax.f32 %v1191, 0.0
  %v1320 = vmax.f32 %v1192, 0.0
  %v1321 = vmax.f32 %v1193, 0.0
  %v1322 = vmax.f32 %v1194, 0.0
  %v1323 = vmax.f32 %v1195, 0.0
  %v1324 = vmax.f32 %v1196, 0.0
  %v1325 = vmax.f32 %v1197, 0.0
  %v1326 = vmax.f32 %v1198, 0.0
  %v1327 = vmax.f32 %v1199, 0.0
  %v1328 = vmax.f32 %v1200, 0.0
  %v1329 = vmax.f32 %v1201, 0.0
  %v1330 = vmax.f32 %v1202, 0.0
  %v1331 = vmax.f32 %v1203, 0.0
  %v1332 = vmax.f32 %v1204, 0.0
  %v1333 = vmax.f32 %v1205, 0.0
  %v1334 = vmax.f32 %v1206, 0.0
  %v1335 = vmax.f32 %v1207, 0.0
  %v1336 = vmax.f32 %v1208, 0.0
  %v1337 = vmax.f32 %v1209, 0.0
  %v1338 = vmax.f32 %v1210, 0.0
  %v1339 = vmax.f32 %v1211, 0.0
  %v1340 = vmax.f32 %v1212, 0.0
  %v1341 = vmax.f32 %v1213, 0.0
  %v1342 = vmax.f32 %v1214, 0.0
  %v1343 = vmax.f32 %v1215, 0.0
  %v1344 = vpack.c.bf16 %v1217, %v1216
  %v1345 = vpack.c.bf16 %v1219, %v1218
  %v1346 = vpack.c.bf16 %v1221, %v1220
  %v1347 = vpack.c.bf16 %v1223, %v1222
  %v1348 = vpack.c.bf16 %v1225, %v1224
  %v1349 = vpack.c.bf16 %v1227, %v1226
  %v1350 = vpack.c.bf16 %v1229, %v1228
  %v1351 = vpack.c.bf16 %v1231, %v1230
  %v1352 = vpack.c.bf16 %v1233, %v1232
  %v1353 = vpack.c.bf16 %v1235, %v1234
  %v1354 = vpack.c.bf16 %v1237, %v1236
  %v1355 = vpack.c.bf16 %v1239, %v1238
  %v1356 = vpack.c.bf16 %v1241, %v1240
  %v1357 = vpack.c.bf16 %v1243, %v1242
  %v1358 = vpack.c.bf16 %v1245, %v1244
  %v1359 = vpack.c.bf16 %v1247, %v1246
  %v1360 = vpack.c.bf16 %v1249, %v1248
  %v1361 = vpack.c.bf16 %v1251, %v1250
  %v1362 = vpack.c.bf16 %v1253, %v1252
  %v1363 = vpack.c.bf16 %v1255, %v1254
  %v1364 = vpack.c.bf16 %v1257, %v1256
  %v1365 = vpack.c.bf16 %v1259, %v1258
  %v1366 = vpack.c.bf16 %v1261, %v1260
  %v1367 = vpack.c.bf16 %v1263, %v1262
  %v1368 = vpack.c.bf16 %v1265, %v1264
  %v1369 = vpack.c.bf16 %v1267, %v1266
  %v1370 = vpack.c.bf16 %v1269, %v1268
  %v1371 = vpack.c.bf16 %v1271, %v1270
  %v1372 = vpack.c.bf16 %v1273, %v1272
  %v1373 = vpack.c.bf16 %v1275, %v1274
  %v1374 = vpack.c.bf16 %v1277, %v1276
  %v1375 = vpack.c.bf16 %v1279, %v1278
  %v1376 = vpack.c.bf16 %v1281, %v1280
  %v1377 = vpack.c.bf16 %v1283, %v1282
  %v1378 = vpack.c.bf16 %v1285, %v1284
  %v1379 = vpack.c.bf16 %v1287, %v1286
  %v1380 = vpack.c.bf16 %v1289, %v1288
  %v1381 = vpack.c.bf16 %v1291, %v1290
  %v1382 = vpack.c.bf16 %v1293, %v1292
  %v1383 = vpack.c.bf16 %v1295, %v1294
  %v1384 = vpack.c.bf16 %v1297, %v1296
  %v1385 = vpack.c.bf16 %v1299, %v1298
  %v1386 = vpack.c.bf16 %v1301, %v1300
  %v1387 = vpack.c.bf16 %v1303, %v1302
  %v1388 = vpack.c.bf16 %v1305, %v1304
  %v1389 = vpack.c.bf16 %v1307, %v1306
  %v1390 = vpack.c.bf16 %v1309, %v1308
  %v1391 = vpack.c.bf16 %v1311, %v1310
  %v1392 = vpack.c.bf16 %v1313, %v1312
  %v1393 = vpack.c.bf16 %v1315, %v1314
  %v1394 = vpack.c.bf16 %v1317, %v1316
  %v1395 = vpack.c.bf16 %v1319, %v1318
  %v1396 = vpack.c.bf16 %v1321, %v1320
  %v1397 = vpack.c.bf16 %v1323, %v1322
  %v1398 = vpack.c.bf16 %v1325, %v1324
  %v1399 = vpack.c.bf16 %v1327, %v1326
  %v1400 = vpack.c.bf16 %v1329, %v1328
  %v1401 = vpack.c.bf16 %v1331, %v1330
  %v1402 = vpack.c.bf16 %v1333, %v1332
  %v1403 = vpack.c.bf16 %v1335, %v1334
  %v1404 = vpack.c.bf16 %v1337, %v1336
  %v1405 = vpack.c.bf16 %v1339, %v1338
  %v1406 = vpack.c.bf16 %v1341, %v1340
  %v1407 = vpack.c.bf16 %v1343, %v1342
  %v1472 = vunpack.c.l.b16 %v1344
  %v1473 = vunpack.c.h.b16 %v1344
  %v1474 = vunpack.c.l.b16 %v1345
  %v1475 = vunpack.c.h.b16 %v1345
  %v1476 = vunpack.c.l.b16 %v1346
  %v1477 = vunpack.c.h.b16 %v1346
  %v1478 = vunpack.c.l.b16 %v1347
  %v1479 = vunpack.c.h.b16 %v1347
  %v1480 = vunpack.c.l.b16 %v1348
  %v1481 = vunpack.c.h.b16 %v1348
  %v1482 = vunpack.c.l.b16 %v1349
  %v1483 = vunpack.c.h.b16 %v1349
  %v1484 = vunpack.c.l.b16 %v1350
  %v1485 = vunpack.c.h.b16 %v1350
  %v1486 = vunpack.c.l.b16 %v1351
  %v1487 = vunpack.c.h.b16 %v1351
  %v1488 = vunpack.c.l.b16 %v1352
  %v1489 = vunpack.c.h.b16 %v1352
  %v1490 = vunpack.c.l.b16 %v1353
  %v1491 = vunpack.c.h.b16 %v1353
  %v1492 = vunpack.c.l.b16 %v1354
  %v1493 = vunpack.c.h.b16 %v1354
  %v1494 = vunpack.c.l.b16 %v1355
  %v1495 = vunpack.c.h.b16 %v1355
  %v1496 = vunpack.c.l.b16 %v1356
  %v1497 = vunpack.c.h.b16 %v1356
  %v1498 = vunpack.c.l.b16 %v1357
  %v1499 = vunpack.c.h.b16 %v1357
  %v1500 = vunpack.c.l.b16 %v1358
  %v1501 = vunpack.c.h.b16 %v1358
  %v1502 = vunpack.c.l.b16 %v1359
  %v1503 = vunpack.c.h.b16 %v1359
  %v1504 = vunpack.c.l.b16 %v1360
  %v1505 = vunpack.c.h.b16 %v1360
  %v1506 = vunpack.c.l.b16 %v1361
  %v1507 = vunpack.c.h.b16 %v1361
  %v1508 = vunpack.c.l.b16 %v1362
  %v1509 = vunpack.c.h.b16 %v1362
  %v1510 = vunpack.c.l.b16 %v1363
  %v1511 = vunpack.c.h.b16 %v1363
  %v1512 = vunpack.c.l.b16 %v1364
  %v1513 = vunpack.c.h.b16 %v1364
  %v1514 = vunpack.c.l.b16 %v1365
  %v1515 = vunpack.c.h.b16 %v1365
  %v1516 = vunpack.c.l.b16 %v1366
  %v1517 = vunpack.c.h.b16 %v1366
  %v1518 = vunpack.c.l.b16 %v1367
  %v1519 = vunpack.c.h.b16 %v1367
  %v1520 = vunpack.c.l.b16 %v1368
  %v1521 = vunpack.c.h.b16 %v1368
  %v1522 = vunpack.c.l.b16 %v1369
  %v1523 = vunpack.c.h.b16 %v1369
  %v1524 = vunpack.c.l.b16 %v1370
  %v1525 = vunpack.c.h.b16 %v1370
  %v1526 = vunpack.c.l.b16 %v1371
  %v1527 = vunpack.c.h.b16 %v1371
  %v1528 = vunpack.c.l.b16 %v1372
  %v1529 = vunpack.c.h.b16 %v1372
  %v1530 = vunpack.c.l.b16 %v1373
  %v1531 = vunpack.c.h.b16 %v1373
  %v1532 = vunpack.c.l.b16 %v1374
  %v1533 = vunpack.c.h.b16 %v1374
  %v1534 = vunpack.c.l.b16 %v1375
  %v1535 = vunpack.c.h.b16 %v1375
  %v1536 = vunpack.c.l.b16 %v1376
  %v1537 = vunpack.c.h.b16 %v1376
  %v1538 = vunpack.c.l.b16 %v1377
  %v1539 = vunpack.c.h.b16 %v1377
  %v1540 = vunpack.c.l.b16 %v1378
  %v1541 = vunpack.c.h.b16 %v1378
  %v1542 = vunpack.c.l.b16 %v1379
  %v1543 = vunpack.c.h.b16 %v1379
  %v1544 = vunpack.c.l.b16 %v1380
  %v1545 = vunpack.c.h.b16 %v1380
  %v1546 = vunpack.c.l.b16 %v1381
  %v1547 = vunpack.c.h.b16 %v1381
  %v1548 = vunpack.c.l.b16 %v1382
  %v1549 = vunpack.c.h.b16 %v1382
  %v1550 = vunpack.c.l.b16 %v1383
  %v1551 = vunpack.c.h.b16 %v1383
  %v1552 = vunpack.c.l.b16 %v1384
  %v1553 = vunpack.c.h.b16 %v1384
  %v1554 = vunpack.c.l.b16 %v1385
  %v1555 = vunpack.c.h.b16 %v1385
  %v1556 = vunpack.c.l.b16 %v1386
  %v1557 = vunpack.c.h.b16 %v1386
  %v1558 = vunpack.c.l.b16 %v1387
  %v1559 = vunpack.c.h.b16 %v1387
  %v1560 = vunpack.c.l.b16 %v1388
  %v1561 = vunpack.c.h.b16 %v1388
  %v1562 = vunpack.c.l.b16 %v1389
  %v1563 = vunpack.c.h.b16 %v1389
  %v1564 = vunpack.c.l.b16 %v1390
  %v1565 = vunpack.c.h.b16 %v1390
  %v1566 = vunpack.c.l.b16 %v1391
  %v1567 = vunpack.c.h.b16 %v1391
  %v1568 = vunpack.c.l.b16 %v1392
  %v1569 = vunpack.c.h.b16 %v1392
  %v1570 = vunpack.c.l.b16 %v1393
  %v1571 = vunpack.c.h.b16 %v1393
  %v1572 = vunpack.c.l.b16 %v1394
  %v1573 = vunpack.c.h.b16 %v1394
  %v1574 = vunpack.c.l.b16 %v1395
  %v1575 = vunpack.c.h.b16 %v1395
  %v1576 = vunpack.c.l.b16 %v1396
  %v1577 = vunpack.c.h.b16 %v1396
  %v1578 = vunpack.c.l.b16 %v1397
  %v1579 = vunpack.c.h.b16 %v1397
  %v1580 = vunpack.c.l.b16 %v1398
  %v1581 = vunpack.c.h.b16 %v1398
  %v1582 = vunpack.c.l.b16 %v1399
  %v1583 = vunpack.c.h.b16 %v1399
  %v1584 = vunpack.c.l.b16 %v1400
  %v1585 = vunpack.c.h.b16 %v1400
  %v1586 = vunpack.c.l.b16 %v1401
  %v1587 = vunpack.c.h.b16 %v1401
  %v1588 = vunpack.c.l.b16 %v1402
  %v1589 = vunpack.c.h.b16 %v1402
  %v1590 = vunpack.c.l.b16 %v1403
  %v1591 = vunpack.c.h.b16 %v1403
  %v1592 = vunpack.c.l.b16 %v1404
  %v1593 = vunpack.c.h.b16 %v1404
  %v1594 = vunpack.c.l.b16 %v1405
  %v1595 = vunpack.c.h.b16 %v1405
  %v1596 = vunpack.c.l.b16 %v1406
  %v1597 = vunpack.c.h.b16 %v1406
  %v1598 = vunpack.c.l.b16 %v1407
  %v1599 = vunpack.c.h.b16 %v1407
  %v1600 = vpack.c.b16 %v1472, %v1472
  %v1601 = vpack.c.b16 %v1473, %v1473
  %v1602 = vpack.c.b16 %v1474, %v1474
  %v1603 = vpack.c.b16 %v1475, %v1475
  %v1604 = vpack.c.b16 %v1476, %v1476
  %v1605 = vpack.c.b16 %v1477, %v1477
  %v1606 = vpack.c.b16 %v1478, %v1478
  %v1607 = vpack.c.b16 %v1479, %v1479
  %v1608 = vpack.c.b16 %v1480, %v1480
  %v1609 = vpack.c.b16 %v1481, %v1481
  %v1610 = vpack.c.b16 %v1482, %v1482
  %v1611 = vpack.c.b16 %v1483, %v1483
  %v1612 = vpack.c.b16 %v1484, %v1484
  %v1613 = vpack.c.b16 %v1485, %v1485
  %v1614 = vpack.c.b16 %v1486, %v1486
  %v1615 = vpack.c.b16 %v1487, %v1487
  %v1616 = vpack.c.b16 %v1488, %v1488
  %v1617 = vpack.c.b16 %v1489, %v1489
  %v1618 = vpack.c.b16 %v1490, %v1490
  %v1619 = vpack.c.b16 %v1491, %v1491
  %v1620 = vpack.c.b16 %v1492, %v1492
  %v1621 = vpack.c.b16 %v1493, %v1493
  %v1622 = vpack.c.b16 %v1494, %v1494
  %v1623 = vpack.c.b16 %v1495, %v1495
  %v1624 = vpack.c.b16 %v1496, %v1496
  %v1625 = vpack.c.b16 %v1497, %v1497
  %v1626 = vpack.c.b16 %v1498, %v1498
  %v1627 = vpack.c.b16 %v1499, %v1499
  %v1628 = vpack.c.b16 %v1500, %v1500
  %v1629 = vpack.c.b16 %v1501, %v1501
  %v1630 = vpack.c.b16 %v1502, %v1502
  %v1631 = vpack.c.b16 %v1503, %v1503
  %v1632 = vpack.c.b16 %v1504, %v1504
  %v1633 = vpack.c.b16 %v1505, %v1505
  %v1634 = vpack.c.b16 %v1506, %v1506
  %v1635 = vpack.c.b16 %v1507, %v1507
  %v1636 = vpack.c.b16 %v1508, %v1508
  %v1637 = vpack.c.b16 %v1509, %v1509
  %v1638 = vpack.c.b16 %v1510, %v1510
  %v1639 = vpack.c.b16 %v1511, %v1511
  %v1640 = vpack.c.b16 %v1512, %v1512
  %v1641 = vpack.c.b16 %v1513, %v1513
  %v1642 = vpack.c.b16 %v1514, %v1514
  %v1643 = vpack.c.b16 %v1515, %v1515
  %v1644 = vpack.c.b16 %v1516, %v1516
  %v1645 = vpack.c.b16 %v1517, %v1517
  %v1646 = vpack.c.b16 %v1518, %v1518
  %v1647 = vpack.c.b16 %v1519, %v1519
  %v1648 = vpack.c.b16 %v1520, %v1520
  %v1649 = vpack.c.b16 %v1521, %v1521
  %v1650 = vpack.c.b16 %v1522, %v1522
  %v1651 = vpack.c.b16 %v1523, %v1523
  %v1652 = vpack.c.b16 %v1524, %v1524
  %v1653 = vpack.c.b16 %v1525, %v1525
  %v1654 = vpack.c.b16 %v1526, %v1526
  %v1655 = vpack.c.b16 %v1527, %v1527
  %v1656 = vpack.c.b16 %v1528, %v1528
  %v1657 = vpack.c.b16 %v1529, %v1529
  %v1658 = vpack.c.b16 %v1530, %v1530
  %v1659 = vpack.c.b16 %v1531, %v1531
  %v1660 = vpack.c.b16 %v1532, %v1532
  %v1661 = vpack.c.b16 %v1533, %v1533
  %v1662 = vpack.c.b16 %v1534, %v1534
  %v1663 = vpack.c.b16 %v1535, %v1535
  %v1664 = vpack.c.b16 %v1536, %v1536
  %v1665 = vpack.c.b16 %v1537, %v1537
  %v1666 = vpack.c.b16 %v1538, %v1538
  %v1667 = vpack.c.b16 %v1539, %v1539
  %v1668 = vpack.c.b16 %v1540, %v1540
  %v1669 = vpack.c.b16 %v1541, %v1541
  %v1670 = vpack.c.b16 %v1542, %v1542
  %v1671 = vpack.c.b16 %v1543, %v1543
  %v1672 = vpack.c.b16 %v1544, %v1544
  %v1673 = vpack.c.b16 %v1545, %v1545
  %v1674 = vpack.c.b16 %v1546, %v1546
  %v1675 = vpack.c.b16 %v1547, %v1547
  %v1676 = vpack.c.b16 %v1548, %v1548
  %v1677 = vpack.c.b16 %v1549, %v1549
  %v1678 = vpack.c.b16 %v1550, %v1550
  %v1679 = vpack.c.b16 %v1551, %v1551
  %v1680 = vpack.c.b16 %v1552, %v1552
  %v1681 = vpack.c.b16 %v1553, %v1553
  %v1682 = vpack.c.b16 %v1554, %v1554
  %v1683 = vpack.c.b16 %v1555, %v1555
  %v1684 = vpack.c.b16 %v1556, %v1556
  %v1685 = vpack.c.b16 %v1557, %v1557
  %v1686 = vpack.c.b16 %v1558, %v1558
  %v1687 = vpack.c.b16 %v1559, %v1559
  %v1688 = vpack.c.b16 %v1560, %v1560
  %v1689 = vpack.c.b16 %v1561, %v1561
  %v1690 = vpack.c.b16 %v1562, %v1562
  %v1691 = vpack.c.b16 %v1563, %v1563
  %v1692 = vpack.c.b16 %v1564, %v1564
  %v1693 = vpack.c.b16 %v1565, %v1565
  %v1694 = vpack.c.b16 %v1566, %v1566
  %v1695 = vpack.c.b16 %v1567, %v1567
  %v1696 = vpack.c.b16 %v1568, %v1568
  %v1697 = vpack.c.b16 %v1569, %v1569
  %v1698 = vpack.c.b16 %v1570, %v1570
  %v1699 = vpack.c.b16 %v1571, %v1571
  %v1700 = vpack.c.b16 %v1572, %v1572
  %v1701 = vpack.c.b16 %v1573, %v1573
  %v1702 = vpack.c.b16 %v1574, %v1574
  %v1703 = vpack.c.b16 %v1575, %v1575
  %v1704 = vpack.c.b16 %v1576, %v1576
  %v1705 = vpack.c.b16 %v1577, %v1577
  %v1706 = vpack.c.b16 %v1578, %v1578
  %v1707 = vpack.c.b16 %v1579, %v1579
  %v1708 = vpack.c.b16 %v1580, %v1580
  %v1709 = vpack.c.b16 %v1581, %v1581
  %v1710 = vpack.c.b16 %v1582, %v1582
  %v1711 = vpack.c.b16 %v1583, %v1583
  %v1712 = vpack.c.b16 %v1584, %v1584
  %v1713 = vpack.c.b16 %v1585, %v1585
  %v1714 = vpack.c.b16 %v1586, %v1586
  %v1715 = vpack.c.b16 %v1587, %v1587
  %v1716 = vpack.c.b16 %v1588, %v1588
  %v1717 = vpack.c.b16 %v1589, %v1589
  %v1718 = vpack.c.b16 %v1590, %v1590
  %v1719 = vpack.c.b16 %v1591, %v1591
  %v1720 = vpack.c.b16 %v1592, %v1592
  %v1721 = vpack.c.b16 %v1593, %v1593
  %v1722 = vpack.c.b16 %v1594, %v1594
  %v1723 = vpack.c.b16 %v1595, %v1595
  %v1724 = vpack.c.b16 %v1596, %v1596
  %v1725 = vpack.c.b16 %v1597, %v1597
  %v1726 = vpack.c.b16 %v1598, %v1598
  %v1727 = vpack.c.b16 %v1599, %v1599
  %vm1856 = vcmask 60416
  %1857 = vst.msk [vmem:[%s3] sm:$0xf] %vm1856, %v1600
  %1858 = vst.msk [vmem:[%s3 + $0x4] sm:$0xf] %vm1856, %v1601
  %1859 = vst.msk [vmem:[%s3 + $0x8] sm:$0xf] %vm1856, %v1602
  %1860 = vst.msk [vmem:[%s3 + $0xc] sm:$0xf] %vm1856, %v1603
  %1861 = vst.msk [vmem:[%s3 + $0x10] sm:$0xf] %vm1856, %v1604
  %1862 = vst.msk [vmem:[%s3 + $0x14] sm:$0xf] %vm1856, %v1605
  %1863 = vst.msk [vmem:[%s3 + $0x18] sm:$0xf] %vm1856, %v1606
  %1864 = vst.msk [vmem:[%s3 + $0x1c] sm:$0xf] %vm1856, %v1607
  %1865 = vst.msk [vmem:[%s3 + $0x20] sm:$0xf] %vm1856, %v1608
  %1866 = vst.msk [vmem:[%s3 + $0x24] sm:$0xf] %vm1856, %v1609
  %1867 = vst.msk [vmem:[%s3 + $0x28] sm:$0xf] %vm1856, %v1610
  %1868 = vst.msk [vmem:[%s3 + $0x2c] sm:$0xf] %vm1856, %v1611
  %1869 = vst.msk [vmem:[%s3 + $0x30] sm:$0xf] %vm1856, %v1612
  %1870 = vst.msk [vmem:[%s3 + $0x34] sm:$0xf] %vm1856, %v1613
  %1871 = vst.msk [vmem:[%s3 + $0x38] sm:$0xf] %vm1856, %v1614
  %1872 = vst.msk [vmem:[%s3 + $0x3c] sm:$0xf] %vm1856, %v1615
  %1873 = vst.msk [vmem:[%s3 + $0x40] sm:$0xf] %vm1856, %v1616
  %1874 = vst.msk [vmem:[%s3 + $0x44] sm:$0xf] %vm1856, %v1617
  %1875 = vst.msk [vmem:[%s3 + $0x48] sm:$0xf] %vm1856, %v1618
  %1876 = vst.msk [vmem:[%s3 + $0x4c] sm:$0xf] %vm1856, %v1619
  %1877 = vst.msk [vmem:[%s3 + $0x50] sm:$0xf] %vm1856, %v1620
  %1878 = vst.msk [vmem:[%s3 + $0x54] sm:$0xf] %vm1856, %v1621
  %1879 = vst.msk [vmem:[%s3 + $0x58] sm:$0xf] %vm1856, %v1622
  %1880 = vst.msk [vmem:[%s3 + $0x5c] sm:$0xf] %vm1856, %v1623
  %1881 = vst.msk [vmem:[%s3 + $0x60] sm:$0xf] %vm1856, %v1624
  %1882 = vst.msk [vmem:[%s3 + $0x64] sm:$0xf] %vm1856, %v1625
  %1883 = vst.msk [vmem:[%s3 + $0x68] sm:$0xf] %vm1856, %v1626
  %1884 = vst.msk [vmem:[%s3 + $0x6c] sm:$0xf] %vm1856, %v1627
  %1885 = vst.msk [vmem:[%s3 + $0x70] sm:$0xf] %vm1856, %v1628
  %1886 = vst.msk [vmem:[%s3 + $0x74] sm:$0xf] %vm1856, %v1629
  %1887 = vst.msk [vmem:[%s3 + $0x78] sm:$0xf] %vm1856, %v1630
  %1888 = vst.msk [vmem:[%s3 + $0x7c] sm:$0xf] %vm1856, %v1631
  %1889 = vst.msk [vmem:[%s3 + $0x80] sm:$0xf] %vm1856, %v1632
  %1890 = vst.msk [vmem:[%s3 + $0x84] sm:$0xf] %vm1856, %v1633
  %1891 = vst.msk [vmem:[%s3 + $0x88] sm:$0xf] %vm1856, %v1634
  %1892 = vst.msk [vmem:[%s3 + $0x8c] sm:$0xf] %vm1856, %v1635
  %1893 = vst.msk [vmem:[%s3 + $0x90] sm:$0xf] %vm1856, %v1636
  %1894 = vst.msk [vmem:[%s3 + $0x94] sm:$0xf] %vm1856, %v1637
  %1895 = vst.msk [vmem:[%s3 + $0x98] sm:$0xf] %vm1856, %v1638
  %1896 = vst.msk [vmem:[%s3 + $0x9c] sm:$0xf] %vm1856, %v1639
  %1897 = vst.msk [vmem:[%s3 + $0xa0] sm:$0xf] %vm1856, %v1640
  %1898 = vst.msk [vmem:[%s3 + $0xa4] sm:$0xf] %vm1856, %v1641
  %1899 = vst.msk [vmem:[%s3 + $0xa8] sm:$0xf] %vm1856, %v1642
  %1900 = vst.msk [vmem:[%s3 + $0xac] sm:$0xf] %vm1856, %v1643
  %1901 = vst.msk [vmem:[%s3 + $0xb0] sm:$0xf] %vm1856, %v1644
  %1902 = vst.msk [vmem:[%s3 + $0xb4] sm:$0xf] %vm1856, %v1645
  %1903 = vst.msk [vmem:[%s3 + $0xb8] sm:$0xf] %vm1856, %v1646
  %1904 = vst.msk [vmem:[%s3 + $0xbc] sm:$0xf] %vm1856, %v1647
  %1905 = vst.msk [vmem:[%s3 + $0xc0] sm:$0xf] %vm1856, %v1648
  %1906 = vst.msk [vmem:[%s3 + $0xc4] sm:$0xf] %vm1856, %v1649
  %1907 = vst.msk [vmem:[%s3 + $0xc8] sm:$0xf] %vm1856, %v1650
  %1908 = vst.msk [vmem:[%s3 + $0xcc] sm:$0xf] %vm1856, %v1651
  %1909 = vst.msk [vmem:[%s3 + $0xd0] sm:$0xf] %vm1856, %v1652
  %1910 = vst.msk [vmem:[%s3 + $0xd4] sm:$0xf] %vm1856, %v1653
  %1911 = vst.msk [vmem:[%s3 + $0xd8] sm:$0xf] %vm1856, %v1654
  %1912 = vst.msk [vmem:[%s3 + $0xdc] sm:$0xf] %vm1856, %v1655
  %1913 = vst.msk [vmem:[%s3 + $0xe0] sm:$0xf] %vm1856, %v1656
  %1914 = vst.msk [vmem:[%s3 + $0xe4] sm:$0xf] %vm1856, %v1657
  %1915 = vst.msk [vmem:[%s3 + $0xe8] sm:$0xf] %vm1856, %v1658
  %1916 = vst.msk [vmem:[%s3 + $0xec] sm:$0xf] %vm1856, %v1659
  %1917 = vst.msk [vmem:[%s3 + $0xf0] sm:$0xf] %vm1856, %v1660
  %1918 = vst.msk [vmem:[%s3 + $0xf4] sm:$0xf] %vm1856, %v1661
  %1919 = vst.msk [vmem:[%s3 + $0xf8] sm:$0xf] %vm1856, %v1662
  %1920 = vst.msk [vmem:[%s3 + $0xfc] sm:$0xf] %vm1856, %v1663
  %1921 = vst.msk [vmem:[%s3 + $0x100] sm:$0xf] %vm1856, %v1664
  %1922 = vst.msk [vmem:[%s3 + $0x104] sm:$0xf] %vm1856, %v1665
  %1923 = vst.msk [vmem:[%s3 + $0x108] sm:$0xf] %vm1856, %v1666
  %1924 = vst.msk [vmem:[%s3 + $0x10c] sm:$0xf] %vm1856, %v1667
  %1925 = vst.msk [vmem:[%s3 + $0x110] sm:$0xf] %vm1856, %v1668
  %1926 = vst.msk [vmem:[%s3 + $0x114] sm:$0xf] %vm1856, %v1669
  %1927 = vst.msk [vmem:[%s3 + $0x118] sm:$0xf] %vm1856, %v1670
  %1928 = vst.msk [vmem:[%s3 + $0x11c] sm:$0xf] %vm1856, %v1671
  %1929 = vst.msk [vmem:[%s3 + $0x120] sm:$0xf] %vm1856, %v1672
  %1930 = vst.msk [vmem:[%s3 + $0x124] sm:$0xf] %vm1856, %v1673
  %1931 = vst.msk [vmem:[%s3 + $0x128] sm:$0xf] %vm1856, %v1674
  %1932 = vst.msk [vmem:[%s3 + $0x12c] sm:$0xf] %vm1856, %v1675
  %1933 = vst.msk [vmem:[%s3 + $0x130] sm:$0xf] %vm1856, %v1676
  %1934 = vst.msk [vmem:[%s3 + $0x134] sm:$0xf] %vm1856, %v1677
  %1935 = vst.msk [vmem:[%s3 + $0x138] sm:$0xf] %vm1856, %v1678
  %1936 = vst.msk [vmem:[%s3 + $0x13c] sm:$0xf] %vm1856, %v1679
  %1937 = vst.msk [vmem:[%s3 + $0x140] sm:$0xf] %vm1856, %v1680
  %1938 = vst.msk [vmem:[%s3 + $0x144] sm:$0xf] %vm1856, %v1681
  %1939 = vst.msk [vmem:[%s3 + $0x148] sm:$0xf] %vm1856, %v1682
  %1940 = vst.msk [vmem:[%s3 + $0x14c] sm:$0xf] %vm1856, %v1683
  %1941 = vst.msk [vmem:[%s3 + $0x150] sm:$0xf] %vm1856, %v1684
  %1942 = vst.msk [vmem:[%s3 + $0x154] sm:$0xf] %vm1856, %v1685
  %1943 = vst.msk [vmem:[%s3 + $0x158] sm:$0xf] %vm1856, %v1686
  %1944 = vst.msk [vmem:[%s3 + $0x15c] sm:$0xf] %vm1856, %v1687
  %1945 = vst.msk [vmem:[%s3 + $0x160] sm:$0xf] %vm1856, %v1688
  %1946 = vst.msk [vmem:[%s3 + $0x164] sm:$0xf] %vm1856, %v1689
  %1947 = vst.msk [vmem:[%s3 + $0x168] sm:$0xf] %vm1856, %v1690
  %1948 = vst.msk [vmem:[%s3 + $0x16c] sm:$0xf] %vm1856, %v1691
  %1949 = vst.msk [vmem:[%s3 + $0x170] sm:$0xf] %vm1856, %v1692
  %1950 = vst.msk [vmem:[%s3 + $0x174] sm:$0xf] %vm1856, %v1693
  %1951 = vst.msk [vmem:[%s3 + $0x178] sm:$0xf] %vm1856, %v1694
  %1952 = vst.msk [vmem:[%s3 + $0x17c] sm:$0xf] %vm1856, %v1695
  %1953 = vst.msk [vmem:[%s3 + $0x180] sm:$0xf] %vm1856, %v1696
  %1954 = vst.msk [vmem:[%s3 + $0x184] sm:$0xf] %vm1856, %v1697
  %1955 = vst.msk [vmem:[%s3 + $0x188] sm:$0xf] %vm1856, %v1698
  %1956 = vst.msk [vmem:[%s3 + $0x18c] sm:$0xf] %vm1856, %v1699
  %1957 = vst.msk [vmem:[%s3 + $0x190] sm:$0xf] %vm1856, %v1700
  %1958 = vst.msk [vmem:[%s3 + $0x194] sm:$0xf] %vm1856, %v1701
  %1959 = vst.msk [vmem:[%s3 + $0x198] sm:$0xf] %vm1856, %v1702
  %1960 = vst.msk [vmem:[%s3 + $0x19c] sm:$0xf] %vm1856, %v1703
  %1961 = vst.msk [vmem:[%s3 + $0x1a0] sm:$0xf] %vm1856, %v1704
  %1962 = vst.msk [vmem:[%s3 + $0x1a4] sm:$0xf] %vm1856, %v1705
  %1963 = vst.msk [vmem:[%s3 + $0x1a8] sm:$0xf] %vm1856, %v1706
  %1964 = vst.msk [vmem:[%s3 + $0x1ac] sm:$0xf] %vm1856, %v1707
  %1965 = vst.msk [vmem:[%s3 + $0x1b0] sm:$0xf] %vm1856, %v1708
  %1966 = vst.msk [vmem:[%s3 + $0x1b4] sm:$0xf] %vm1856, %v1709
  %1967 = vst.msk [vmem:[%s3 + $0x1b8] sm:$0xf] %vm1856, %v1710
  %1968 = vst.msk [vmem:[%s3 + $0x1bc] sm:$0xf] %vm1856, %v1711
  %1969 = vst.msk [vmem:[%s3 + $0x1c0] sm:$0xf] %vm1856, %v1712
  %1970 = vst.msk [vmem:[%s3 + $0x1c4] sm:$0xf] %vm1856, %v1713
  %1971 = vst.msk [vmem:[%s3 + $0x1c8] sm:$0xf] %vm1856, %v1714
  %1972 = vst.msk [vmem:[%s3 + $0x1cc] sm:$0xf] %vm1856, %v1715
  %1973 = vst.msk [vmem:[%s3 + $0x1d0] sm:$0xf] %vm1856, %v1716
  %1974 = vst.msk [vmem:[%s3 + $0x1d4] sm:$0xf] %vm1856, %v1717
  %1975 = vst.msk [vmem:[%s3 + $0x1d8] sm:$0xf] %vm1856, %v1718
  %1976 = vst.msk [vmem:[%s3 + $0x1dc] sm:$0xf] %vm1856, %v1719
  %1977 = vst.msk [vmem:[%s3 + $0x1e0] sm:$0xf] %vm1856, %v1720
  %1978 = vst.msk [vmem:[%s3 + $0x1e4] sm:$0xf] %vm1856, %v1721
  %1979 = vst.msk [vmem:[%s3 + $0x1e8] sm:$0xf] %vm1856, %v1722
  %1980 = vst.msk [vmem:[%s3 + $0x1ec] sm:$0xf] %vm1856, %v1723
  %1981 = vst.msk [vmem:[%s3 + $0x1f0] sm:$0xf] %vm1856, %v1724
  %1982 = vst.msk [vmem:[%s3 + $0x1f4] sm:$0xf] %vm1856, %v1725
  %1983 = vst.msk [vmem:[%s3 + $0x1f8] sm:$0xf] %vm1856, %v1726
  %1984 = vst.msk [vmem:[%s3 + $0x1fc] sm:$0xf] %vm1856, %v1727
  // Predicated region
  $region14: #{spatio_temporal_res_block.3} parent=0 // pred_check
    _
  $region15: #{spatio_temporal_res_block.3} parent=0 // pred_check_branch
    %1986 = sbr.rel (0) target = $region17
  $region16: #{spatio_temporal_res_block.3} parent=0 // pred_region
    _
  $region17: #{spatio_temporal_res_block.3} parent=0 // pred_fallthru
    _
  // Predicated region
  $region18: #{spatio_temporal_res_block.3} parent=0 // pred_check
    _
  $region19: #{spatio_temporal_res_block.3} parent=0 // pred_check_branch
    %1988 = sbr.rel (0) target = $region21
  $region20: #{spatio_temporal_res_block.3} parent=0 // pred_region
    _
  $region21: #{spatio_temporal_res_block.3} parent=0 // pred_fallthru
    _

// kernel: spatio_temporal_res_block.5
$region0: #{spatio_temporal_res_block.5}
  #allocation0 [shape = 'u32[]', space=smem, size = 0x4, offset = 0x4, fixed_abs, tag = 'smem constant byte address 0x4 - core index']
  #allocation1 [shape = 'u32[144,128]{1,0:T(1,128)}', space=vmem, size = 0x12000, scoped, tag = 'internal scratch']
  #allocation2 [shape = 'bf16[110,24]{1,0:T(8,128)(2,1)}', space=vmem, size = 0x7000, scoped, tag = 'scratch operand']
  %s0 = inlined_call_operand.vmem [shape: bf16[2,8,8,8,8], index: 0, kind: input, shape index: {}, may-alias: {0,1,2}]
  %s1 = inlined_call_operand.vmem [shape: bf16[2,8,8,8,8], index: 1, kind: input, shape index: {}, may-alias: {0,1,2}]
  %s2 = inlined_call_operand.vmem [shape: bf16[2,8,8,8,8], index: 2, kind: input, shape index: {}, may-alias: {0,1,2}]
  %s3 = inlined_call_operand.vmem [shape: bf16[9,24,8], index: 3, kind: input, shape index: {}]
  %s4 = inlined_call_operand.vmem [shape: f32[2,8], index: 4, kind: input, shape index: {}]
  %s5 = inlined_call_operand.vmem [shape: bf16[8,8], index: 5, kind: input, shape index: {}]
  %s6 = inlined_call_operand.vmem [shape: f32[2,8], index: 6, kind: input, shape index: {}]
  %s7 = inlined_call_operand.vmem [shape: bf16[2,8,8,8,8], index: 7, kind: input, shape index: {}]
  %s8 = inlined_call_operand.vmem [shape: f32[2,8,8,8,8], index: 8, kind: output, shape index: {}]
  %s9 = sld [smem:[#allocation0]]
  $region81: #{spatio_temporal_res_block.5} parent=0
    _
  %s11 = ssub.s32 1, %s9
  %s12 = scalar_select 0, %s11, %s9
  loop: start=0, step=1, limit=18
  $region2: #{spatio_temporal_res_block.5} parent=0 // loop_pre_header
    _
  $region3: #{spatio_temporal_res_block.5} parent=0 // loop_header
    %s14 = sphi 0, %s18
    %p15 = scmp.ge.s32.totalorder %s14, 18
    %s21 = sphi 0, %s33
    %s22 = sphi 0, %s29
    %s23 = sphi 0, %s21
    %s24 = sphi 0, %s22
    %s25 = sphi 0, %s23
    %s26 = sphi 0, %s24
    %s44 = sphi 0, %s46
    %s47 = sphi 0, %s44
    %s48 = sphi 0, %s47
    %s64 = sphi 0, %s48
    %s72 = sphi 0, %s74
    %s75 = sphi 0, %s72
    %s76 = sphi 0, %s75
    %s92 = sphi 0, %s76
    %s106 = sphi 0, %s108
    %s109 = sphi 0, %s106
    %s110 = sphi 0, %s109
    %s126 = sphi 0, %s110
    %s130 = sphi 0, %s130
    %s132 = sphi 0, %s130
    %s133 = sphi 0, %s132
    %s147 = sphi 0, %s133
    %s151 = sphi 0, %s151
    %s153 = sphi 0, %s151
    %s154 = sphi 0, %s153
    %s168 = sphi 0, %s154
    %s172 = sphi 0, %s172
    %s174 = sphi 0, %s172
    %s175 = sphi 0, %s174
    %s189 = sphi 0, %s175
    %s193 = sphi 0, %s193
    %s195 = sphi 0, %s193
    %s196 = sphi 0, %s195
    %s210 = sphi 0, %s196
    %s218 = sphi 0, %s220
    %s221 = sphi 0, %s218
    %s222 = sphi 0, %s221
    %s238 = sphi 0, %s222
    %s246 = sphi 0, %s248
    %s249 = sphi 0, %s246
    %s250 = sphi 0, %s249
    %s266 = sphi 0, %s250
  $region4: #{spatio_temporal_res_block.5} parent=0 // loop_header_branch
    %17 = sbr.rel (%p15) target = $region8
  $region5: #{spatio_temporal_res_block.5} parent=0 // loop_body
    %s19 = ssub.s32 %s14, 1
    %s20 = ssub.s32 %s14, 2
    %s27 = sadd.s32 1, %s22
    %p28 = scmp.ge.s32.totalorder %s27, 8
    %s29 = scalar_select %p28, 0, %s27
    %s30 = sadd.s32 1, %s21
    %s31 = scalar_select %p28, %s30, %s21
    %p32 = scmp.ge.s32.totalorder %s31, 2
    %s33 = scalar_select %p32, 0, %s31
    %s34 = ssub.s32 %s22, 1
    %p35 = scmp.gt.s32.totalorder %s34, 0
    %s36 = scalar_select %p35, %s34, 0
    %s37 = ssub.s32 %s29, 1
    %p38 = scmp.gt.s32.totalorder %s37, 0
    %s39 = scalar_select %p38, %s37, 0
    %s40 = ssub.s32 %s21, %s33
    %s41 = ssub.s32 %s36, %s39
    %s42 = sor.u32 %s40, %s41
    %p43 = scmp.eq.s32.totalorder %s42, 0
    %s45 = sadd.s32 %s44, 1
    %s46 = scalar_select %p43, %s44, %s45
    %p49 = pneg %p43
    %p50 = scmp.eq.s32.totalorder %s14, 15
    %p51 = por %p49, %p50
    %p52 = scmp.ne.s32.totalorder %s44, %s47
    %p53 = scmp.eq.s32.totalorder %s14, 0
    %p54 = por %p52, %p53
    %p55 = scmp.ne.s32.totalorder %s44, %s47
    %p56 = scmp.eq.s32.totalorder %s19, 15
    %p57 = por %p55, %p56
    %p58 = scmp.ne.s32.totalorder %s47, %s48
    %p59 = scmp.eq.s32.totalorder %s19, 0
    %p60 = por %p58, %p59
    %p61 = scmp.ne.s32.totalorder %s47, %s48
    %p62 = scmp.eq.s32.totalorder %s20, 15
    %p63 = por %p61, %p62
    %p65 = scmp.ne.s32.totalorder %s48, %s64
    %p66 = scmp.eq.s32.totalorder %s20, 0
    %p67 = por %p65, %p66
    %s68 = ssub.s32 %s21, %s33
    %s69 = ssub.s32 %s22, %s29
    %s70 = sor.u32 %s68, %s69
    %p71 = scmp.eq.s32.totalorder %s70, 0
    %s73 = sadd.s32 %s72, 1
    %s74 = scalar_select %p71, %s72, %s73
    %p77 = pneg %p71
    %p78 = scmp.eq.s32.totalorder %s14, 15
    %p79 = por %p77, %p78
    %p80 = scmp.ne.s32.totalorder %s72, %s75
    %p81 = scmp.eq.s32.totalorder %s14, 0
    %p82 = por %p80, %p81
    %p83 = scmp.ne.s32.totalorder %s72, %s75
    %p84 = scmp.eq.s32.totalorder %s19, 15
    %p85 = por %p83, %p84
    %p86 = scmp.ne.s32.totalorder %s75, %s76
    %p87 = scmp.eq.s32.totalorder %s19, 0
    %p88 = por %p86, %p87
    %p89 = scmp.ne.s32.totalorder %s75, %s76
    %p90 = scmp.eq.s32.totalorder %s20, 15
    %p91 = por %p89, %p90
    %p93 = scmp.ne.s32.totalorder %s76, %s92
    %p94 = scmp.eq.s32.totalorder %s20, 0
    %p95 = por %p93, %p94
    %s96 = sadd.s32 %s22, 1
    %p97 = scmp.lt.s32.totalorder %s96, 7
    %s98 = scalar_select %p97, %s96, 7
    %s99 = sadd.s32 %s29, 1
    %p100 = scmp.lt.s32.totalorder %s99, 7
    %s101 = scalar_select %p100, %s99, 7
    %s102 = ssub.s32 %s21, %s33
    %s103 = ssub.s32 %s98, %s101
    %s104 = sor.u32 %s102, %s103
    %p105 = scmp.eq.s32.totalorder %s104, 0
    %s107 = sadd.s32 %s106, 1
    %s108 = scalar_select %p105, %s106, %s107
    %p111 = pneg %p105
    %p112 = scmp.eq.s32.totalorder %s14, 15
    %p113 = por %p111, %p112
    %p114 = scmp.ne.s32.totalorder %s106, %s109
    %p115 = scmp.eq.s32.totalorder %s14, 0
    %p116 = por %p114, %p115
    %p117 = scmp.ne.s32.totalorder %s106, %s109
    %p118 = scmp.eq.s32.totalorder %s19, 15
    %p119 = por %p117, %p118
    %p120 = scmp.ne.s32.totalorder %s109, %s110
    %p121 = scmp.eq.s32.totalorder %s19, 0
    %p122 = por %p120, %p121
    %p123 = scmp.ne.s32.totalorder %s109, %s110
    %p124 = scmp.eq.s32.totalorder %s20, 15
    %p125 = por %p123, %p124
    %p127 = scmp.ne.s32.totalorder %s110, %s126
    %p128 = scmp.eq.s32.totalorder %s20, 0
    %p129 = por %p127, %p128
    %s131 = sadd.s32 %s130, 1
    %p134 = scmp.eq.s32.totalorder %s14, 15
    %p135 = scmp.ne.s32.totalorder %s130, %s132
    %p136 = scmp.eq.s32.totalorder %s14, 0
    %p137 = por %p135, %p136
    %p138 = scmp.ne.s32.totalorder %s130, %s132
    %p139 = scmp.eq.s32.totalorder %s19, 15
    %p140 = por %p138, %p139
    %p141 = scmp.ne.s32.totalorder %s132, %s133
    %p142 = scmp.eq.s32.totalorder %s19, 0
    %p143 = por %p141, %p142
    %p144 = scmp.ne.s32.totalorder %s132, %s133
    %p145 = scmp.eq.s32.totalorder %s20, 15
    %p146 = por %p144, %p145
    %p148 = scmp.ne.s32.totalorder %s133, %s147
    %p149 = scmp.eq.s32.totalorder %s20, 0
    %p150 = por %p148, %p149
    %s152 = sadd.s32 %s151, 1
    %p155 = scmp.eq.s32.totalorder %s14, 15
    %p156 = scmp.ne.s32.totalorder %s151, %s153
    %p157 = scmp.eq.s32.totalorder %s14, 0
    %p158 = por %p156, %p157
    %p159 = scmp.ne.s32.totalorder %s151, %s153
    %p160 = scmp.eq.s32.totalorder %s19, 15
    %p161 = por %p159, %p160
    %p162 = scmp.ne.s32.totalorder %s153, %s154
    %p163 = scmp.eq.s32.totalorder %s19, 0
    %p164 = por %p162, %p163
    %p165 = scmp.ne.s32.totalorder %s153, %s154
    %p166 = scmp.eq.s32.totalorder %s20, 15
    %p167 = por %p165, %p166
    %p169 = scmp.ne.s32.totalorder %s154, %s168
    %p170 = scmp.eq.s32.totalorder %s20, 0
    %p171 = por %p169, %p170
    %s173 = sadd.s32 %s172, 1
    %p176 = scmp.eq.s32.totalorder %s14, 15
    %p177 = scmp.ne.s32.totalorder %s172, %s174
    %p178 = scmp.eq.s32.totalorder %s14, 0
    %p179 = por %p177, %p178
    %p180 = scmp.ne.s32.totalorder %s172, %s174
    %p181 = scmp.eq.s32.totalorder %s19, 15
    %p182 = por %p180, %p181
    %p183 = scmp.ne.s32.totalorder %s174, %s175
    %p184 = scmp.eq.s32.totalorder %s19, 0
    %p185 = por %p183, %p184
    %p186 = scmp.ne.s32.totalorder %s174, %s175
    %p187 = scmp.eq.s32.totalorder %s20, 15
    %p188 = por %p186, %p187
    %p190 = scmp.ne.s32.totalorder %s175, %s189
    %p191 = scmp.eq.s32.totalorder %s20, 0
    %p192 = por %p190, %p191
    %s194 = sadd.s32 %s193, 1
    %p197 = scmp.eq.s32.totalorder %s14, 15
    %p198 = scmp.ne.s32.totalorder %s193, %s195
    %p199 = scmp.eq.s32.totalorder %s14, 0
    %p200 = por %p198, %p199
    %p201 = scmp.ne.s32.totalorder %s193, %s195
    %p202 = scmp.eq.s32.totalorder %s19, 15
    %p203 = por %p201, %p202
    %p204 = scmp.ne.s32.totalorder %s195, %s196
    %p205 = scmp.eq.s32.totalorder %s19, 0
    %p206 = por %p204, %p205
    %p207 = scmp.ne.s32.totalorder %s195, %s196
    %p208 = scmp.eq.s32.totalorder %s20, 15
    %p209 = por %p207, %p208
    %p211 = scmp.ne.s32.totalorder %s196, %s210
    %p212 = scmp.eq.s32.totalorder %s20, 0
    %p213 = por %p211, %p212
    %s214 = ssub.s32 %s21, %s33
    %s215 = ssub.s32 %s22, %s29
    %s216 = sor.u32 %s214, %s215
    %p217 = scmp.eq.s32.totalorder %s216, 0
    %s219 = sadd.s32 %s218, 1
    %s220 = scalar_select %p217, %s218, %s219
    %p223 = pneg %p217
    %p224 = scmp.eq.s32.totalorder %s14, 15
    %p225 = por %p223, %p224
    %p226 = scmp.ne.s32.totalorder %s218, %s221
    %p227 = scmp.eq.s32.totalorder %s14, 0
    %p228 = por %p226, %p227
    %p229 = scmp.ne.s32.totalorder %s218, %s221
    %p230 = scmp.eq.s32.totalorder %s19, 15
    %p231 = por %p229, %p230
    %p232 = scmp.ne.s32.totalorder %s221, %s222
    %p233 = scmp.eq.s32.totalorder %s19, 0
    %p234 = por %p232, %p233
    %p235 = scmp.ne.s32.totalorder %s221, %s222
    %p236 = scmp.eq.s32.totalorder %s20, 15
    %p237 = por %p235, %p236
    %p239 = scmp.ne.s32.totalorder %s222, %s238
    %p240 = scmp.eq.s32.totalorder %s20, 0
    %p241 = por %p239, %p240
    %s242 = ssub.s32 %s21, %s33
    %s243 = ssub.s32 %s22, %s29
    %s244 = sor.u32 %s242, %s243
    %p245 = scmp.eq.s32.totalorder %s244, 0
    %s247 = sadd.s32 %s246, 1
    %s248 = scalar_select %p245, %s246, %s247
    %p251 = pneg %p245
    %p252 = scmp.eq.s32.totalorder %s14, 15
    %p253 = por %p251, %p252
    %p254 = scmp.ne.s32.totalorder %s246, %s249
    %p255 = scmp.eq.s32.totalorder %s14, 0
    %p256 = por %p254, %p255
    %p257 = scmp.ne.s32.totalorder %s246, %s249
    %p258 = scmp.eq.s32.totalorder %s19, 15
    %p259 = por %p257, %p258
    %p260 = scmp.ne.s32.totalorder %s249, %s250
    %p261 = scmp.eq.s32.totalorder %s19, 0
    %p262 = por %p260, %p261
    %p263 = scmp.ne.s32.totalorder %s249, %s250
    %p264 = scmp.eq.s32.totalorder %s20, 15
    %p265 = por %p263, %p264
    %p267 = scmp.ne.s32.totalorder %s250, %s266
    %p268 = scmp.eq.s32.totalorder %s20, 0
    %p269 = por %p267, %p268
    %p270 = scmp.le.s32.totalorder 1, %s14
    %p271 = scmp.lt.s32.totalorder %s14, 17
    %p272 = pnand %p270, %p271
    %p273 = pneg %p272
    // Predicated region
    $region9: #{spatio_temporal_res_block.5} parent=5 // pred_check
      _
    $region10: #{spatio_temporal_res_block.5} parent=5 // pred_check_branch
      %275 = sbr.rel (%p272) target = $region12
    $region11: #{spatio_temporal_res_block.5} parent=5 // pred_region
      %s276 = ssub.s32 %s14, 1
      // Predicated region
      $region13: #{spatio_temporal_res_block.5} parent=11 // pred_check
        %p277 = pneg %p143
      $region14: #{spatio_temporal_res_block.5} parent=11 // pred_check_branch
        %279 = sbr.rel (%p277) target = $region16
      $region15: #{spatio_temporal_res_block.5} parent=11 // pred_region
        _
      $region16: #{spatio_temporal_res_block.5} parent=11 // pred_fallthru
        _
      // Predicated region
      $region17: #{spatio_temporal_res_block.5} parent=11 // pred_check
        %p280 = pneg %p164
      $region18: #{spatio_temporal_res_block.5} parent=11 // pred_check_branch
        %282 = sbr.rel (%p280) target = $region20
      $region19: #{spatio_temporal_res_block.5} parent=11 // pred_region
        _
      $region20: #{spatio_temporal_res_block.5} parent=11 // pred_fallthru
        _
      // Predicated region
      $region21: #{spatio_temporal_res_block.5} parent=11 // pred_check
        %p283 = pneg %p185
      $region22: #{spatio_temporal_res_block.5} parent=11 // pred_check_branch
        %285 = sbr.rel (%p283) target = $region24
      $region23: #{spatio_temporal_res_block.5} parent=11 // pred_region
        _
      $region24: #{spatio_temporal_res_block.5} parent=11 // pred_fallthru
        _
      // Predicated region
      $region25: #{spatio_temporal_res_block.5} parent=11 // pred_check
        %p286 = pneg %p206
      $region26: #{spatio_temporal_res_block.5} parent=11 // pred_check_branch
        %288 = sbr.rel (%p286) target = $region28
      $region27: #{spatio_temporal_res_block.5} parent=11 // pred_region
        _
      $region28: #{spatio_temporal_res_block.5} parent=11 // pred_fallthru
        _
    $region12: #{spatio_temporal_res_block.5} parent=5 // pred_fallthru
      _
    %p289 = scmp.lt.s32.totalorder %s14, 16
    // Predicated region
    $region29: #{spatio_temporal_res_block.5} parent=5 // pred_check
      %p290 = pneg %p289
    $region30: #{spatio_temporal_res_block.5} parent=5 // pred_check_branch
      %292 = sbr.rel (%p290) target = $region32
    $region31: #{spatio_temporal_res_block.5} parent=5 // pred_region
      // Predicated region
      $region33: #{spatio_temporal_res_block.5} parent=31 // pred_check
        %p293 = pneg %p54
      $region34: #{spatio_temporal_res_block.5} parent=31 // pred_check_branch
        %295 = sbr.rel (%p293) target = $region36
      $region35: #{spatio_temporal_res_block.5} parent=31 // pred_region
        %s296 = ssub.s32 %s22, 1
        %p297 = scmp.gt.s32.totalorder %s296, 0
        %s298 = scalar_select %p297, %s296, 0
        %p299 = scmp.lt.s32.totalorder %s21, 1
        %s300 = scalar_select %p299, %s21, 1
        %p301 = scmp.lt.s32.totalorder %s298, 7
        %s302 = scalar_select %p301, %s298, 7
        %s303 = smul.addr %s302, 8
        %s304 = smul.addr %s300, 64
        %s305 = sadd.s32 %s303, %s304
        %s306 = smul.addr %s305, 4
        %s307 = scalar_lea.vmem %s0, %s306
        %s308 = ssub.s32 %s22, 1
        %p309 = scmp.gt.s32.totalorder %s308, 0
        %s310 = scalar_select %p309, %s308, 0
      $region36: #{spatio_temporal_res_block.5} parent=31 // pred_fallthru
        _
      // Predicated region
      $region37: #{spatio_temporal_res_block.5} parent=31 // pred_check
        %p311 = pneg %p82
      $region38: #{spatio_temporal_res_block.5} parent=31 // pred_check_branch
        %313 = sbr.rel (%p311) target = $region40
      $region39: #{spatio_temporal_res_block.5} parent=31 // pred_region
        %p314 = scmp.lt.s32.totalorder %s21, 1
        %s315 = scalar_select %p314, %s21, 1
        %p316 = scmp.lt.s32.totalorder %s22, 7
        %s317 = scalar_select %p316, %s22, 7
        %s318 = smul.addr %s317, 8
        %s319 = smul.addr %s315, 64
        %s320 = sadd.s32 %s318, %s319
        %s321 = smul.addr %s320, 4
        %s322 = scalar_lea.vmem %s1, %s321
      $region40: #{spatio_temporal_res_block.5} parent=31 // pred_fallthru
        _
      // Predicated region
      $region41: #{spatio_temporal_res_block.5} parent=31 // pred_check
        %p323 = pneg %p116
      $region42: #{spatio_temporal_res_block.5} parent=31 // pred_check_branch
        %325 = sbr.rel (%p323) target = $region44
      $region43: #{spatio_temporal_res_block.5} parent=31 // pred_region
        %s326 = sadd.s32 %s22, 1
        %p327 = scmp.lt.s32.totalorder %s326, 7
        %s328 = scalar_select %p327, %s326, 7
        %p329 = scmp.lt.s32.totalorder %s21, 1
        %s330 = scalar_select %p329, %s21, 1
        %p331 = scmp.lt.s32.totalorder %s328, 7
        %s332 = scalar_select %p331, %s328, 7
        %s333 = smul.addr %s332, 8
        %s334 = smul.addr %s330, 64
        %s335 = sadd.s32 %s333, %s334
        %s336 = smul.addr %s335, 4
        %s337 = scalar_lea.vmem %s2, %s336
        %s338 = sadd.s32 %s22, 1
        %p339 = scmp.lt.s32.totalorder %s338, 7
        %s340 = scalar_select %p339, %s338, 7
      $region44: #{spatio_temporal_res_block.5} parent=31 // pred_fallthru
        _
      // Predicated region
      $region45: #{spatio_temporal_res_block.5} parent=31 // pred_check
        %p341 = pneg %p228
      $region46: #{spatio_temporal_res_block.5} parent=31 // pred_check_branch
        %343 = sbr.rel (%p341) target = $region48
      $region47: #{spatio_temporal_res_block.5} parent=31 // pred_region
        %p344 = scmp.lt.s32.totalorder %s21, 1
        %s345 = scalar_select %p344, %s21, 1
        %p346 = scmp.lt.s32.totalorder %s22, 7
        %s347 = scalar_select %p346, %s22, 7
        %s348 = smul.addr %s347, 8
        %s349 = smul.addr %s345, 64
        %s350 = sadd.s32 %s348, %s349
        %s351 = smul.addr %s350, 4
        %s352 = scalar_lea.vmem %s7, %s351
      $region48: #{spatio_temporal_res_block.5} parent=31 // pred_fallthru
        _
    $region32: #{spatio_temporal_res_block.5} parent=5 // pred_fallthru
      _
    %p353 = scmp.le.s32.totalorder 1, %s14
    %p354 = scmp.lt.s32.totalorder %s14, 17
    %p355 = pnand %p353, %p354
    %p356 = pneg %p355
    // Predicated region
    $region49: #{spatio_temporal_res_block.5} parent=5 // pred_check
      _
    $region50: #{spatio_temporal_res_block.5} parent=5 // pred_check_branch
      %358 = sbr.rel (%p355) target = $region52
    $region51: #{spatio_temporal_res_block.5} parent=5 // pred_region
      %s359 = ssub.s32 %s14, 1
      %s360 = ssub.s32 %s24, 1
      %p361 = scmp.gt.s32.totalorder %s360, 0
      %s362 = scalar_select %p361, %s360, 0
      %p363 = scmp.lt.s32.totalorder %s23, 1
      %s364 = scalar_select %p363, %s23, 1
      %p365 = scmp.lt.s32.totalorder %s362, 7
      %s366 = scalar_select %p365, %s362, 7
      %s367 = smul.addr %s366, 8
      %s368 = smul.addr %s364, 64
      %s369 = sadd.s32 %s367, %s368
      %s370 = smul.addr %s369, 4
      %s371 = scalar_lea.vmem %s0, %s370
      %p372 = pneg %p60
      %p373 = pneg %p57
      %p374 = scmp.lt.s32.totalorder %s23, 1
      %s375 = scalar_select %p374, %s23, 1
      %p376 = scmp.lt.s32.totalorder %s24, 7
      %s377 = scalar_select %p376, %s24, 7
      %s378 = smul.addr %s377, 8
      %s379 = smul.addr %s375, 64
      %s380 = sadd.s32 %s378, %s379
      %s381 = smul.addr %s380, 4
      %s382 = scalar_lea.vmem %s1, %s381
      %p383 = pneg %p88
      %p384 = pneg %p85
      %s385 = sadd.s32 %s24, 1
      %p386 = scmp.lt.s32.totalorder %s385, 7
      %s387 = scalar_select %p386, %s385, 7
      %p388 = scmp.lt.s32.totalorder %s23, 1
      %s389 = scalar_select %p388, %s23, 1
      %p390 = scmp.lt.s32.totalorder %s387, 7
      %s391 = scalar_select %p390, %s387, 7
      %s392 = smul.addr %s391, 8
      %s393 = smul.addr %s389, 64
      %s394 = sadd.s32 %s392, %s393
      %s395 = smul.addr %s394, 4
      %s396 = scalar_lea.vmem %s2, %s395
      %p397 = pneg %p122
      %p398 = pneg %p119
      %p399 = pneg %p143
      %p400 = pneg %p140
      %p401 = pneg %p164
      %p402 = pneg %p161
      %p403 = pneg %p185
      %p404 = pneg %p182
      %p405 = pneg %p206
      %p406 = pneg %p203
      %p407 = scmp.lt.s32.totalorder %s23, 1
      %s408 = scalar_select %p407, %s23, 1
      %p409 = scmp.lt.s32.totalorder %s24, 7
      %s410 = scalar_select %p409, %s24, 7
      %s411 = smul.addr %s410, 8
      %s412 = smul.addr %s408, 64
      %s413 = sadd.s32 %s411, %s412
      %s414 = smul.addr %s413, 4
      %s415 = scalar_lea.vmem %s7, %s414
      %p416 = pneg %p234
      %p417 = pneg %p231
      %p418 = pneg %p262
      %p419 = pneg %p259
      %p420 = scmp.lt.s32.totalorder %s23, 1
      %s421 = scalar_select %p420, %s23, 1
      %p422 = scmp.lt.s32.totalorder %s24, 7
      %s423 = scalar_select %p422, %s24, 7
      %s424 = smul.addr %s423, 8
      %s425 = smul.addr %s421, 64
      %s426 = sadd.s32 %s424, %s425
      %s427 = smul.addr %s426, 8
      %s428 = scalar_lea.vmem %s8, %s427
      %s429 = ssub.s32 %s24, 1
      %p430 = scmp.gt.s32.totalorder %s429, 0
      %s431 = scalar_select %p430, %s429, 0
      %p432 = scmp.lt.s32.totalorder %s23, 1
      %s433 = scalar_select %p432, %s23, 1
      %p434 = scmp.lt.s32.totalorder %s431, 7
      %s435 = scalar_select %p434, %s431, 7
      %s436 = smul.addr %s435, 8
      %s437 = smul.addr %s433, 64
      %s438 = sadd.s32 %s436, %s437
      %s439 = smul.addr %s438, 4
      %s440 = scalar_lea.vmem %s0, %s439
      %s441 = ssub.s32 %s24, 1
      %p442 = scmp.gt.s32.totalorder %s441, 0
      %s443 = scalar_select %p442, %s441, 0
      %p444 = scmp.lt.s32.totalorder %s23, 1
      %s445 = scalar_select %p444, %s23, 1
      %p446 = scmp.lt.s32.totalorder %s24, 7
      %s447 = scalar_select %p446, %s24, 7
      %s448 = smul.addr %s447, 8
      %s449 = smul.addr %s445, 64
      %s450 = sadd.s32 %s448, %s449
      %s451 = smul.addr %s450, 4
      %s452 = scalar_lea.vmem %s1, %s451
      %s453 = sadd.s32 %s24, 1
      %p454 = scmp.lt.s32.totalorder %s453, 7
      %s455 = scalar_select %p454, %s453, 7
      %p456 = scmp.lt.s32.totalorder %s23, 1
      %s457 = scalar_select %p456, %s23, 1
      %p458 = scmp.lt.s32.totalorder %s455, 7
      %s459 = scalar_select %p458, %s455, 7
      %s460 = smul.addr %s459, 8
      %s461 = smul.addr %s457, 64
      %s462 = sadd.s32 %s460, %s461
      %s463 = smul.addr %s462, 4
      %s464 = scalar_lea.vmem %s2, %s463
      %s465 = sadd.s32 %s24, 1
      %p466 = scmp.lt.s32.totalorder %s465, 7
      %s467 = scalar_select %p466, %s465, 7
      %p468 = scmp.lt.s32.totalorder %s23, 1
      %s469 = scalar_select %p468, %s23, 1
      %p470 = scmp.lt.s32.totalorder %s24, 7
      %s471 = scalar_select %p470, %s24, 7
      %s472 = smul.addr %s471, 8
      %s473 = smul.addr %s469, 64
      %s474 = sadd.s32 %s472, %s473
      %s475 = smul.addr %s474, 4
      %s476 = scalar_lea.vmem %s7, %s475
      %p477 = scmp.lt.s32.totalorder %s23, 1
      %s478 = scalar_select %p477, %s23, 1
      %p479 = scmp.lt.s32.totalorder %s24, 7
      %s480 = scalar_select %p479, %s24, 7
      %s481 = smul.addr %s480, 8
      %s482 = smul.addr %s478, 64
      %s483 = sadd.s32 %s481, %s482
      %s484 = smul.addr %s483, 8
      %s485 = scalar_lea.vmem %s8, %s484
      %p487 = scmp.eq.s32.totalorder %s24, 0
      // Predicated region
      $region53: #{spatio_temporal_res_block.5} parent=51 // pred_check
        %p488 = pneg %p487
      $region54: #{spatio_temporal_res_block.5} parent=51 // pred_check_branch
        %490 = sbr.rel (%p488) target = $region56
      $region55: #{spatio_temporal_res_block.5} parent=51 // pred_region
        %vm491 = vcmask 191488
        %492 = vst.msk [vmem:[#allocation2] sm:$0xf] %vm491, 0
        %493 = vst.msk [vmem:[#allocation2 + $0x4] sm:$0xf] %vm491, 0
        %494 = vst.msk [vmem:[#allocation2 + $0x8] sm:$0xf] %vm491, 0
        %495 = vst.msk [vmem:[#allocation2 + $0xc] sm:$0xf] %vm491, 0
        %496 = vst.msk [vmem:[#allocation2 + $0x10] sm:$0xf] %vm491, 0
        %497 = vst.msk [vmem:[#allocation2 + $0x14] sm:$0xf] %vm491, 0
        %498 = vst.msk [vmem:[#allocation2 + $0x18] sm:$0xf] %vm491, 0
        %499 = vst.msk [vmem:[#allocation2 + $0x1c] sm:$0xf] %vm491, 0
        %500 = vst.msk [vmem:[#allocation2 + $0x20] sm:$0xf] %vm491, 0
        %501 = vst.msk [vmem:[#allocation2 + $0x24] sm:$0xf] %vm491, 0
        %502 = vst.msk [vmem:[#allocation2 + $0x28] sm:$0xf] %vm491, 0
        %503 = vst.msk [vmem:[#allocation2 + $0x2c] sm:$0xf] %vm491, 0
        %504 = vst.msk [vmem:[#allocation2 + $0x30] sm:$0xf] %vm491, 0
        %vm505 = vcmask 190464
        %506 = vst.msk [vmem:[#allocation2 + $0x34] sm:$0x7] %vm505, 0
      $region56: #{spatio_temporal_res_block.5} parent=51 // pred_fallthru
        _
      %p507 = scmp.eq.s32.totalorder %s24, 7
      // Predicated region
      $region57: #{spatio_temporal_res_block.5} parent=51 // pred_check
        %p508 = pneg %p507
      $region58: #{spatio_temporal_res_block.5} parent=51 // pred_check_branch
        %510 = sbr.rel (%p508) target = $region60
      $region59: #{spatio_temporal_res_block.5} parent=51 // pred_region
        %vm511 = vcmask 191616
        %512 = vst.msk [vmem:[#allocation2] sm:$0xf] %vm511, 0
        %513 = vst.msk [vmem:[#allocation2 + $0x4] sm:$0xf] %vm511, 0
        %514 = vst.msk [vmem:[#allocation2 + $0x8] sm:$0xf] %vm511, 0
        %515 = vst.msk [vmem:[#allocation2 + $0xc] sm:$0xf] %vm511, 0
        %516 = vst.msk [vmem:[#allocation2 + $0x10] sm:$0xf] %vm511, 0
        %517 = vst.msk [vmem:[#allocation2 + $0x14] sm:$0xf] %vm511, 0
        %518 = vst.msk [vmem:[#allocation2 + $0x18] sm:$0xf] %vm511, 0
        %519 = vst.msk [vmem:[#allocation2 + $0x1c] sm:$0xf] %vm511, 0
        %520 = vst.msk [vmem:[#allocation2 + $0x20] sm:$0xf] %vm511, 0
        %521 = vst.msk [vmem:[#allocation2 + $0x24] sm:$0xf] %vm511, 0
        %522 = vst.msk [vmem:[#allocation2 + $0x28] sm:$0xf] %vm511, 0
        %523 = vst.msk [vmem:[#allocation2 + $0x2c] sm:$0xf] %vm511, 0
        %524 = vst.msk [vmem:[#allocation2 + $0x30] sm:$0xf] %vm511, 0
        %vm525 = vcmask 190592
        %526 = vst.msk [vmem:[#allocation2 + $0x34] sm:$0x7] %vm525, 0
      $region60: #{spatio_temporal_res_block.5} parent=51 // pred_fallthru
        _
      %p527 = scmp.gt.s32.totalorder %s24, 0
      // Predicated region
      $region61: #{spatio_temporal_res_block.5} parent=51 // pred_check
        %p528 = pneg %p527
      $region62: #{spatio_temporal_res_block.5} parent=51 // pred_check_branch
        %530 = sbr.rel (%p528) target = $region64
      $region63: #{spatio_temporal_res_block.5} parent=51 // pred_region
        %v531 = vld [vmem:[%s440] sm:$0xf]
        %v533 = vshrl.u32 %v531, 16
        %v535 = vrot.slane %v533, 6
        %v536 = vshll.u32 %v531, 16
        %v538 = vrot.slane %v536, 7
        %v539 = vor.u32 %v535, %v538
        %v540 = vrot.slane %v539, 4
        %vm543 = vcmask 60417
        %vm544 = vsmask.f32 7942
        %vm545 = vmand %vm543, %vm544
        %v546 = vld [vmem:[#allocation2 + $0x4] sm:$0xe]
        %v547 = vsel %vm545, %v539, %v546
        %548 = vst [vmem:[#allocation2 + $0x4] sm:$0xe] %v547
        %vm549 = vcmask 58368
        %vm550 = vsmask.f32 1280
        %vm551 = vmand %vm549, %vm550
        %v552 = vld [vmem:[#allocation2 + $0x8] sm:$0x3]
        %v553 = vsel %vm551, %v540, %v552
        %554 = vst [vmem:[#allocation2 + $0x8] sm:$0x3] %v553
        %s555 = scalar_lea.vmem %s440, 4
        %v556 = vld [vmem:[%s555] sm:$0xf]
        %v558 = vshrl.u32 %v556, 16
        %v560 = vrot.slane %v558, 5
        %v561 = vshll.u32 %v556, 16
        %v563 = vrot.slane %v561, 6
        %v564 = vor.u32 %v560, %v563
        %v565 = vrot.slane %v564, 4
        %vm568 = vcmask 60418
        %vm569 = vsmask.f32 7946
        %vm570 = vmand %vm568, %vm569
        %v571 = vld [vmem:[#allocation2 + $0x8] sm:$0xc]
        %v572 = vsel %vm570, %v564, %v571
        %573 = vst [vmem:[#allocation2 + $0x8] sm:$0xc] %v572
        %vm574 = vcmask 59392
        %vm575 = vsmask.f32 2304
        %vm576 = vmand %vm574, %vm575
        %v577 = vld [vmem:[#allocation2 + $0xc] sm:$0x7]
        %v578 = vsel %vm576, %v565, %v577
        %579 = vst [vmem:[#allocation2 + $0xc] sm:$0x7] %v578
        %s580 = scalar_lea.vmem %s440, 8
        %v581 = vld [vmem:[%s580] sm:$0xf]
        %v583 = vshll.u32 %v581, 16
        %v585 = vrot.slane %v583, 5
        %v586 = vshrl.u32 %v581, 16
        %v588 = vrot.slane %v586, 4
        %v589 = vor.u32 %v588, %v585
        %v590 = vrot.slane %v589, 4
        %vm593 = vcmask 60419
        %vm594 = vsmask.f32 7950
        %vm595 = vmand %vm593, %vm594
        %v596 = vld [vmem:[#allocation2 + $0xc] sm:$0x8]
        %v597 = vsel %vm595, %v585, %v596
        %598 = vst [vmem:[#allocation2 + $0xc] sm:$0x8] %v597
        %vm599 = vcmask 60416
        %vm600 = vsmask.f32 3328
        %vm601 = vmand %vm599, %vm600
        %v602 = vld [vmem:[#allocation2 + $0x10] sm:$0xf]
        %v603 = vsel %vm601, %v590, %v602
        %604 = vst [vmem:[#allocation2 + $0x10] sm:$0xf] %v603
        %s605 = scalar_lea.vmem %s440, 12
        %v606 = vld [vmem:[%s605] sm:$0xf]
        %v608 = vshrl.u32 %v606, 16
        %v610 = vrot.slane %v608, 7
        %v611 = vshll.u32 %v606, 16
        %v613 = vor.u32 %v610, %v611
        %v614 = vrot.slane %v610, 4
        %vm617 = vsmask.f32 7938
        %vm618 = vmand %vm599, %vm617
        %v619 = vld [vmem:[#allocation2 + $0x14] sm:$0xf]
        %v620 = vsel %vm618, %v613, %v619
        %621 = vst [vmem:[#allocation2 + $0x14] sm:$0xf] %v620
        %vm622 = vcmask 57344
        %vm623 = vsmask.f32 256
        %vm624 = vmand %vm622, %vm623
        %v625 = vld [vmem:[#allocation2 + $0x18] sm:$0x1]
        %v626 = vsel %vm624, %v614, %v625
        %627 = vst [vmem:[#allocation2 + $0x18] sm:$0x1] %v626
        %s628 = scalar_lea.vmem %s440, 16
        %v629 = vld [vmem:[%s628] sm:$0xf]
        %v631 = vshrl.u32 %v629, 16
        %v633 = vrot.slane %v631, 6
        %v634 = vshll.u32 %v629, 16
        %v636 = vrot.slane %v634, 7
        %v637 = vor.u32 %v633, %v636
        %v638 = vrot.slane %v637, 4
        %v641 = vld [vmem:[#allocation2 + $0x18] sm:$0xe]
        %v642 = vsel %vm545, %v637, %v641
        %643 = vst [vmem:[#allocation2 + $0x18] sm:$0xe] %v642
        %v644 = vld [vmem:[#allocation2 + $0x1c] sm:$0x3]
        %v645 = vsel %vm551, %v638, %v644
        %646 = vst [vmem:[#allocation2 + $0x1c] sm:$0x3] %v645
        %s647 = scalar_lea.vmem %s440, 20
        %v648 = vld [vmem:[%s647] sm:$0xf]
        %v650 = vshrl.u32 %v648, 16
        %v652 = vrot.slane %v650, 5
        %v653 = vshll.u32 %v648, 16
        %v655 = vrot.slane %v653, 6
        %v656 = vor.u32 %v652, %v655
        %v657 = vrot.slane %v656, 4
        %v660 = vld [vmem:[#allocation2 + $0x1c] sm:$0xc]
        %v661 = vsel %vm570, %v656, %v660
        %662 = vst [vmem:[#allocation2 + $0x1c] sm:$0xc] %v661
        %v663 = vld [vmem:[#allocation2 + $0x20] sm:$0x7]
        %v664 = vsel %vm576, %v657, %v663
        %665 = vst [vmem:[#allocation2 + $0x20] sm:$0x7] %v664
        %s666 = scalar_lea.vmem %s440, 24
        %v667 = vld [vmem:[%s666] sm:$0xf]
        %v669 = vshll.u32 %v667, 16
        %v671 = vrot.slane %v669, 5
        %v672 = vshrl.u32 %v667, 16
        %v674 = vrot.slane %v672, 4
        %v675 = vor.u32 %v674, %v671
        %v676 = vrot.slane %v675, 4
        %v679 = vld [vmem:[#allocation2 + $0x20] sm:$0x8]
        %v680 = vsel %vm595, %v671, %v679
        %681 = vst [vmem:[#allocation2 + $0x20] sm:$0x8] %v680
        %v682 = vld [vmem:[#allocation2 + $0x24] sm:$0xf]
        %v683 = vsel %vm601, %v676, %v682
        %684 = vst [vmem:[#allocation2 + $0x24] sm:$0xf] %v683
        %s685 = scalar_lea.vmem %s440, 28
        %v686 = vld [vmem:[%s685] sm:$0xf]
        %v688 = vshrl.u32 %v686, 16
        %v690 = vrot.slane %v688, 7
        %v691 = vshll.u32 %v686, 16
        %v693 = vor.u32 %v690, %v691
        %v694 = vrot.slane %v690, 4
        %v697 = vld [vmem:[#allocation2 + $0x28] sm:$0xf]
        %v698 = vsel %vm618, %v693, %v697
        %699 = vst [vmem:[#allocation2 + $0x28] sm:$0xf] %v698
        %v700 = vld [vmem:[#allocation2 + $0x2c] sm:$0x1]
        %v701 = vsel %vm624, %v694, %v700
        %702 = vst [vmem:[#allocation2 + $0x2c] sm:$0x1] %v701
      $region64: #{spatio_temporal_res_block.5} parent=51 // pred_fallthru
        _
      %v703 = vld [vmem:[%s452] sm:$0xf]
      %v705 = vshrl.u32 %v703, 16
      %v707 = vrot.slane %v705, 6
      %v708 = vshll.u32 %v703, 16
      %v710 = vrot.slane %v708, 7
      %v711 = vor.u32 %v707, %v710
      %v712 = vrot.slane %v711, 4
      %713 = vrot.lane.b32.xlu0 %v711, 8
      %v714 = vpop.permute.xlu0 %713
      %715 = vrot.lane.b32.xlu0 %v712, 8
      %v716 = vpop.permute.xlu0 %715
      %vm719 = vcmask 126017
      %vm720 = vsmask.f32 7942
      %vm721 = vmand %vm719, %vm720
      %v722 = vld [vmem:[#allocation2 + $0x4] sm:$0xe]
      %v723 = vsel %vm721, %v714, %v722
      %724 = vst [vmem:[#allocation2 + $0x4] sm:$0xe] %v723
      %vm725 = vcmask 123968
      %vm726 = vsmask.f32 1280
      %vm727 = vmand %vm725, %vm726
      %v728 = vld [vmem:[#allocation2 + $0x8] sm:$0x3]
      %v729 = vsel %vm727, %v716, %v728
      %730 = vst [vmem:[#allocation2 + $0x8] sm:$0x3] %v729
      %s731 = scalar_lea.vmem %s452, 4
      %v732 = vld [vmem:[%s731] sm:$0xf]
      %v734 = vshrl.u32 %v732, 16
      %v736 = vrot.slane %v734, 5
      %v737 = vshll.u32 %v732, 16
      %v739 = vrot.slane %v737, 6
      %v740 = vor.u32 %v736, %v739
      %v741 = vrot.slane %v740, 4
      %742 = vrot.lane.b32.xlu0 %v740, 8
      %v743 = vpop.permute.xlu0 %742
      %744 = vrot.lane.b32.xlu0 %v741, 8
      %v745 = vpop.permute.xlu0 %744
      %vm748 = vcmask 126018
      %vm749 = vsmask.f32 7946
      %vm750 = vmand %vm748, %vm749
      %v751 = vld [vmem:[#allocation2 + $0x8] sm:$0xc]
      %v752 = vsel %vm750, %v743, %v751
      %753 = vst [vmem:[#allocation2 + $0x8] sm:$0xc] %v752
      %vm754 = vcmask 124992
      %vm755 = vsmask.f32 2304
      %vm756 = vmand %vm754, %vm755
      %v757 = vld [vmem:[#allocation2 + $0xc] sm:$0x7]
      %v758 = vsel %vm756, %v745, %v757
      %759 = vst [vmem:[#allocation2 + $0xc] sm:$0x7] %v758
      %s760 = scalar_lea.vmem %s452, 8
      %v761 = vld [vmem:[%s760] sm:$0xf]
      %v763 = vshll.u32 %v761, 16
      %v765 = vrot.slane %v763, 5
      %v766 = vshrl.u32 %v761, 16
      %v768 = vrot.slane %v766, 4
      %v769 = vor.u32 %v768, %v765
      %v770 = vrot.slane %v769, 4
      %771 = vrot.lane.b32.xlu0 %v765, 8
      %v772 = vpop.permute.xlu0 %771
      %773 = vrot.lane.b32.xlu0 %v770, 8
      %v774 = vpop.permute.xlu0 %773
      %vm777 = vcmask 126019
      %vm778 = vsmask.f32 7950
      %vm779 = vmand %vm777, %vm778
      %v780 = vld [vmem:[#allocation2 + $0xc] sm:$0x8]
      %v781 = vsel %vm779, %v772, %v780
      %782 = vst [vmem:[#allocation2 + $0xc] sm:$0x8] %v781
      %vm783 = vcmask 126016
      %vm784 = vsmask.f32 3328
      %vm785 = vmand %vm783, %vm784
      %v786 = vld [vmem:[#allocation2 + $0x10] sm:$0xf]
      %v787 = vsel %vm785, %v774, %v786
      %788 = vst [vmem:[#allocation2 + $0x10] sm:$0xf] %v787
      %s789 = scalar_lea.vmem %s452, 12
      %v790 = vld [vmem:[%s789] sm:$0xf]
      %v792 = vshrl.u32 %v790, 16
      %v794 = vrot.slane %v792, 7
      %v795 = vshll.u32 %v790, 16
      %v797 = vor.u32 %v794, %v795
      %v798 = vrot.slane %v794, 4
      %799 = vrot.lane.b32.xlu0 %v797, 8
      %v800 = vpop.permute.xlu0 %799
      %801 = vrot.lane.b32.xlu0 %v798, 8
      %v802 = vpop.permute.xlu0 %801
      %vm805 = vsmask.f32 7938
      %vm806 = vmand %vm783, %vm805
      %v807 = vld [vmem:[#allocation2 + $0x14] sm:$0xf]
      %v808 = vsel %vm806, %v800, %v807
      %809 = vst [vmem:[#allocation2 + $0x14] sm:$0xf] %v808
      %vm810 = vcmask 122944
      %vm811 = vsmask.f32 256
      %vm812 = vmand %vm810, %vm811
      %v813 = vld [vmem:[#allocation2 + $0x18] sm:$0x1]
      %v814 = vsel %vm812, %v802, %v813
      %815 = vst [vmem:[#allocation2 + $0x18] sm:$0x1] %v814
      %s816 = scalar_lea.vmem %s452, 16
      %v817 = vld [vmem:[%s816] sm:$0xf]
      %v819 = vshrl.u32 %v817, 16
      %v821 = vrot.slane %v819, 6
      %v822 = vshll.u32 %v817, 16
      %v824 = vrot.slane %v822, 7
      %v825 = vor.u32 %v821, %v824
      %v826 = vrot.slane %v825, 4
      %827 = vrot.lane.b32.xlu0 %v825, 8
      %v828 = vpop.permute.xlu0 %827
      %829 = vrot.lane.b32.xlu0 %v826, 8
      %v830 = vpop.permute.xlu0 %829
      %v833 = vld [vmem:[#allocation2 + $0x18] sm:$0xe]
      %v834 = vsel %vm721, %v828, %v833
      %835 = vst [vmem:[#allocation2 + $0x18] sm:$0xe] %v834
      %v836 = vld [vmem:[#allocation2 + $0x1c] sm:$0x3]
      %v837 = vsel %vm727, %v830, %v836
      %838 = vst [vmem:[#allocation2 + $0x1c] sm:$0x3] %v837
      %s839 = scalar_lea.vmem %s452, 20
      %v840 = vld [vmem:[%s839] sm:$0xf]
      %v842 = vshrl.u32 %v840, 16
      %v844 = vrot.slane %v842, 5
      %v845 = vshll.u32 %v840, 16
      %v847 = vrot.slane %v845, 6
      %v848 = vor.u32 %v844, %v847
      %v849 = vrot.slane %v848, 4
      %850 = vrot.lane.b32.xlu0 %v848, 8
      %v851 = vpop.permute.xlu0 %850
      %852 = vrot.lane.b32.xlu0 %v849, 8
      %v853 = vpop.permute.xlu0 %852
      %v856 = vld [vmem:[#allocation2 + $0x1c] sm:$0xc]
      %v857 = vsel %vm750, %v851, %v856
      %858 = vst [vmem:[#allocation2 + $0x1c] sm:$0xc] %v857
      %v859 = vld [vmem:[#allocation2 + $0x20] sm:$0x7]
      %v860 = vsel %vm756, %v853, %v859
      %861 = vst [vmem:[#allocation2 + $0x20] sm:$0x7] %v860
      %s862 = scalar_lea.vmem %s452, 24
      %v863 = vld [vmem:[%s862] sm:$0xf]
      %v865 = vshll.u32 %v863, 16
      %v867 = vrot.slane %v865, 5
      %v868 = vshrl.u32 %v863, 16
      %v870 = vrot.slane %v868, 4
      %v871 = vor.u32 %v870, %v867
      %v872 = vrot.slane %v871, 4
      %873 = vrot.lane.b32.xlu0 %v867, 8
      %v874 = vpop.permute.xlu0 %873
      %875 = vrot.lane.b32.xlu0 %v872, 8
      %v876 = vpop.permute.xlu0 %875
      %v879 = vld [vmem:[#allocation2 + $0x20] sm:$0x8]
      %v880 = vsel %vm779, %v874, %v879
      %881 = vst [vmem:[#allocation2 + $0x20] sm:$0x8] %v880
      %v882 = vld [vmem:[#allocation2 + $0x24] sm:$0xf]
      %v883 = vsel %vm785, %v876, %v882
      %884 = vst [vmem:[#allocation2 + $0x24] sm:$0xf] %v883
      %s885 = scalar_lea.vmem %s452, 28
      %v886 = vld [vmem:[%s885] sm:$0xf]
      %v888 = vshrl.u32 %v886, 16
      %v890 = vrot.slane %v888, 7
      %v891 = vshll.u32 %v886, 16
      %v893 = vor.u32 %v890, %v891
      %v894 = vrot.slane %v890, 4
      %895 = vrot.lane.b32.xlu0 %v893, 8
      %v896 = vpop.permute.xlu0 %895
      %897 = vrot.lane.b32.xlu0 %v894, 8
      %v898 = vpop.permute.xlu0 %897
      %v901 = vld [vmem:[#allocation2 + $0x28] sm:$0xf]
      %v902 = vsel %vm806, %v896, %v901
      %903 = vst [vmem:[#allocation2 + $0x28] sm:$0xf] %v902
      %v904 = vld [vmem:[#allocation2 + $0x2c] sm:$0x1]
      %v905 = vsel %vm812, %v898, %v904
      %906 = vst [vmem:[#allocation2 + $0x2c] sm:$0x1] %v905
      %p907 = scmp.lt.s32.totalorder %s24, 7
      // Predicated region
      $region65: #{spatio_temporal_res_block.5} parent=51 // pred_check
        %p908 = pneg %p907
      $region66: #{spatio_temporal_res_block.5} parent=51 // pred_check_branch
        %910 = sbr.rel (%p908) target = $region68
      $region67: #{spatio_temporal_res_block.5} parent=51 // pred_region
        %v911 = vld [vmem:[%s464] sm:$0xf]
        %v913 = vshrl.u32 %v911, 16
        %v915 = vrot.slane %v913, 6
        %v916 = vshll.u32 %v911, 16
        %v918 = vrot.slane %v916, 7
        %v919 = vor.u32 %v915, %v918
        %v920 = vrot.slane %v919, 4
        %921 = vrot.lane.b32.xlu0 %v919, 16
        %v922 = vpop.permute.xlu0 %921
        %923 = vrot.lane.b32.xlu0 %v920, 16
        %v924 = vpop.permute.xlu0 %923
        %vm927 = vcmask 191617
        %vm928 = vmand %vm927, %vm720
        %v929 = vld [vmem:[#allocation2 + $0x4] sm:$0xe]
        %v930 = vsel %vm928, %v922, %v929
        %931 = vst [vmem:[#allocation2 + $0x4] sm:$0xe] %v930
        %vm932 = vcmask 189568
        %vm933 = vmand %vm932, %vm726
        %v934 = vld [vmem:[#allocation2 + $0x8] sm:$0x3]
        %v935 = vsel %vm933, %v924, %v934
        %936 = vst [vmem:[#allocation2 + $0x8] sm:$0x3] %v935
        %s937 = scalar_lea.vmem %s464, 4
        %v938 = vld [vmem:[%s937] sm:$0xf]
        %v940 = vshrl.u32 %v938, 16
        %v942 = vrot.slane %v940, 5
        %v943 = vshll.u32 %v938, 16
        %v945 = vrot.slane %v943, 6
        %v946 = vor.u32 %v942, %v945
        %v947 = vrot.slane %v946, 4
        %948 = vrot.lane.b32.xlu0 %v946, 16
        %v949 = vpop.permute.xlu0 %948
        %950 = vrot.lane.b32.xlu0 %v947, 16
        %v951 = vpop.permute.xlu0 %950
        %vm954 = vcmask 191618
        %vm955 = vmand %vm954, %vm749
        %v956 = vld [vmem:[#allocation2 + $0x8] sm:$0xc]
        %v957 = vsel %vm955, %v949, %v956
        %958 = vst [vmem:[#allocation2 + $0x8] sm:$0xc] %v957
        %vm959 = vcmask 190592
        %vm960 = vmand %vm959, %vm755
        %v961 = vld [vmem:[#allocation2 + $0xc] sm:$0x7]
        %v962 = vsel %vm960, %v951, %v961
        %963 = vst [vmem:[#allocation2 + $0xc] sm:$0x7] %v962
        %s964 = scalar_lea.vmem %s464, 8
        %v965 = vld [vmem:[%s964] sm:$0xf]
        %v967 = vshll.u32 %v965, 16
        %v969 = vrot.slane %v967, 5
        %v970 = vshrl.u32 %v965, 16
        %v972 = vrot.slane %v970, 4
        %v973 = vor.u32 %v972, %v969
        %v974 = vrot.slane %v973, 4
        %975 = vrot.lane.b32.xlu0 %v969, 16
        %v976 = vpop.permute.xlu0 %975
        %977 = vrot.lane.b32.xlu0 %v974, 16
        %v978 = vpop.permute.xlu0 %977
        %vm981 = vcmask 191619
        %vm982 = vmand %vm981, %vm778
        %v983 = vld [vmem:[#allocation2 + $0xc] sm:$0x8]
        %v984 = vsel %vm982, %v976, %v983
        %985 = vst [vmem:[#allocation2 + $0xc] sm:$0x8] %v984
        %vm986 = vcmask 191616
        %vm987 = vmand %vm986, %vm784
        %v988 = vld [vmem:[#allocation2 + $0x10] sm:$0xf]
        %v989 = vsel %vm987, %v978, %v988
        %990 = vst [vmem:[#allocation2 + $0x10] sm:$0xf] %v989
        %s991 = scalar_lea.vmem %s464, 12
        %v992 = vld [vmem:[%s991] sm:$0xf]
        %v994 = vshrl.u32 %v992, 16
        %v996 = vrot.slane %v994, 7
        %v997 = vshll.u32 %v992, 16
        %v999 = vor.u32 %v996, %v997
        %v1000 = vrot.slane %v996, 4
        %1001 = vrot.lane.b32.xlu0 %v999, 16
        %v1002 = vpop.permute.xlu0 %1001
        %1003 = vrot.lane.b32.xlu0 %v1000, 16
        %v1004 = vpop.permute.xlu0 %1003
        %vm1007 = vmand %vm986, %vm805
        %v1008 = vld [vmem:[#allocation2 + $0x14] sm:$0xf]
        %v1009 = vsel %vm1007, %v1002, %v1008
        %1010 = vst [vmem:[#allocation2 + $0x14] sm:$0xf] %v1009
        %vm1011 = vcmask 188544
        %vm1012 = vmand %vm1011, %vm811
        %v1013 = vld [vmem:[#allocation2 + $0x18] sm:$0x1]
        %v1014 = vsel %vm1012, %v1004, %v1013
        %1015 = vst [vmem:[#allocation2 + $0x18] sm:$0x1] %v1014
        %s1016 = scalar_lea.vmem %s464, 16
        %v1017 = vld [vmem:[%s1016] sm:$0xf]
        %v1019 = vshrl.u32 %v1017, 16
        %v1021 = vrot.slane %v1019, 6
        %v1022 = vshll.u32 %v1017, 16
        %v1024 = vrot.slane %v1022, 7
        %v1025 = vor.u32 %v1021, %v1024
        %v1026 = vrot.slane %v1025, 4
        %1027 = vrot.lane.b32.xlu0 %v1025, 16
        %v1028 = vpop.permute.xlu0 %1027
        %1029 = vrot.lane.b32.xlu0 %v1026, 16
        %v1030 = vpop.permute.xlu0 %1029
        %v1033 = vld [vmem:[#allocation2 + $0x18] sm:$0xe]
        %v1034 = vsel %vm928, %v1028, %v1033
        %1035 = vst [vmem:[#allocation2 + $0x18] sm:$0xe] %v1034
        %v1036 = vld [vmem:[#allocation2 + $0x1c] sm:$0x3]
        %v1037 = vsel %vm933, %v1030, %v1036
        %1038 = vst [vmem:[#allocation2 + $0x1c] sm:$0x3] %v1037
        %s1039 = scalar_lea.vmem %s464, 20
        %v1040 = vld [vmem:[%s1039] sm:$0xf]
        %v1042 = vshrl.u32 %v1040, 16
        %v1044 = vrot.slane %v1042, 5
        %v1045 = vshll.u32 %v1040, 16
        %v1047 = vrot.slane %v1045, 6
        %v1048 = vor.u32 %v1044, %v1047
        %v1049 = vrot.slane %v1048, 4
        %1050 = vrot.lane.b32.xlu0 %v1048, 16
        %v1051 = vpop.permute.xlu0 %1050
        %1052 = vrot.lane.b32.xlu0 %v1049, 16
        %v1053 = vpop.permute.xlu0 %1052
        %v1056 = vld [vmem:[#allocation2 + $0x1c] sm:$0xc]
        %v1057 = vsel %vm955, %v1051, %v1056
        %1058 = vst [vmem:[#allocation2 + $0x1c] sm:$0xc] %v1057
        %v1059 = vld [vmem:[#allocation2 + $0x20] sm:$0x7]
        %v1060 = vsel %vm960, %v1053, %v1059
        %1061 = vst [vmem:[#allocation2 + $0x20] sm:$0x7] %v1060
        %s1062 = scalar_lea.vmem %s464, 24
        %v1063 = vld [vmem:[%s1062] sm:$0xf]
        %v1065 = vshll.u32 %v1063, 16
        %v1067 = vrot.slane %v1065, 5
        %v1068 = vshrl.u32 %v1063, 16
        %v1070 = vrot.slane %v1068, 4
        %v1071 = vor.u32 %v1070, %v1067
        %v1072 = vrot.slane %v1071, 4
        %1073 = vrot.lane.b32.xlu0 %v1067, 16
        %v1074 = vpop.permute.xlu0 %1073
        %1075 = vrot.lane.b32.xlu0 %v1072, 16
        %v1076 = vpop.permute.xlu0 %1075
        %v1079 = vld [vmem:[#allocation2 + $0x20] sm:$0x8]
        %v1080 = vsel %vm982, %v1074, %v1079
        %1081 = vst [vmem:[#allocation2 + $0x20] sm:$0x8] %v1080
        %v1082 = vld [vmem:[#allocation2 + $0x24] sm:$0xf]
        %v1083 = vsel %vm987, %v1076, %v1082
        %1084 = vst [vmem:[#allocation2 + $0x24] sm:$0xf] %v1083
        %s1085 = scalar_lea.vmem %s464, 28
        %v1086 = vld [vmem:[%s1085] sm:$0xf]
        %v1088 = vshrl.u32 %v1086, 16
        %v1090 = vrot.slane %v1088, 7
        %v1091 = vshll.u32 %v1086, 16
        %v1093 = vor.u32 %v1090, %v1091
        %v1094 = vrot.slane %v1090, 4
        %1095 = vrot.lane.b32.xlu0 %v1093, 16
        %v1096 = vpop.permute.xlu0 %1095
        %1097 = vrot.lane.b32.xlu0 %v1094, 16
        %v1098 = vpop.permute.xlu0 %1097
        %v1101 = vld [vmem:[#allocation2 + $0x28] sm:$0xf]
        %v1102 = vsel %vm1007, %v1096, %v1101
        %1103 = vst [vmem:[#allocation2 + $0x28] sm:$0xf] %v1102
        %v1104 = vld [vmem:[#allocation2 + $0x2c] sm:$0x1]
        %v1105 = vsel %vm1012, %v1098, %v1104
        %1106 = vst [vmem:[#allocation2 + $0x2c] sm:$0x1] %v1105
      $region68: #{spatio_temporal_res_block.5} parent=51 // pred_fallthru
        _
      %v1107 = vld [vmem:[#allocation2] sm:$0xf]
      %v1108 = vld [vmem:[#allocation2 + $0x4] sm:$0xf]
      %v1109 = vld [vmem:[#allocation2 + $0x8] sm:$0xf]
      %v1110 = vld [vmem:[#allocation2 + $0xc] sm:$0xf]
      %v1111 = vld [vmem:[#allocation2 + $0x10] sm:$0xf]
      %v1112 = vld [vmem:[#allocation2 + $0x14] sm:$0xf]
      %v1113 = vld [vmem:[#allocation2 + $0x18] sm:$0xf]
      %v1114 = vld [vmem:[#allocation2 + $0x1c] sm:$0xf]
      %v1115 = vld [vmem:[#allocation2 + $0x20] sm:$0xf]
      %v1116 = vld [vmem:[#allocation2 + $0x24] sm:$0xf]
      %v1117 = vld [vmem:[%s3] sm:$0xf]
      %v1118 = vld [vmem:[%s3 + $0x4] sm:$0xf]
      %v1119 = vld [vmem:[%s3 + $0x8] sm:$0xf]
      %v1120 = vld [vmem:[#allocation2 + $0x28] sm:$0x1]
      %s1121 = scalar_lea.vmem %s3, 12
      %v1122 = vld [vmem:[%s1121] sm:$0xf]
      %v1123 = vld [vmem:[%s1121 + $0x4] sm:$0xf]
      %v1124 = vld [vmem:[%s1121 + $0x8] sm:$0xf]
      %v1136 = vunpack.c.l.b16 %v1107
      %v1137 = vunpack.c.l.b16 %v1108
      %v1138 = vunpack.c.l.b16 %v1109
      %v1139 = vunpack.c.l.b16 %v1110
      %v1140 = vunpack.c.l.b16 %v1111
      %v1141 = vunpack.c.l.b16 %v1112
      %v1142 = vunpack.c.l.b16 %v1113
      %v1143 = vunpack.c.l.b16 %v1114
      %v1144 = vunpack.c.l.b16 %v1115
      %v1145 = vunpack.c.l.b16 %v1116
      %v1146 = vunpack.c.l.b16 %v1120
      %v1147 = vpack.c.b16 %v1137, %v1136
      %v1148 = vpack.c.b16 %v1139, %v1138
      %v1149 = vpack.c.b16 %v1141, %v1140
      %v1150 = vpack.c.b16 %v1143, %v1142
      %v1151 = vpack.c.b16 %v1145, %v1144
      %v1152 = vpack.c.b16 %v1146, %v1146
      %vm1153 = vsmask.f32 7424
      %v1155 = vshrl.u32 %v1147, 16
      %v1157 = vshll.u32 %v1147, 16
      %v1159 = vrot.slane %v1157, 1
      %v1160 = vor.u32 %v1155, %v1159
      %v1162 = vshll.u32 %v1148, 16
      %v1164 = vrot.slane %v1162, 1
      %v1165 = vsel %vm1153, %v1160, %v1164
      %v1166 = vshrl.u32 %v1148, 16
      %v1168 = vor.u32 %v1166, %v1164
      %v1170 = vshll.u32 %v1149, 16
      %v1172 = vrot.slane %v1170, 1
      %v1173 = vsel %vm1153, %v1168, %v1172
      %v1174 = vshrl.u32 %v1149, 16
      %v1176 = vor.u32 %v1174, %v1172
      %v1178 = vshll.u32 %v1150, 16
      %v1180 = vrot.slane %v1178, 1
      %v1181 = vsel %vm1153, %v1176, %v1180
      %v1182 = vshrl.u32 %v1150, 16
      %v1184 = vor.u32 %v1182, %v1180
      %v1186 = vshll.u32 %v1151, 16
      %v1188 = vrot.slane %v1186, 1
      %v1189 = vsel %vm1153, %v1184, %v1188
      %v1190 = vshrl.u32 %v1151, 16
      %v1192 = vor.u32 %v1190, %v1188
      %v1194 = vshll.u32 %v1152, 16
      %v1196 = vrot.slane %v1194, 1
      %v1197 = vsel %vm1153, %v1192, %v1196
      %v1201 = vunpack.c.l.b16 %v1122
      %v1202 = vunpack.c.l.b16 %v1123
      %v1203 = vunpack.c.l.b16 %v1124
      %v1204 = vpack.c.b16 %v1202, %v1201
      %v1205 = vpack.c.b16 %v1203, %v1203
      %vm1207 = vcmask 195584
      %v1209 = vsel %vm1207, %v1165, 0
      %v1212 = vsel %vm1207, %v1173, 0
      %v1215 = vsel %vm1207, %v1181, 0
      %v1218 = vsel %vm1207, %v1189, 0
      %v1221 = vsel %vm1207, %v1197, 0
      %vm1223 = vcmask 1043456
      %v1225 = vsel %vm1223, %v1205, 0
      %1227 = vmatprep.subr.bf16.mxu0 0
      %1228 = vmatpush1.bf16.msra.mxu0 0
      %1229 = vmatprep.subr.bf16.mxu0 0
      %1230 = vmatpush1.bf16.msra.mxu0 0
      %1231 = vmatprep.subr.bf16.mxu0 0
      %1232 = vmatpush1.bf16.msra.mxu0 0
      %1233 = vmatprep.subr.bf16.mxu0 0
      %1234 = vmatpush1.bf16.msra.mxu0 0
      %1235 = vmatprep.subr.bf16.mxu0 0
      %1236 = vmatpush1.bf16.msra.mxu0 0
      %1237 = vmatprep.subr.bf16.mxu0 0
      %1238 = vmatpush1.bf16.msra.mxu0 0
      %1239 = vmatprep.subr.bf16.mxu0 0
      %1240 = vmatpush1.bf16.msra.mxu0 %v1225
      %1241 = vmatprep.subr.bf16.mxu0 0
      %1242 = vmatpush1.bf16.msra.mxu0 %v1204
      %1243 = vmatprep.subr.bf16.mxu0 0
      %1244 = vmatpush2.bf16.msra.mxu0 0
      %1245 = vmatprep.subr.bf16.mxu0 0
      %1246 = vmatpush2.bf16.msra.mxu0 0
      %1247 = vmatprep.subr.bf16.mxu0 0
      %1248 = vmatpush2.bf16.msra.mxu0 0
      %1249 = vmatprep.subr.bf16.mxu0 0
      %1250 = vmatpush2.bf16.msra.mxu0 0
      %1251 = vmatprep.subr.bf16.mxu0 0
      %1252 = vmatpush2.bf16.msra.mxu0 0
      %1253 = vmatprep.subr.bf16.mxu0 0
      %1254 = vmatpush2.bf16.msra.mxu0 0
      %1255 = vmatprep.subr.bf16.mxu0 0
      %1256 = vmatpush2.bf16.msra.mxu0 0
      %1257 = vmatprep.subr.bf16.mxu0 0
      %1258 = vmatpush2.bf16.msra.mxu0 0
      %1259 = vmatprep.mubr.bf16.mxu0 0
      %1260 = vmatmul.mubr.bf16.gmra.mxu0 %v1209
      %v1261 = vpop.f32.mrf.mxu0
      %v1262 = vadd.f32 0.0, %v1261
      %v1263 = vpop.f32.mrf.mxu0
      %v1264 = vpop.f32.mrf.mxu0
      %v1265 = vadd.f32 0.0, %v1264
      %v1266 = vpop.f32.mrf.mxu0
      %1267 = vmatprep.mubr.bf16.mxu0 0
      %1268 = vmatmul.mubr.bf16.gmra.mxu0 %v1212
      %v1269 = vpop.f32.mrf.mxu0
      %v1270 = vadd.f32 0.0, %v1269
      %v1271 = vpop.f32.mrf.mxu0
      %v1272 = vpop.f32.mrf.mxu0
      %v1273 = vadd.f32 0.0, %v1272
      %v1274 = vpop.f32.mrf.mxu0
      %1275 = vmatprep.mubr.bf16.mxu0 0
      %1276 = vmatmul.mubr.bf16.gmra.mxu0 %v1215
      %v1277 = vpop.f32.mrf.mxu0
      %v1278 = vadd.f32 0.0, %v1277
      %v1279 = vpop.f32.mrf.mxu0
      %v1280 = vpop.f32.mrf.mxu0
      %v1281 = vadd.f32 0.0, %v1280
      %v1282 = vpop.f32.mrf.mxu0
      %1283 = vmatprep.mubr.bf16.mxu0 0
      %1284 = vmatmul.mubr.bf16.gmra.mxu0 %v1218
      %v1285 = vpop.f32.mrf.mxu0
      %v1286 = vadd.f32 0.0, %v1285
      %v1287 = vpop.f32.mrf.mxu0
      %v1288 = vpop.f32.mrf.mxu0
      %v1289 = vadd.f32 0.0, %v1288
      %v1290 = vpop.f32.mrf.mxu0
      %1291 = vmatprep.mubr.bf16.mxu0 0
      %1292 = vmatmul.mubr.bf16.gmra.mxu0 %v1221
      %v1293 = vpop.f32.mrf.mxu0
      %v1294 = vadd.f32 0.0, %v1293
      %v1295 = vpop.f32.mrf.mxu0
      %v1296 = vpop.f32.mrf.mxu0
      %v1297 = vadd.f32 0.0, %v1296
      %v1298 = vpop.f32.mrf.mxu0
      %1299 = vdwg.mxu0
      %v1303 = vunpack.c.l.b16 %v1117
      %v1304 = vunpack.c.l.b16 %v1118
      %v1305 = vunpack.c.l.b16 %v1119
      %v1306 = vpack.c.b16 %v1304, %v1303
      %v1307 = vpack.c.b16 %v1305, %v1305
      %v1309 = vsel %vm1207, %v1147, 0
      %v1311 = vsel %vm1207, %v1148, 0
      %v1313 = vsel %vm1207, %v1149, 0
      %v1315 = vsel %vm1207, %v1150, 0
      %v1317 = vsel %vm1207, %v1151, 0
      %v1320 = vsel %vm1223, %v1307, 0
      %1322 = vmatprep.subr.bf16.mxu0 0
      %1323 = vmatpush1.bf16.msra.mxu0 0
      %1324 = vmatprep.subr.bf16.mxu0 0
      %1325 = vmatpush1.bf16.msra.mxu0 0
      %1326 = vmatprep.subr.bf16.mxu0 0
      %1327 = vmatpush1.bf16.msra.mxu0 0
      %1328 = vmatprep.subr.bf16.mxu0 0
      %1329 = vmatpush1.bf16.msra.mxu0 0
      %1330 = vmatprep.subr.bf16.mxu0 0
      %1331 = vmatpush1.bf16.msra.mxu0 0
      %1332 = vmatprep.subr.bf16.mxu0 0
      %1333 = vmatpush1.bf16.msra.mxu0 0
      %1334 = vmatprep.subr.bf16.mxu0 0
      %1335 = vmatpush1.bf16.msra.mxu0 %v1320
      %1336 = vmatprep.subr.bf16.mxu0 0
      %1337 = vmatpush1.bf16.msra.mxu0 %v1306
      %1338 = vmatprep.subr.bf16.mxu0 0
      %1339 = vmatpush2.bf16.msra.mxu0 0
      %1340 = vmatprep.subr.bf16.mxu0 0
      %1341 = vmatpush2.bf16.msra.mxu0 0
      %1342 = vmatprep.subr.bf16.mxu0 0
      %1343 = vmatpush2.bf16.msra.mxu0 0
      %1344 = vmatprep.subr.bf16.mxu0 0
      %1345 = vmatpush2.bf16.msra.mxu0 0
      %1346 = vmatprep.subr.bf16.mxu0 0
      %1347 = vmatpush2.bf16.msra.mxu0 0
      %1348 = vmatprep.subr.bf16.mxu0 0
      %1349 = vmatpush2.bf16.msra.mxu0 0
      %1350 = vmatprep.subr.bf16.mxu0 0
      %1351 = vmatpush2.bf16.msra.mxu0 0
      %1352 = vmatprep.subr.bf16.mxu0 0
      %1353 = vmatpush2.bf16.msra.mxu0 0
      %1354 = vmatprep.mubr.bf16.mxu0 0
      %1355 = vmatmul.mubr.bf16.gmra.mxu0 %v1309
      %v1356 = vpop.f32.mrf.mxu0
      %v1357 = vadd.f32 %v1262, %v1356
      %v1358 = vpop.f32.mrf.mxu0
      %v1359 = vpop.f32.mrf.mxu0
      %v1360 = vadd.f32 %v1265, %v1359
      %v1361 = vpop.f32.mrf.mxu0
      %1362 = vmatprep.mubr.bf16.mxu0 0
      %1363 = vmatmul.mubr.bf16.gmra.mxu0 %v1311
      %v1364 = vpop.f32.mrf.mxu0
      %v1365 = vadd.f32 %v1270, %v1364
      %v1366 = vpop.f32.mrf.mxu0
      %v1367 = vpop.f32.mrf.mxu0
      %v1368 = vadd.f32 %v1273, %v1367
      %v1369 = vpop.f32.mrf.mxu0
      %1370 = vmatprep.mubr.bf16.mxu0 0
      %1371 = vmatmul.mubr.bf16.gmra.mxu0 %v1313
      %v1372 = vpop.f32.mrf.mxu0
      %v1373 = vadd.f32 %v1278, %v1372
      %v1374 = vpop.f32.mrf.mxu0
      %v1375 = vpop.f32.mrf.mxu0
      %v1376 = vadd.f32 %v1281, %v1375
      %v1377 = vpop.f32.mrf.mxu0
      %1378 = vmatprep.mubr.bf16.mxu0 0
      %1379 = vmatmul.mubr.bf16.gmra.mxu0 %v1315
      %v1380 = vpop.f32.mrf.mxu0
      %v1381 = vadd.f32 %v1286, %v1380
      %v1382 = vpop.f32.mrf.mxu0
      %v1383 = vpop.f32.mrf.mxu0
      %v1384 = vadd.f32 %v1289, %v1383
      %v1385 = vpop.f32.mrf.mxu0
      %1386 = vmatprep.mubr.bf16.mxu0 0
      %1387 = vmatmul.mubr.bf16.gmra.mxu0 %v1317
      %v1388 = vpop.f32.mrf.mxu0
      %v1389 = vadd.f32 %v1294, %v1388
      %v1390 = vpop.f32.mrf.mxu0
      %v1391 = vpop.f32.mrf.mxu0
      %v1392 = vadd.f32 %v1297, %v1391
      %v1393 = vpop.f32.mrf.mxu0
      %1394 = vdwg.mxu0
      %v1395 = vld [vmem:[#allocation2] sm:$0xe]
      %s1396 = scalar_lea.vmem %s3, 24
      %v1397 = vld [vmem:[%s1396] sm:$0xf]
      %v1398 = vld [vmem:[%s1396 + $0x4] sm:$0xf]
      %v1399 = vld [vmem:[%s1396 + $0x8] sm:$0xf]
      %v1401 = vunpack.c.l.b16 %v1395
      %v1402 = vpack.c.b16 %v1137, %v1401
      %vm1403 = vcmask 1046528
      %v1404 = vrot.slane %v1402, 1
      %v1405 = vrot.slane %v1148, 1
      %v1406 = vsel %vm1403, %v1404, %v1405
      %v1407 = vrot.slane %v1149, 1
      %v1408 = vsel %vm1403, %v1405, %v1407
      %v1409 = vrot.slane %v1150, 1
      %v1410 = vsel %vm1403, %v1407, %v1409
      %v1411 = vrot.slane %v1151, 1
      %v1412 = vsel %vm1403, %v1409, %v1411
      %v1413 = vrot.slane %v1152, 1
      %v1414 = vsel %vm1403, %v1411, %v1413
      %v1418 = vunpack.c.l.b16 %v1397
      %v1419 = vunpack.c.l.b16 %v1398
      %v1420 = vunpack.c.l.b16 %v1399
      %v1421 = vpack.c.b16 %v1419, %v1418
      %v1422 = vpack.c.b16 %v1420, %v1420
      %v1425 = vsel %vm1207, %v1406, 0
      %v1428 = vsel %vm1207, %v1408, 0
      %v1431 = vsel %vm1207, %v1410, 0
      %v1434 = vsel %vm1207, %v1412, 0
      %v1437 = vsel %vm1207, %v1414, 0
      %v1440 = vsel %vm1223, %v1422, 0
      %1442 = vmatprep.subr.bf16.mxu0 0
      %1443 = vmatpush1.bf16.msra.mxu0 0
      %1444 = vmatprep.subr.bf16.mxu0 0
      %1445 = vmatpush1.bf16.msra.mxu0 0
      %1446 = vmatprep.subr.bf16.mxu0 0
      %1447 = vmatpush1.bf16.msra.mxu0 0
      %1448 = vmatprep.subr.bf16.mxu0 0
      %1449 = vmatpush1.bf16.msra.mxu0 0
      %1450 = vmatprep.subr.bf16.mxu0 0
      %1451 = vmatpush1.bf16.msra.mxu0 0
      %1452 = vmatprep.subr.bf16.mxu0 0
      %1453 = vmatpush1.bf16.msra.mxu0 0
      %1454 = vmatprep.subr.bf16.mxu0 0
      %1455 = vmatpush1.bf16.msra.mxu0 %v1440
      %1456 = vmatprep.subr.bf16.mxu0 0
      %1457 = vmatpush1.bf16.msra.mxu0 %v1421
      %1458 = vmatprep.subr.bf16.mxu0 0
      %1459 = vmatpush2.bf16.msra.mxu0 0
      %1460 = vmatprep.subr.bf16.mxu0 0
      %1461 = vmatpush2.bf16.msra.mxu0 0
      %1462 = vmatprep.subr.bf16.mxu0 0
      %1463 = vmatpush2.bf16.msra.mxu0 0
      %1464 = vmatprep.subr.bf16.mxu0 0
      %1465 = vmatpush2.bf16.msra.mxu0 0
      %1466 = vmatprep.subr.bf16.mxu0 0
      %1467 = vmatpush2.bf16.msra.mxu0 0
      %1468 = vmatprep.subr.bf16.mxu0 0
      %1469 = vmatpush2.bf16.msra.mxu0 0
      %1470 = vmatprep.subr.bf16.mxu0 0
      %1471 = vmatpush2.bf16.msra.mxu0 0
      %1472 = vmatprep.subr.bf16.mxu0 0
      %1473 = vmatpush2.bf16.msra.mxu0 0
      %1474 = vmatprep.mubr.bf16.mxu0 0
      %1475 = vmatmul.mubr.bf16.gmra.mxu0 %v1425
      %v1476 = vpop.f32.mrf.mxu0
      %v1477 = vadd.f32 0.0, %v1476
      %v1478 = vpop.f32.mrf.mxu0
      %v1479 = vpop.f32.mrf.mxu0
      %v1480 = vadd.f32 0.0, %v1479
      %v1481 = vpop.f32.mrf.mxu0
      %1482 = vmatprep.mubr.bf16.mxu0 0
      %1483 = vmatmul.mubr.bf16.gmra.mxu0 %v1428
      %v1484 = vpop.f32.mrf.mxu0
      %v1485 = vadd.f32 0.0, %v1484
      %v1486 = vpop.f32.mrf.mxu0
      %v1487 = vpop.f32.mrf.mxu0
      %v1488 = vadd.f32 0.0, %v1487
      %v1489 = vpop.f32.mrf.mxu0
      %1490 = vmatprep.mubr.bf16.mxu0 0
      %1491 = vmatmul.mubr.bf16.gmra.mxu0 %v1431
      %v1492 = vpop.f32.mrf.mxu0
      %v1493 = vadd.f32 0.0, %v1492
      %v1494 = vpop.f32.mrf.mxu0
      %v1495 = vpop.f32.mrf.mxu0
      %v1496 = vadd.f32 0.0, %v1495
      %v1497 = vpop.f32.mrf.mxu0
      %1498 = vmatprep.mubr.bf16.mxu0 0
      %1499 = vmatmul.mubr.bf16.gmra.mxu0 %v1434
      %v1500 = vpop.f32.mrf.mxu0
      %v1501 = vadd.f32 0.0, %v1500
      %v1502 = vpop.f32.mrf.mxu0
      %v1503 = vpop.f32.mrf.mxu0
      %v1504 = vadd.f32 0.0, %v1503
      %v1505 = vpop.f32.mrf.mxu0
      %1506 = vmatprep.mubr.bf16.mxu0 0
      %1507 = vmatmul.mubr.bf16.gmra.mxu0 %v1437
      %v1508 = vpop.f32.mrf.mxu0
      %v1509 = vadd.f32 0.0, %v1508
      %v1510 = vpop.f32.mrf.mxu0
      %v1511 = vpop.f32.mrf.mxu0
      %v1512 = vadd.f32 0.0, %v1511
      %v1513 = vpop.f32.mrf.mxu0
      %1514 = vdwg.mxu0
      %v1515 = vadd.f32 %v1357, %v1477
      %v1516 = vadd.f32 %v1360, %v1480
      %v1517 = vadd.f32 %v1365, %v1485
      %v1518 = vadd.f32 %v1368, %v1488
      %v1519 = vadd.f32 %v1373, %v1493
      %v1520 = vadd.f32 %v1376, %v1496
      %v1521 = vadd.f32 %v1381, %v1501
      %v1522 = vadd.f32 %v1384, %v1504
      %v1523 = vadd.f32 %v1389, %v1509
      %v1524 = vadd.f32 %v1392, %v1512
      %v1525 = vld [vmem:[#allocation2 + $0x4] sm:$0xe]
      %v1526 = vld [vmem:[#allocation2 + $0x8] sm:$0xf]
      %v1527 = vld [vmem:[#allocation2 + $0xc] sm:$0xf]
      %v1528 = vld [vmem:[#allocation2 + $0x10] sm:$0xf]
      %v1529 = vld [vmem:[#allocation2 + $0x14] sm:$0xf]
      %v1530 = vld [vmem:[#allocation2 + $0x18] sm:$0xf]
      %v1531 = vld [vmem:[#allocation2 + $0x1c] sm:$0xf]
      %v1532 = vld [vmem:[#allocation2 + $0x20] sm:$0xf]
      %v1533 = vld [vmem:[#allocation2 + $0x24] sm:$0xf]
      %v1534 = vld [vmem:[#allocation2 + $0x28] sm:$0xf]
      %v1535 = vld [vmem:[#allocation2 + $0x2c] sm:$0x1]
      %s1536 = scalar_lea.vmem %s3, 36
      %v1537 = vld [vmem:[%s1536] sm:$0xf]
      %v1538 = vld [vmem:[%s1536 + $0x4] sm:$0xf]
      %v1539 = vld [vmem:[%s1536 + $0x8] sm:$0xf]
      %v1551 = vunpack.c.l.b16 %v1525
      %v1552 = vunpack.c.l.b16 %v1526
      %v1553 = vunpack.c.l.b16 %v1527
      %v1554 = vunpack.c.l.b16 %v1528
      %v1555 = vunpack.c.l.b16 %v1529
      %v1556 = vunpack.c.l.b16 %v1530
      %v1557 = vunpack.c.l.b16 %v1531
      %v1558 = vunpack.c.l.b16 %v1532
      %v1559 = vunpack.c.l.b16 %v1533
      %v1560 = vunpack.c.l.b16 %v1534
      %v1561 = vunpack.c.l.b16 %v1535
      %v1562 = vpack.c.b16 %v1552, %v1551
      %v1563 = vpack.c.b16 %v1554, %v1553
      %v1564 = vpack.c.b16 %v1556, %v1555
      %v1565 = vpack.c.b16 %v1558, %v1557
      %v1566 = vpack.c.b16 %v1560, %v1559
      %v1567 = vpack.c.b16 %v1561, %v1561
      %v1568 = vrot.slane %v1562, 1
      %v1569 = vrot.slane %v1563, 1
      %v1570 = vsel %vm1403, %v1568, %v1569
      %v1571 = vrot.slane %v1564, 1
      %v1572 = vsel %vm1403, %v1569, %v1571
      %v1573 = vrot.slane %v1565, 1
      %v1574 = vsel %vm1403, %v1571, %v1573
      %v1575 = vrot.slane %v1566, 1
      %v1576 = vsel %vm1403, %v1573, %v1575
      %v1577 = vrot.slane %v1567, 1
      %v1578 = vsel %vm1403, %v1575, %v1577
      %v1582 = vunpack.c.l.b16 %v1537
      %v1583 = vunpack.c.l.b16 %v1538
      %v1584 = vunpack.c.l.b16 %v1539
      %v1585 = vpack.c.b16 %v1583, %v1582
      %v1586 = vpack.c.b16 %v1584, %v1584
      %v1589 = vsel %vm1207, %v1570, 0
      %v1592 = vsel %vm1207, %v1572, 0
      %v1595 = vsel %vm1207, %v1574, 0
      %v1598 = vsel %vm1207, %v1576, 0
      %v1601 = vsel %vm1207, %v1578, 0
      %v1604 = vsel %vm1223, %v1586, 0
      %1606 = vmatprep.subr.bf16.mxu0 0
      %1607 = vmatpush1.bf16.msra.mxu0 0
      %1608 = vmatprep.subr.bf16.mxu0 0
      %1609 = vmatpush1.bf16.msra.mxu0 0
      %1610 = vmatprep.subr.bf16.mxu0 0
      %1611 = vmatpush1.bf16.msra.mxu0 0
      %1612 = vmatprep.subr.bf16.mxu0 0
      %1613 = vmatpush1.bf16.msra.mxu0 0
      %1614 = vmatprep.subr.bf16.mxu0 0
      %1615 = vmatpush1.bf16.msra.mxu0 0
      %1616 = vmatprep.subr.bf16.mxu0 0
      %1617 = vmatpush1.bf16.msra.mxu0 0
      %1618 = vmatprep.subr.bf16.mxu0 0
      %1619 = vmatpush1.bf16.msra.mxu0 %v1604
      %1620 = vmatprep.subr.bf16.mxu0 0
      %1621 = vmatpush1.bf16.msra.mxu0 %v1585
      %1622 = vmatprep.subr.bf16.mxu0 0
      %1623 = vmatpush2.bf16.msra.mxu0 0
      %1624 = vmatprep.subr.bf16.mxu0 0
      %1625 = vmatpush2.bf16.msra.mxu0 0
      %1626 = vmatprep.subr.bf16.mxu0 0
      %1627 = vmatpush2.bf16.msra.mxu0 0
      %1628 = vmatprep.subr.bf16.mxu0 0
      %1629 = vmatpush2.bf16.msra.mxu0 0
      %1630 = vmatprep.subr.bf16.mxu0 0
      %1631 = vmatpush2.bf16.msra.mxu0 0
      %1632 = vmatprep.subr.bf16.mxu0 0
      %1633 = vmatpush2.bf16.msra.mxu0 0
      %1634 = vmatprep.subr.bf16.mxu0 0
      %1635 = vmatpush2.bf16.msra.mxu0 0
      %1636 = vmatprep.subr.bf16.mxu0 0
      %1637 = vmatpush2.bf16.msra.mxu0 0
      %1638 = vmatprep.mubr.bf16.mxu0 0
      %1639 = vmatmul.mubr.bf16.gmra.mxu0 %v1589
      %v1640 = vpop.f32.mrf.mxu0
      %v1641 = vadd.f32 0.0, %v1640
      %v1642 = vpop.f32.mrf.mxu0
      %v1643 = vpop.f32.mrf.mxu0
      %v1644 = vadd.f32 0.0, %v1643
      %v1645 = vpop.f32.mrf.mxu0
      %1646 = vmatprep.mubr.bf16.mxu0 0
      %1647 = vmatmul.mubr.bf16.gmra.mxu0 %v1592
      %v1648 = vpop.f32.mrf.mxu0
      %v1649 = vadd.f32 0.0, %v1648
      %v1650 = vpop.f32.mrf.mxu0
      %v1651 = vpop.f32.mrf.mxu0
      %v1652 = vadd.f32 0.0, %v1651
      %v1653 = vpop.f32.mrf.mxu0
      %1654 = vmatprep.mubr.bf16.mxu0 0
      %1655 = vmatmul.mubr.bf16.gmra.mxu0 %v1595
      %v1656 = vpop.f32.mrf.mxu0
      %v1657 = vadd.f32 0.0, %v1656
      %v1658 = vpop.f32.mrf.mxu0
      %v1659 = vpop.f32.mrf.mxu0
      %v1660 = vadd.f32 0.0, %v1659
      %v1661 = vpop.f32.mrf.mxu0
      %1662 = vmatprep.mubr.bf16.mxu0 0
      %1663 = vmatmul.mubr.bf16.gmra.mxu0 %v1598
      %v1664 = vpop.f32.mrf.mxu0
      %v1665 = vadd.f32 0.0, %v1664
      %v1666 = vpop.f32.mrf.mxu0
      %v1667 = vpop.f32.mrf.mxu0
      %v1668 = vadd.f32 0.0, %v1667
      %v1669 = vpop.f32.mrf.mxu0
      %1670 = vmatprep.mubr.bf16.mxu0 0
      %1671 = vmatmul.mubr.bf16.gmra.mxu0 %v1601
      %v1672 = vpop.f32.mrf.mxu0
      %v1673 = vadd.f32 0.0, %v1672
      %v1674 = vpop.f32.mrf.mxu0
      %v1675 = vpop.f32.mrf.mxu0
      %v1676 = vadd.f32 0.0, %v1675
      %v1677 = vpop.f32.mrf.mxu0
      %1678 = vdwg.mxu0
      %v1679 = vadd.f32 %v1515, %v1641
      %v1680 = vadd.f32 %v1516, %v1644
      %v1681 = vadd.f32 %v1517, %v1649
      %v1682 = vadd.f32 %v1518, %v1652
      %v1683 = vadd.f32 %v1519, %v1657
      %v1684 = vadd.f32 %v1520, %v1660
      %v1685 = vadd.f32 %v1521, %v1665
      %v1686 = vadd.f32 %v1522, %v1668
      %v1687 = vadd.f32 %v1523, %v1673
      %v1688 = vadd.f32 %v1524, %v1676
      %v1689 = vld [vmem:[#allocation2 + $0x2c] sm:$0x3]
      %s1690 = scalar_lea.vmem %s3, 48
      %v1691 = vld [vmem:[%s1690] sm:$0xf]
      %v1692 = vld [vmem:[%s1690 + $0x4] sm:$0xf]
      %v1693 = vld [vmem:[%s1690 + $0x8] sm:$0xf]
      %v1695 = vunpack.c.l.b16 %v1689
      %v1696 = vpack.c.b16 %v1695, %v1695
      %vm1697 = vsmask.f32 6400
      %v1699 = vshrl.u32 %v1562, 16
      %v1701 = vrot.slane %v1699, 1
      %v1702 = vshll.u32 %v1562, 16
      %v1704 = vrot.slane %v1702, 2
      %v1705 = vor.u32 %v1701, %v1704
      %v1707 = vshrl.u32 %v1563, 16
      %v1709 = vrot.slane %v1707, 1
      %v1710 = vshll.u32 %v1563, 16
      %v1712 = vrot.slane %v1710, 2
      %v1713 = vor.u32 %v1709, %v1712
      %v1714 = vsel %vm1697, %v1705, %v1713
      %v1716 = vshrl.u32 %v1564, 16
      %v1718 = vrot.slane %v1716, 1
      %v1719 = vshll.u32 %v1564, 16
      %v1721 = vrot.slane %v1719, 2
      %v1722 = vor.u32 %v1718, %v1721
      %v1723 = vsel %vm1697, %v1713, %v1722
      %v1725 = vshrl.u32 %v1565, 16
      %v1727 = vrot.slane %v1725, 1
      %v1728 = vshll.u32 %v1565, 16
      %v1730 = vrot.slane %v1728, 2
      %v1731 = vor.u32 %v1727, %v1730
      %v1732 = vsel %vm1697, %v1722, %v1731
      %v1734 = vshrl.u32 %v1566, 16
      %v1736 = vrot.slane %v1734, 1
      %v1737 = vshll.u32 %v1566, 16
      %v1739 = vrot.slane %v1737, 2
      %v1740 = vor.u32 %v1736, %v1739
      %v1741 = vsel %vm1697, %v1731, %v1740
      %v1743 = vshrl.u32 %v1696, 16
      %v1745 = vrot.slane %v1743, 1
      %v1746 = vshll.u32 %v1696, 16
      %v1748 = vrot.slane %v1746, 2
      %v1749 = vor.u32 %v1745, %v1748
      %v1750 = vsel %vm1697, %v1740, %v1749
      %v1754 = vunpack.c.l.b16 %v1691
      %v1755 = vunpack.c.l.b16 %v1692
      %v1756 = vunpack.c.l.b16 %v1693
      %v1757 = vpack.c.b16 %v1755, %v1754
      %v1758 = vpack.c.b16 %v1756, %v1756
      %v1761 = vsel %vm1207, %v1714, 0
      %v1764 = vsel %vm1207, %v1723, 0
      %v1767 = vsel %vm1207, %v1732, 0
      %v1770 = vsel %vm1207, %v1741, 0
      %v1773 = vsel %vm1207, %v1750, 0
      %v1776 = vsel %vm1223, %v1758, 0
      %1778 = vmatprep.subr.bf16.mxu0 0
      %1779 = vmatpush1.bf16.msra.mxu0 0
      %1780 = vmatprep.subr.bf16.mxu0 0
      %1781 = vmatpush1.bf16.msra.mxu0 0
      %1782 = vmatprep.subr.bf16.mxu0 0
      %1783 = vmatpush1.bf16.msra.mxu0 0
      %1784 = vmatprep.subr.bf16.mxu0 0
      %1785 = vmatpush1.bf16.msra.mxu0 0
      %1786 = vmatprep.subr.bf16.mxu0 0
      %1787 = vmatpush1.bf16.msra.mxu0 0
      %1788 = vmatprep.subr.bf16.mxu0 0
      %1789 = vmatpush1.bf16.msra.mxu0 0
      %1790 = vmatprep.subr.bf16.mxu0 0
      %1791 = vmatpush1.bf16.msra.mxu0 %v1776
      %1792 = vmatprep.subr.bf16.mxu0 0
      %1793 = vmatpush1.bf16.msra.mxu0 %v1757
      %1794 = vmatprep.subr.bf16.mxu0 0
      %1795 = vmatpush2.bf16.msra.mxu0 0
      %1796 = vmatprep.subr.bf16.mxu0 0
      %1797 = vmatpush2.bf16.msra.mxu0 0
      %1798 = vmatprep.subr.bf16.mxu0 0
      %1799 = vmatpush2.bf16.msra.mxu0 0
      %1800 = vmatprep.subr.bf16.mxu0 0
      %1801 = vmatpush2.bf16.msra.mxu0 0
      %1802 = vmatprep.subr.bf16.mxu0 0
      %1803 = vmatpush2.bf16.msra.mxu0 0
      %1804 = vmatprep.subr.bf16.mxu0 0
      %1805 = vmatpush2.bf16.msra.mxu0 0
      %1806 = vmatprep.subr.bf16.mxu0 0
      %1807 = vmatpush2.bf16.msra.mxu0 0
      %1808 = vmatprep.subr.bf16.mxu0 0
      %1809 = vmatpush2.bf16.msra.mxu0 0
      %1810 = vmatprep.mubr.bf16.mxu0 0
      %1811 = vmatmul.mubr.bf16.gmra.mxu0 %v1761
      %v1812 = vpop.f32.mrf.mxu0
      %v1813 = vadd.f32 0.0, %v1812
      %v1814 = vpop.f32.mrf.mxu0
      %v1815 = vpop.f32.mrf.mxu0
      %v1816 = vadd.f32 0.0, %v1815
      %v1817 = vpop.f32.mrf.mxu0
      %1818 = vmatprep.mubr.bf16.mxu0 0
      %1819 = vmatmul.mubr.bf16.gmra.mxu0 %v1764
      %v1820 = vpop.f32.mrf.mxu0
      %v1821 = vadd.f32 0.0, %v1820
      %v1822 = vpop.f32.mrf.mxu0
      %v1823 = vpop.f32.mrf.mxu0
      %v1824 = vadd.f32 0.0, %v1823
      %v1825 = vpop.f32.mrf.mxu0
      %1826 = vmatprep.mubr.bf16.mxu0 0
      %1827 = vmatmul.mubr.bf16.gmra.mxu0 %v1767
      %v1828 = vpop.f32.mrf.mxu0
      %v1829 = vadd.f32 0.0, %v1828
      %v1830 = vpop.f32.mrf.mxu0
      %v1831 = vpop.f32.mrf.mxu0
      %v1832 = vadd.f32 0.0, %v1831
      %v1833 = vpop.f32.mrf.mxu0
      %1834 = vmatprep.mubr.bf16.mxu0 0
      %1835 = vmatmul.mubr.bf16.gmra.mxu0 %v1770
      %v1836 = vpop.f32.mrf.mxu0
      %v1837 = vadd.f32 0.0, %v1836
      %v1838 = vpop.f32.mrf.mxu0
      %v1839 = vpop.f32.mrf.mxu0
      %v1840 = vadd.f32 0.0, %v1839
      %v1841 = vpop.f32.mrf.mxu0
      %1842 = vmatprep.mubr.bf16.mxu0 0
      %1843 = vmatmul.mubr.bf16.gmra.mxu0 %v1773
      %v1844 = vpop.f32.mrf.mxu0
      %v1845 = vadd.f32 0.0, %v1844
      %v1846 = vpop.f32.mrf.mxu0
      %v1847 = vpop.f32.mrf.mxu0
      %v1848 = vadd.f32 0.0, %v1847
      %v1849 = vpop.f32.mrf.mxu0
      %1850 = vdwg.mxu0
      %v1851 = vadd.f32 %v1679, %v1813
      %v1852 = vadd.f32 %v1680, %v1816
      %v1853 = vadd.f32 %v1681, %v1821
      %v1854 = vadd.f32 %v1682, %v1824
      %v1855 = vadd.f32 %v1683, %v1829
      %v1856 = vadd.f32 %v1684, %v1832
      %v1857 = vadd.f32 %v1685, %v1837
      %v1858 = vadd.f32 %v1686, %v1840
      %v1859 = vadd.f32 %v1687, %v1845
      %v1860 = vadd.f32 %v1688, %v1848
      %v1861 = vld [vmem:[#allocation2 + $0x4] sm:$0xc]
      %s1862 = scalar_lea.vmem %s3, 60
      %v1863 = vld [vmem:[%s1862] sm:$0xf]
      %v1864 = vld [vmem:[%s1862 + $0x4] sm:$0xf]
      %v1865 = vld [vmem:[%s1862 + $0x8] sm:$0xf]
      %v1867 = vunpack.c.l.b16 %v1861
      %v1868 = vpack.c.b16 %v1552, %v1867
      %vm1869 = vcmask 1045504
      %v1870 = vrot.slane %v1868, 2
      %v1871 = vrot.slane %v1563, 2
      %v1872 = vsel %vm1869, %v1870, %v1871
      %v1873 = vrot.slane %v1564, 2
      %v1874 = vsel %vm1869, %v1871, %v1873
      %v1875 = vrot.slane %v1565, 2
      %v1876 = vsel %vm1869, %v1873, %v1875
      %v1877 = vrot.slane %v1566, 2
      %v1878 = vsel %vm1869, %v1875, %v1877
      %v1879 = vrot.slane %v1696, 2
      %v1880 = vsel %vm1869, %v1877, %v1879
      %v1884 = vunpack.c.l.b16 %v1863
      %v1885 = vunpack.c.l.b16 %v1864
      %v1886 = vunpack.c.l.b16 %v1865
      %v1887 = vpack.c.b16 %v1885, %v1884
      %v1888 = vpack.c.b16 %v1886, %v1886
      %v1891 = vsel %vm1207, %v1872, 0
      %v1894 = vsel %vm1207, %v1874, 0
      %v1897 = vsel %vm1207, %v1876, 0
      %v1900 = vsel %vm1207, %v1878, 0
      %v1903 = vsel %vm1207, %v1880, 0
      %v1906 = vsel %vm1223, %v1888, 0
      %1908 = vmatprep.subr.bf16.mxu0 0
      %1909 = vmatpush1.bf16.msra.mxu0 0
      %1910 = vmatprep.subr.bf16.mxu0 0
      %1911 = vmatpush1.bf16.msra.mxu0 0
      %1912 = vmatprep.subr.bf16.mxu0 0
      %1913 = vmatpush1.bf16.msra.mxu0 0
      %1914 = vmatprep.subr.bf16.mxu0 0
      %1915 = vmatpush1.bf16.msra.mxu0 0
      %1916 = vmatprep.subr.bf16.mxu0 0
      %1917 = vmatpush1.bf16.msra.mxu0 0
      %1918 = vmatprep.subr.bf16.mxu0 0
      %1919 = vmatpush1.bf16.msra.mxu0 0
      %1920 = vmatprep.subr.bf16.mxu0 0
      %1921 = vmatpush1.bf16.msra.mxu0 %v1906
      %1922 = vmatprep.subr.bf16.mxu0 0
      %1923 = vmatpush1.bf16.msra.mxu0 %v1887
      %1924 = vmatprep.subr.bf16.mxu0 0
      %1925 = vmatpush2.bf16.msra.mxu0 0
      %1926 = vmatprep.subr.bf16.mxu0 0
      %1927 = vmatpush2.bf16.msra.mxu0 0
      %1928 = vmatprep.subr.bf16.mxu0 0
      %1929 = vmatpush2.bf16.msra.mxu0 0
      %1930 = vmatprep.subr.bf16.mxu0 0
      %1931 = vmatpush2.bf16.msra.mxu0 0
      %1932 = vmatprep.subr.bf16.mxu0 0
      %1933 = vmatpush2.bf16.msra.mxu0 0
      %1934 = vmatprep.subr.bf16.mxu0 0
      %1935 = vmatpush2.bf16.msra.mxu0 0
      %1936 = vmatprep.subr.bf16.mxu0 0
      %1937 = vmatpush2.bf16.msra.mxu0 0
      %1938 = vmatprep.subr.bf16.mxu0 0
      %1939 = vmatpush2.bf16.msra.mxu0 0
      %1940 = vmatprep.mubr.bf16.mxu0 0
      %1941 = vmatmul.mubr.bf16.gmra.mxu0 %v1891
      %v1942 = vpop.f32.mrf.mxu0
      %v1943 = vadd.f32 0.0, %v1942
      %v1944 = vpop.f32.mrf.mxu0
      %v1945 = vpop.f32.mrf.mxu0
      %v1946 = vadd.f32 0.0, %v1945
      %v1947 = vpop.f32.mrf.mxu0
      %1948 = vmatprep.mubr.bf16.mxu0 0
      %1949 = vmatmul.mubr.bf16.gmra.mxu0 %v1894
      %v1950 = vpop.f32.mrf.mxu0
      %v1951 = vadd.f32 0.0, %v1950
      %v1952 = vpop.f32.mrf.mxu0
      %v1953 = vpop.f32.mrf.mxu0
      %v1954 = vadd.f32 0.0, %v1953
      %v1955 = vpop.f32.mrf.mxu0
      %1956 = vmatprep.mubr.bf16.mxu0 0
      %1957 = vmatmul.mubr.bf16.gmra.mxu0 %v1897
      %v1958 = vpop.f32.mrf.mxu0
      %v1959 = vadd.f32 0.0, %v1958
      %v1960 = vpop.f32.mrf.mxu0
      %v1961 = vpop.f32.mrf.mxu0
      %v1962 = vadd.f32 0.0, %v1961
      %v1963 = vpop.f32.mrf.mxu0
      %1964 = vmatprep.mubr.bf16.mxu0 0
      %1965 = vmatmul.mubr.bf16.gmra.mxu0 %v1900
      %v1966 = vpop.f32.mrf.mxu0
      %v1967 = vadd.f32 0.0, %v1966
      %v1968 = vpop.f32.mrf.mxu0
      %v1969 = vpop.f32.mrf.mxu0
      %v1970 = vadd.f32 0.0, %v1969
      %v1971 = vpop.f32.mrf.mxu0
      %1972 = vmatprep.mubr.bf16.mxu0 0
      %1973 = vmatmul.mubr.bf16.gmra.mxu0 %v1903
      %v1974 = vpop.f32.mrf.mxu0
      %v1975 = vadd.f32 0.0, %v1974
      %v1976 = vpop.f32.mrf.mxu0
      %v1977 = vpop.f32.mrf.mxu0
      %v1978 = vadd.f32 0.0, %v1977
      %v1979 = vpop.f32.mrf.mxu0
      %1980 = vdwg.mxu0
      %v1981 = vadd.f32 %v1851, %v1943
      %v1982 = vadd.f32 %v1852, %v1946
      %v1983 = vadd.f32 %v1853, %v1951
      %v1984 = vadd.f32 %v1854, %v1954
      %v1985 = vadd.f32 %v1855, %v1959
      %v1986 = vadd.f32 %v1856, %v1962
      %v1987 = vadd.f32 %v1857, %v1967
      %v1988 = vadd.f32 %v1858, %v1970
      %v1989 = vadd.f32 %v1859, %v1975
      %v1990 = vadd.f32 %v1860, %v1978
      %v1991 = vld [vmem:[#allocation2 + $0x8] sm:$0xc]
      %v1992 = vld [vmem:[#allocation2 + $0xc] sm:$0xf]
      %v1993 = vld [vmem:[#allocation2 + $0x10] sm:$0xf]
      %v1994 = vld [vmem:[#allocation2 + $0x14] sm:$0xf]
      %v1995 = vld [vmem:[#allocation2 + $0x18] sm:$0xf]
      %v1996 = vld [vmem:[#allocation2 + $0x1c] sm:$0xf]
      %v1997 = vld [vmem:[#allocation2 + $0x20] sm:$0xf]
      %v1998 = vld [vmem:[#allocation2 + $0x24] sm:$0xf]
      %v1999 = vld [vmem:[#allocation2 + $0x28] sm:$0xf]
      %v2000 = vld [vmem:[#allocation2 + $0x2c] sm:$0xf]
      %v2001 = vld [vmem:[#allocation2 + $0x30] sm:$0x3]
      %s2002 = scalar_lea.vmem %s3, 72
      %v2003 = vld [vmem:[%s2002] sm:$0xf]
      %v2004 = vld [vmem:[%s2002 + $0x4] sm:$0xf]
      %v2005 = vld [vmem:[%s2002 + $0x8] sm:$0xf]
      %v2017 = vunpack.c.l.b16 %v1991
      %v2018 = vunpack.c.l.b16 %v1992
      %v2019 = vunpack.c.l.b16 %v1993
      %v2020 = vunpack.c.l.b16 %v1994
      %v2021 = vunpack.c.l.b16 %v1995
      %v2022 = vunpack.c.l.b16 %v1996
      %v2023 = vunpack.c.l.b16 %v1997
      %v2024 = vunpack.c.l.b16 %v1998
      %v2025 = vunpack.c.l.b16 %v1999
      %v2026 = vunpack.c.l.b16 %v2000
      %v2027 = vunpack.c.l.b16 %v2001
      %v2028 = vpack.c.b16 %v2018, %v2017
      %v2029 = vpack.c.b16 %v2020, %v2019
      %v2030 = vpack.c.b16 %v2022, %v2021
      %v2031 = vpack.c.b16 %v2024, %v2023
      %v2032 = vpack.c.b16 %v2026, %v2025
      %v2033 = vpack.c.b16 %v2027, %v2027
      %v2034 = vrot.slane %v2028, 2
      %v2035 = vrot.slane %v2029, 2
      %v2036 = vsel %vm1869, %v2034, %v2035
      %v2037 = vrot.slane %v2030, 2
      %v2038 = vsel %vm1869, %v2035, %v2037
      %v2039 = vrot.slane %v2031, 2
      %v2040 = vsel %vm1869, %v2037, %v2039
      %v2041 = vrot.slane %v2032, 2
      %v2042 = vsel %vm1869, %v2039, %v2041
      %v2043 = vrot.slane %v2033, 2
      %v2044 = vsel %vm1869, %v2041, %v2043
      %v2048 = vunpack.c.l.b16 %v2003
      %v2049 = vunpack.c.l.b16 %v2004
      %v2050 = vunpack.c.l.b16 %v2005
      %v2051 = vpack.c.b16 %v2049, %v2048
      %v2052 = vpack.c.b16 %v2050, %v2050
      %v2055 = vsel %vm1207, %v2036, 0
      %v2058 = vsel %vm1207, %v2038, 0
      %v2061 = vsel %vm1207, %v2040, 0
      %v2064 = vsel %vm1207, %v2042, 0
      %v2067 = vsel %vm1207, %v2044, 0
      %v2070 = vsel %vm1223, %v2052, 0
      %2072 = vmatprep.subr.bf16.mxu0 0
      %2073 = vmatpush1.bf16.msra.mxu0 0
      %2074 = vmatprep.subr.bf16.mxu0 0
      %2075 = vmatpush1.bf16.msra.mxu0 0
      %2076 = vmatprep.subr.bf16.mxu0 0
      %2077 = vmatpush1.bf16.msra.mxu0 0
      %2078 = vmatprep.subr.bf16.mxu0 0
      %2079 = vmatpush1.bf16.msra.mxu0 0
      %2080 = vmatprep.subr.bf16.mxu0 0
      %2081 = vmatpush1.bf16.msra.mxu0 0
      %2082 = vmatprep.subr.bf16.mxu0 0
      %2083 = vmatpush1.bf16.msra.mxu0 0
      %2084 = vmatprep.subr.bf16.mxu0 0
      %2085 = vmatpush1.bf16.msra.mxu0 %v2070
      %2086 = vmatprep.subr.bf16.mxu0 0
      %2087 = vmatpush1.bf16.msra.mxu0 %v2051
      %2088 = vmatprep.subr.bf16.mxu0 0
      %2089 = vmatpush2.bf16.msra.mxu0 0
      %2090 = vmatprep.subr.bf16.mxu0 0
      %2091 = vmatpush2.bf16.msra.mxu0 0
      %2092 = vmatprep.subr.bf16.mxu0 0
      %2093 = vmatpush2.bf16.msra.mxu0 0
      %2094 = vmatprep.subr.bf16.mxu0 0
      %2095 = vmatpush2.bf16.msra.mxu0 0
      %2096 = vmatprep.subr.bf16.mxu0 0
      %2097 = vmatpush2.bf16.msra.mxu0 0
      %2098 = vmatprep.subr.bf16.mxu0 0
      %2099 = vmatpush2.bf16.msra.mxu0 0
      %2100 = vmatprep.subr.bf16.mxu0 0
      %2101 = vmatpush2.bf16.msra.mxu0 0
      %2102 = vmatprep.subr.bf16.mxu0 0
      %2103 = vmatpush2.bf16.msra.mxu0 0
      %2104 = vmatprep.mubr.bf16.mxu0 0
      %2105 = vmatmul.mubr.bf16.gmra.mxu0 %v2055
      %v2106 = vpop.f32.mrf.mxu0
      %v2107 = vadd.f32 0.0, %v2106
      %v2108 = vpop.f32.mrf.mxu0
      %v2109 = vpop.f32.mrf.mxu0
      %v2110 = vadd.f32 0.0, %v2109
      %v2111 = vpop.f32.mrf.mxu0
      %2112 = vmatprep.mubr.bf16.mxu0 0
      %2113 = vmatmul.mubr.bf16.gmra.mxu0 %v2058
      %v2114 = vpop.f32.mrf.mxu0
      %v2115 = vadd.f32 0.0, %v2114
      %v2116 = vpop.f32.mrf.mxu0
      %v2117 = vpop.f32.mrf.mxu0
      %v2118 = vadd.f32 0.0, %v2117
      %v2119 = vpop.f32.mrf.mxu0
      %2120 = vmatprep.mubr.bf16.mxu0 0
      %2121 = vmatmul.mubr.bf16.gmra.mxu0 %v2061
      %v2122 = vpop.f32.mrf.mxu0
      %v2123 = vadd.f32 0.0, %v2122
      %v2124 = vpop.f32.mrf.mxu0
      %v2125 = vpop.f32.mrf.mxu0
      %v2126 = vadd.f32 0.0, %v2125
      %v2127 = vpop.f32.mrf.mxu0
      %2128 = vmatprep.mubr.bf16.mxu0 0
      %2129 = vmatmul.mubr.bf16.gmra.mxu0 %v2064
      %v2130 = vpop.f32.mrf.mxu0
      %v2131 = vadd.f32 0.0, %v2130
      %v2132 = vpop.f32.mrf.mxu0
      %v2133 = vpop.f32.mrf.mxu0
      %v2134 = vadd.f32 0.0, %v2133
      %v2135 = vpop.f32.mrf.mxu0
      %2136 = vmatprep.mubr.bf16.mxu0 0
      %2137 = vmatmul.mubr.bf16.gmra.mxu0 %v2067
      %v2138 = vpop.f32.mrf.mxu0
      %v2139 = vadd.f32 0.0, %v2138
      %v2140 = vpop.f32.mrf.mxu0
      %v2141 = vpop.f32.mrf.mxu0
      %v2142 = vadd.f32 0.0, %v2141
      %v2143 = vpop.f32.mrf.mxu0
      %2144 = vdwg.mxu0
      %v2145 = vadd.f32 %v1981, %v2107
      %v2146 = vadd.f32 %v1982, %v2110
      %v2147 = vadd.f32 %v1983, %v2115
      %v2148 = vadd.f32 %v1984, %v2118
      %v2149 = vadd.f32 %v1985, %v2123
      %v2150 = vadd.f32 %v1986, %v2126
      %v2151 = vadd.f32 %v1987, %v2131
      %v2152 = vadd.f32 %v1988, %v2134
      %v2153 = vadd.f32 %v1989, %v2139
      %v2154 = vadd.f32 %v1990, %v2142
      %v2155 = vld [vmem:[#allocation2 + $0x30] sm:$0x7]
      %s2156 = scalar_lea.vmem %s3, 84
      %v2157 = vld [vmem:[%s2156] sm:$0xf]
      %v2158 = vld [vmem:[%s2156 + $0x4] sm:$0xf]
      %v2159 = vld [vmem:[%s2156 + $0x8] sm:$0xf]
      %v2161 = vunpack.c.l.b16 %v2155
      %v2162 = vpack.c.b16 %v2161, %v2161
      %vm2163 = vsmask.f32 5376
      %v2165 = vshrl.u32 %v2028, 16
      %v2167 = vrot.slane %v2165, 2
      %v2168 = vshll.u32 %v2028, 16
      %v2170 = vrot.slane %v2168, 3
      %v2171 = vor.u32 %v2167, %v2170
      %v2173 = vshrl.u32 %v2029, 16
      %v2175 = vrot.slane %v2173, 2
      %v2176 = vshll.u32 %v2029, 16
      %v2178 = vrot.slane %v2176, 3
      %v2179 = vor.u32 %v2175, %v2178
      %v2180 = vsel %vm2163, %v2171, %v2179
      %v2182 = vshrl.u32 %v2030, 16
      %v2184 = vrot.slane %v2182, 2
      %v2185 = vshll.u32 %v2030, 16
      %v2187 = vrot.slane %v2185, 3
      %v2188 = vor.u32 %v2184, %v2187
      %v2189 = vsel %vm2163, %v2179, %v2188
      %v2191 = vshrl.u32 %v2031, 16
      %v2193 = vrot.slane %v2191, 2
      %v2194 = vshll.u32 %v2031, 16
      %v2196 = vrot.slane %v2194, 3
      %v2197 = vor.u32 %v2193, %v2196
      %v2198 = vsel %vm2163, %v2188, %v2197
      %v2200 = vshrl.u32 %v2032, 16
      %v2202 = vrot.slane %v2200, 2
      %v2203 = vshll.u32 %v2032, 16
      %v2205 = vrot.slane %v2203, 3
      %v2206 = vor.u32 %v2202, %v2205
      %v2207 = vsel %vm2163, %v2197, %v2206
      %v2209 = vshrl.u32 %v2162, 16
      %v2211 = vrot.slane %v2209, 2
      %v2212 = vshll.u32 %v2162, 16
      %v2214 = vrot.slane %v2212, 3
      %v2215 = vor.u32 %v2211, %v2214
      %v2216 = vsel %vm2163, %v2206, %v2215
      %v2220 = vunpack.c.l.b16 %v2157
      %v2221 = vunpack.c.l.b16 %v2158
      %v2222 = vunpack.c.l.b16 %v2159
      %v2223 = vpack.c.b16 %v2221, %v2220
      %v2224 = vpack.c.b16 %v2222, %v2222
      %v2227 = vsel %vm1207, %v2180, 0
      %v2230 = vsel %vm1207, %v2189, 0
      %v2233 = vsel %vm1207, %v2198, 0
      %v2236 = vsel %vm1207, %v2207, 0
      %v2239 = vsel %vm1207, %v2216, 0
      %v2242 = vsel %vm1223, %v2224, 0
      %2244 = vmatprep.subr.bf16.mxu0 0
      %2245 = vmatpush1.bf16.msra.mxu0 0
      %2246 = vmatprep.subr.bf16.mxu0 0
      %2247 = vmatpush1.bf16.msra.mxu0 0
      %2248 = vmatprep.subr.bf16.mxu0 0
      %2249 = vmatpush1.bf16.msra.mxu0 0
      %2250 = vmatprep.subr.bf16.mxu0 0
      %2251 = vmatpush1.bf16.msra.mxu0 0
      %2252 = vmatprep.subr.bf16.mxu0 0
      %2253 = vmatpush1.bf16.msra.mxu0 0
      %2254 = vmatprep.subr.bf16.mxu0 0
      %2255 = vmatpush1.bf16.msra.mxu0 0
      %2256 = vmatprep.subr.bf16.mxu0 0
      %2257 = vmatpush1.bf16.msra.mxu0 %v2242
      %2258 = vmatprep.subr.bf16.mxu0 0
      %2259 = vmatpush1.bf16.msra.mxu0 %v2223
      %2260 = vmatprep.subr.bf16.mxu0 0
      %2261 = vmatpush2.bf16.msra.mxu0 0
      %2262 = vmatprep.subr.bf16.mxu0 0
      %2263 = vmatpush2.bf16.msra.mxu0 0
      %2264 = vmatprep.subr.bf16.mxu0 0
      %2265 = vmatpush2.bf16.msra.mxu0 0
      %2266 = vmatprep.subr.bf16.mxu0 0
      %2267 = vmatpush2.bf16.msra.mxu0 0
      %2268 = vmatprep.subr.bf16.mxu0 0
      %2269 = vmatpush2.bf16.msra.mxu0 0
      %2270 = vmatprep.subr.bf16.mxu0 0
      %2271 = vmatpush2.bf16.msra.mxu0 0
      %2272 = vmatprep.subr.bf16.mxu0 0
      %2273 = vmatpush2.bf16.msra.mxu0 0
      %2274 = vmatprep.subr.bf16.mxu0 0
      %2275 = vmatpush2.bf16.msra.mxu0 0
      %2276 = vmatprep.mubr.bf16.mxu0 0
      %2277 = vmatmul.mubr.bf16.gmra.mxu0 %v2227
      %v2278 = vpop.f32.mrf.mxu0
      %v2279 = vadd.f32 0.0, %v2278
      %v2280 = vpop.f32.mrf.mxu0
      %v2281 = vpop.f32.mrf.mxu0
      %v2282 = vadd.f32 0.0, %v2281
      %v2283 = vpop.f32.mrf.mxu0
      %2284 = vmatprep.mubr.bf16.mxu0 0
      %2285 = vmatmul.mubr.bf16.gmra.mxu0 %v2230
      %v2286 = vpop.f32.mrf.mxu0
      %v2287 = vadd.f32 0.0, %v2286
      %v2288 = vpop.f32.mrf.mxu0
      %v2289 = vpop.f32.mrf.mxu0
      %v2290 = vadd.f32 0.0, %v2289
      %v2291 = vpop.f32.mrf.mxu0
      %2292 = vmatprep.mubr.bf16.mxu0 0
      %2293 = vmatmul.mubr.bf16.gmra.mxu0 %v2233
      %v2294 = vpop.f32.mrf.mxu0
      %v2295 = vadd.f32 0.0, %v2294
      %v2296 = vpop.f32.mrf.mxu0
      %v2297 = vpop.f32.mrf.mxu0
      %v2298 = vadd.f32 0.0, %v2297
      %v2299 = vpop.f32.mrf.mxu0
      %2300 = vmatprep.mubr.bf16.mxu0 0
      %2301 = vmatmul.mubr.bf16.gmra.mxu0 %v2236
      %v2302 = vpop.f32.mrf.mxu0
      %v2303 = vadd.f32 0.0, %v2302
      %v2304 = vpop.f32.mrf.mxu0
      %v2305 = vpop.f32.mrf.mxu0
      %v2306 = vadd.f32 0.0, %v2305
      %v2307 = vpop.f32.mrf.mxu0
      %2308 = vmatprep.mubr.bf16.mxu0 0
      %2309 = vmatmul.mubr.bf16.gmra.mxu0 %v2239
      %v2310 = vpop.f32.mrf.mxu0
      %v2311 = vadd.f32 0.0, %v2310
      %v2312 = vpop.f32.mrf.mxu0
      %v2313 = vpop.f32.mrf.mxu0
      %v2314 = vadd.f32 0.0, %v2313
      %v2315 = vpop.f32.mrf.mxu0
      %2316 = vdwg.mxu0
      %v2317 = vadd.f32 %v2145, %v2279
      %v2318 = vadd.f32 %v2146, %v2282
      %v2319 = vadd.f32 %v2147, %v2287
      %v2320 = vadd.f32 %v2148, %v2290
      %v2321 = vadd.f32 %v2149, %v2295
      %v2322 = vadd.f32 %v2150, %v2298
      %v2323 = vadd.f32 %v2151, %v2303
      %v2324 = vadd.f32 %v2152, %v2306
      %v2325 = vadd.f32 %v2153, %v2311
      %v2326 = vadd.f32 %v2154, %v2314
      %v2327 = vld [vmem:[#allocation2 + $0x8] sm:$0x8]
      %s2328 = scalar_lea.vmem %s3, 96
      %v2329 = vld [vmem:[%s2328] sm:$0xf]
      %v2330 = vld [vmem:[%s2328 + $0x4] sm:$0xf]
      %v2331 = vld [vmem:[%s2328 + $0x8] sm:$0xf]
      %v2333 = vunpack.c.l.b16 %v2327
      %v2334 = vpack.c.b16 %v2018, %v2333
      %vm2335 = vcmask 1044480
      %v2336 = vrot.slane %v2334, 3
      %v2337 = vrot.slane %v2029, 3
      %v2338 = vsel %vm2335, %v2336, %v2337
      %v2339 = vrot.slane %v2030, 3
      %v2340 = vsel %vm2335, %v2337, %v2339
      %v2341 = vrot.slane %v2031, 3
      %v2342 = vsel %vm2335, %v2339, %v2341
      %v2343 = vrot.slane %v2032, 3
      %v2344 = vsel %vm2335, %v2341, %v2343
      %v2345 = vrot.slane %v2162, 3
      %v2346 = vsel %vm2335, %v2343, %v2345
      %v2350 = vunpack.c.l.b16 %v2329
      %v2351 = vunpack.c.l.b16 %v2330
      %v2352 = vunpack.c.l.b16 %v2331
      %v2353 = vpack.c.b16 %v2351, %v2350
      %v2354 = vpack.c.b16 %v2352, %v2352
      %v2357 = vsel %vm1207, %v2338, 0
      %v2360 = vsel %vm1207, %v2340, 0
      %v2363 = vsel %vm1207, %v2342, 0
      %v2366 = vsel %vm1207, %v2344, 0
      %v2369 = vsel %vm1207, %v2346, 0
      %v2372 = vsel %vm1223, %v2354, 0
      %2374 = vmatprep.subr.bf16.mxu0 0
      %2375 = vmatpush1.bf16.msra.mxu0 0
      %2376 = vmatprep.subr.bf16.mxu0 0
      %2377 = vmatpush1.bf16.msra.mxu0 0
      %2378 = vmatprep.subr.bf16.mxu0 0
      %2379 = vmatpush1.bf16.msra.mxu0 0
      %2380 = vmatprep.subr.bf16.mxu0 0
      %2381 = vmatpush1.bf16.msra.mxu0 0
      %2382 = vmatprep.subr.bf16.mxu0 0
      %2383 = vmatpush1.bf16.msra.mxu0 0
      %2384 = vmatprep.subr.bf16.mxu0 0
      %2385 = vmatpush1.bf16.msra.mxu0 0
      %2386 = vmatprep.subr.bf16.mxu0 0
      %2387 = vmatpush1.bf16.msra.mxu0 %v2372
      %2388 = vmatprep.subr.bf16.mxu0 0
      %2389 = vmatpush1.bf16.msra.mxu0 %v2353
      %2390 = vmatprep.subr.bf16.mxu0 0
      %2391 = vmatpush2.bf16.msra.mxu0 0
      %2392 = vmatprep.subr.bf16.mxu0 0
      %2393 = vmatpush2.bf16.msra.mxu0 0
      %2394 = vmatprep.subr.bf16.mxu0 0
      %2395 = vmatpush2.bf16.msra.mxu0 0
      %2396 = vmatprep.subr.bf16.mxu0 0
      %2397 = vmatpush2.bf16.msra.mxu0 0
      %2398 = vmatprep.subr.bf16.mxu0 0
      %2399 = vmatpush2.bf16.msra.mxu0 0
      %2400 = vmatprep.subr.bf16.mxu0 0
      %2401 = vmatpush2.bf16.msra.mxu0 0
      %2402 = vmatprep.subr.bf16.mxu0 0
      %2403 = vmatpush2.bf16.msra.mxu0 0
      %2404 = vmatprep.subr.bf16.mxu0 0
      %2405 = vmatpush2.bf16.msra.mxu0 0
      %2406 = vmatprep.mubr.bf16.mxu0 0
      %2407 = vmatmul.mubr.bf16.gmra.mxu0 %v2357
      %v2408 = vpop.f32.mrf.mxu0
      %v2409 = vadd.f32 0.0, %v2408
      %v2410 = vpop.f32.mrf.mxu0
      %v2411 = vpop.f32.mrf.mxu0
      %v2412 = vadd.f32 0.0, %v2411
      %v2413 = vpop.f32.mrf.mxu0
      %2414 = vmatprep.mubr.bf16.mxu0 0
      %2415 = vmatmul.mubr.bf16.gmra.mxu0 %v2360
      %v2416 = vpop.f32.mrf.mxu0
      %v2417 = vadd.f32 0.0, %v2416
      %v2418 = vpop.f32.mrf.mxu0
      %v2419 = vpop.f32.mrf.mxu0
      %v2420 = vadd.f32 0.0, %v2419
      %v2421 = vpop.f32.mrf.mxu0
      %2422 = vmatprep.mubr.bf16.mxu0 0
      %2423 = vmatmul.mubr.bf16.gmra.mxu0 %v2363
      %v2424 = vpop.f32.mrf.mxu0
      %v2425 = vadd.f32 0.0, %v2424
      %v2426 = vpop.f32.mrf.mxu0
      %v2427 = vpop.f32.mrf.mxu0
      %v2428 = vadd.f32 0.0, %v2427
      %v2429 = vpop.f32.mrf.mxu0
      %2430 = vmatprep.mubr.bf16.mxu0 0
      %2431 = vmatmul.mubr.bf16.gmra.mxu0 %v2366
      %v2432 = vpop.f32.mrf.mxu0
      %v2433 = vadd.f32 0.0, %v2432
      %v2434 = vpop.f32.mrf.mxu0
      %v2435 = vpop.f32.mrf.mxu0
      %v2436 = vadd.f32 0.0, %v2435
      %v2437 = vpop.f32.mrf.mxu0
      %2438 = vmatprep.mubr.bf16.mxu0 0
      %2439 = vmatmul.mubr.bf16.gmra.mxu0 %v2369
      %v2440 = vpop.f32.mrf.mxu0
      %v2441 = vadd.f32 0.0, %v2440
      %v2442 = vpop.f32.mrf.mxu0
      %v2443 = vpop.f32.mrf.mxu0
      %v2444 = vadd.f32 0.0, %v2443
      %v2445 = vpop.f32.mrf.mxu0
      %2446 = vdwg.mxu0
      %v2447 = vadd.f32 %v2317, %v2409
      %v2448 = vadd.f32 %v2318, %v2412
      %v2449 = vadd.f32 %v2319, %v2417
      %v2450 = vadd.f32 %v2320, %v2420
      %v2451 = vadd.f32 %v2321, %v2425
      %v2452 = vadd.f32 %v2322, %v2428
      %v2453 = vadd.f32 %v2323, %v2433
      %v2454 = vadd.f32 %v2324, %v2436
      %v2455 = vadd.f32 %v2325, %v2441
      %v2456 = vadd.f32 %v2326, %v2444
      %v2457 = vld [vmem:[%s4] sm:$0x1]
      %v2458 = vlaneseq
      %v2459 = vshrl.u32 %v2458, 7
      %v2460 = vsub.s32 0, %v2459
      %v2461 = vrot.slane %v2457, %v2460
      %v2462 = vmul.f32 %v2447, %v2461
      %v2463 = vmul.f32 %v2448, %v2461
      %v2464 = vmul.f32 %v2449, %v2461
      %v2465 = vmul.f32 %v2450, %v2461
      %v2466 = vmul.f32 %v2451, %v2461
      %v2467 = vmul.f32 %v2452, %v2461
      %v2468 = vmul.f32 %v2453, %v2461
      %v2469 = vmul.f32 %v2454, %v2461
      %v2470 = vmul.f32 %v2455, %v2461
      %v2471 = vmul.f32 %v2456, %v2461
      %v2472 = vld [vmem:[%s4 + $0x1] sm:$0x1]
      %v2473 = vlaneseq
      %v2474 = vshrl.u32 %v2473, 7
      %v2475 = vsub.s32 0, %v2474
      %v2476 = vrot.slane %v2472, %v2475
      %v2477 = vadd.f32 %v2462, %v2476
      %v2478 = vadd.f32 %v2463, %v2476
      %v2479 = vadd.f32 %v2464, %v2476
      %v2480 = vadd.f32 %v2465, %v2476
      %v2481 = vadd.f32 %v2466, %v2476
      %v2482 = vadd.f32 %v2467, %v2476
      %v2483 = vadd.f32 %v2468, %v2476
      %v2484 = vadd.f32 %v2469, %v2476
      %v2485 = vadd.f32 %v2470, %v2476
      %v2486 = vadd.f32 %v2471, %v2476
      %v2487 = vmax.f32 %v2477, 0.0
      %v2488 = vmax.f32 %v2478, 0.0
      %v2489 = vmax.f32 %v2479, 0.0
      %v2490 = vmax.f32 %v2480, 0.0
      %v2491 = vmax.f32 %v2481, 0.0
      %v2492 = vmax.f32 %v2482, 0.0
      %v2493 = vmax.f32 %v2483, 0.0
      %v2494 = vmax.f32 %v2484, 0.0
      %v2495 = vmax.f32 %v2485, 0.0
      %v2496 = vmax.f32 %v2486, 0.0
      %v2497 = vpack.c.bf16 %v2488, %v2487
      %v2498 = vpack.c.bf16 %v2490, %v2489
      %v2499 = vpack.c.bf16 %v2492, %v2491
      %v2500 = vpack.c.bf16 %v2494, %v2493
      %v2501 = vpack.c.bf16 %v2496, %v2495
      %v2502 = vld [vmem:[%s5] sm:$0xf]
      %vm2503 = vcmask 64512
      %v2505 = vsel %vm2503, %v2497, 0
      %v2508 = vsel %vm2503, %v2498, 0
      %v2511 = vsel %vm2503, %v2499, 0
      %v2514 = vsel %vm2503, %v2500, 0
      %v2517 = vsel %vm2503, %v2501, 0
      %v2520 = vsel %vm1223, %v2502, 0
      %2522 = vmatprep.subr.bf16.mxu0 0
      %2523 = vmatpush1.bf16.msra.mxu0 0
      %2524 = vmatprep.subr.bf16.mxu0 0
      %2525 = vmatpush1.bf16.msra.mxu0 0
      %2526 = vmatprep.subr.bf16.mxu0 0
      %2527 = vmatpush1.bf16.msra.mxu0 0
      %2528 = vmatprep.subr.bf16.mxu0 0
      %2529 = vmatpush1.bf16.msra.mxu0 0
      %2530 = vmatprep.subr.bf16.mxu0 0
      %2531 = vmatpush1.bf16.msra.mxu0 0
      %2532 = vmatprep.subr.bf16.mxu0 0
      %2533 = vmatpush1.bf16.msra.mxu0 0
      %2534 = vmatprep.subr.bf16.mxu0 0
      %2535 = vmatpush1.bf16.msra.mxu0 0
      %2536 = vmatprep.subr.bf16.mxu0 0
      %2537 = vmatpush1.bf16.msra.mxu0 %v2520
      %2538 = vmatprep.subr.bf16.mxu0 0
      %2539 = vmatpush2.bf16.msra.mxu0 0
      %2540 = vmatprep.subr.bf16.mxu0 0
      %2541 = vmatpush2.bf16.msra.mxu0 0
      %2542 = vmatprep.subr.bf16.mxu0 0
      %2543 = vmatpush2.bf16.msra.mxu0 0
      %2544 = vmatprep.subr.bf16.mxu0 0
      %2545 = vmatpush2.bf16.msra.mxu0 0
      %2546 = vmatprep.subr.bf16.mxu0 0
      %2547 = vmatpush2.bf16.msra.mxu0 0
      %2548 = vmatprep.subr.bf16.mxu0 0
      %2549 = vmatpush2.bf16.msra.mxu0 0
      %2550 = vmatprep.subr.bf16.mxu0 0
      %2551 = vmatpush2.bf16.msra.mxu0 0
      %2552 = vmatprep.subr.bf16.mxu0 0
      %2553 = vmatpush2.bf16.msra.mxu0 0
      %2554 = vmatprep.mubr.bf16.mxu0 0
      %2555 = vmatmul.mubr.bf16.gmra.mxu0 %v2505
      %v2556 = vpop.f32.mrf.mxu0
      %v2557 = vadd.f32 0.0, %v2556
      %v2558 = vpop.f32.mrf.mxu0
      %v2559 = vpop.f32.mrf.mxu0
      %v2560 = vadd.f32 0.0, %v2559
      %v2561 = vpop.f32.mrf.mxu0
      %2562 = vmatprep.mubr.bf16.mxu0 0
      %2563 = vmatmul.mubr.bf16.gmra.mxu0 %v2508
      %v2564 = vpop.f32.mrf.mxu0
      %v2565 = vadd.f32 0.0, %v2564
      %v2566 = vpop.f32.mrf.mxu0
      %v2567 = vpop.f32.mrf.mxu0
      %v2568 = vadd.f32 0.0, %v2567
      %v2569 = vpop.f32.mrf.mxu0
      %2570 = vmatprep.mubr.bf16.mxu0 0
      %2571 = vmatmul.mubr.bf16.gmra.mxu0 %v2511
      %v2572 = vpop.f32.mrf.mxu0
      %v2573 = vadd.f32 0.0, %v2572
      %v2574 = vpop.f32.mrf.mxu0
      %v2575 = vpop.f32.mrf.mxu0
      %v2576 = vadd.f32 0.0, %v2575
      %v2577 = vpop.f32.mrf.mxu0
      %2578 = vmatprep.mubr.bf16.mxu0 0
      %2579 = vmatmul.mubr.bf16.gmra.mxu0 %v2514
      %v2580 = vpop.f32.mrf.mxu0
      %v2581 = vadd.f32 0.0, %v2580
      %v2582 = vpop.f32.mrf.mxu0
      %v2583 = vpop.f32.mrf.mxu0
      %v2584 = vadd.f32 0.0, %v2583
      %v2585 = vpop.f32.mrf.mxu0
      %2586 = vmatprep.mubr.bf16.mxu0 0
      %2587 = vmatmul.mubr.bf16.gmra.mxu0 %v2517
      %v2588 = vpop.f32.mrf.mxu0
      %v2589 = vadd.f32 0.0, %v2588
      %v2590 = vpop.f32.mrf.mxu0
      %v2591 = vpop.f32.mrf.mxu0
      %v2592 = vadd.f32 0.0, %v2591
      %v2593 = vpop.f32.mrf.mxu0
      %2594 = vdwg.mxu0
      %v2595 = vld [vmem:[%s6] sm:$0x1]
      %v2596 = vlaneseq
      %v2597 = vshrl.u32 %v2596, 7
      %v2598 = vsub.s32 0, %v2597
      %v2599 = vrot.slane %v2595, %v2598
      %v2600 = vmul.f32 %v2557, %v2599
      %v2601 = vmul.f32 %v2560, %v2599
      %v2602 = vmul.f32 %v2565, %v2599
      %v2603 = vmul.f32 %v2568, %v2599
      %v2604 = vmul.f32 %v2573, %v2599
      %v2605 = vmul.f32 %v2576, %v2599
      %v2606 = vmul.f32 %v2581, %v2599
      %v2607 = vmul.f32 %v2584, %v2599
      %v2608 = vmul.f32 %v2589, %v2599
      %v2609 = vmul.f32 %v2592, %v2599
      %v2610 = vld [vmem:[%s6 + $0x1] sm:$0x1]
      %v2611 = vlaneseq
      %v2612 = vshrl.u32 %v2611, 7
      %v2613 = vsub.s32 0, %v2612
      %v2614 = vrot.slane %v2610, %v2613
      %v2615 = vadd.f32 %v2600, %v2614
      %v2616 = vadd.f32 %v2601, %v2614
      %v2617 = vadd.f32 %v2602, %v2614
      %v2618 = vadd.f32 %v2603, %v2614
      %v2619 = vadd.f32 %v2604, %v2614
      %v2620 = vadd.f32 %v2605, %v2614
      %v2621 = vadd.f32 %v2606, %v2614
      %v2622 = vadd.f32 %v2607, %v2614
      %v2623 = vadd.f32 %v2608, %v2614
      %v2624 = vadd.f32 %v2609, %v2614
      %v2625 = vmax.f32 %v2615, 0.0
      %v2626 = vmax.f32 %v2616, 0.0
      %v2627 = vmax.f32 %v2617, 0.0
      %v2628 = vmax.f32 %v2618, 0.0
      %v2629 = vmax.f32 %v2619, 0.0
      %v2630 = vmax.f32 %v2620, 0.0
      %v2631 = vmax.f32 %v2621, 0.0
      %v2632 = vmax.f32 %v2622, 0.0
      %v2633 = vmax.f32 %v2623, 0.0
      %v2634 = vmax.f32 %v2624, 0.0
      %v2645 = vcombine.high %v2625, %v2625
      %v2647 = vunpack.c.l.s4 1983009808
      %v2648 = vunpack.c.0.s8 %v2647
      %v2649 = vlaneseq
      %v2650 = vshrl.u32 %v2649, 7
      %v2651 = vsub.s32 %v2648, %v2650
      %v2652 = vrot.slane %v2625, %v2651
      %v2654 = vunpack.c.l.s4 1983009808
      %v2655 = vunpack.c.0.s8 %v2654
      %v2656 = vlaneseq
      %v2657 = vshrl.u32 %v2656, 7
      %v2658 = vsub.s32 %v2655, %v2657
      %v2659 = vrot.slane %v2645, %v2658
      %v2660 = vcombine.high %v2652, %v2652
      %v2661 = vcombine.high %v2659, %v2659
      %v2662 = vcombine.high %v2626, %v2626
      %v2664 = vunpack.c.l.s4 1983009808
      %v2665 = vunpack.c.0.s8 %v2664
      %v2666 = vlaneseq
      %v2667 = vshrl.u32 %v2666, 7
      %v2668 = vsub.s32 %v2665, %v2667
      %v2669 = vrot.slane %v2626, %v2668
      %v2671 = vunpack.c.l.s4 1983009808
      %v2672 = vunpack.c.0.s8 %v2671
      %v2673 = vlaneseq
      %v2674 = vshrl.u32 %v2673, 7
      %v2675 = vsub.s32 %v2672, %v2674
      %v2676 = vrot.slane %v2662, %v2675
      %v2677 = vcombine.high %v2669, %v2669
      %v2678 = vcombine.high %v2676, %v2676
      %v2679 = vcombine.high %v2627, %v2627
      %v2681 = vunpack.c.l.s4 1983009808
      %v2682 = vunpack.c.0.s8 %v2681
      %v2683 = vlaneseq
      %v2684 = vshrl.u32 %v2683, 7
      %v2685 = vsub.s32 %v2682, %v2684
      %v2686 = vrot.slane %v2627, %v2685
      %v2688 = vunpack.c.l.s4 1983009808
      %v2689 = vunpack.c.0.s8 %v2688
      %v2690 = vlaneseq
      %v2691 = vshrl.u32 %v2690, 7
      %v2692 = vsub.s32 %v2689, %v2691
      %v2693 = vrot.slane %v2679, %v2692
      %v2694 = vcombine.high %v2693, %v2693
      %v2695 = vcombine.high %v2628, %v2628
      %v2697 = vunpack.c.l.s4 1983009808
      %v2698 = vunpack.c.0.s8 %v2697
      %v2699 = vlaneseq
      %v2700 = vshrl.u32 %v2699, 7
      %v2701 = vsub.s32 %v2698, %v2700
      %v2702 = vrot.slane %v2628, %v2701
      %v2704 = vunpack.c.l.s4 1983009808
      %v2705 = vunpack.c.0.s8 %v2704
      %v2706 = vlaneseq
      %v2707 = vshrl.u32 %v2706, 7
      %v2708 = vsub.s32 %v2705, %v2707
      %v2709 = vrot.slane %v2695, %v2708
      %v2710 = vcombine.high %v2702, %v2702
      %v2711 = vcombine.high %v2709, %v2709
      %v2712 = vcombine.high %v2629, %v2629
      %v2714 = vunpack.c.l.s4 1983009808
      %v2715 = vunpack.c.0.s8 %v2714
      %v2716 = vlaneseq
      %v2717 = vshrl.u32 %v2716, 7
      %v2718 = vsub.s32 %v2715, %v2717
      %v2719 = vrot.slane %v2629, %v2718
      %v2721 = vunpack.c.l.s4 1983009808
      %v2722 = vunpack.c.0.s8 %v2721
      %v2723 = vlaneseq
      %v2724 = vshrl.u32 %v2723, 7
      %v2725 = vsub.s32 %v2722, %v2724
      %v2726 = vrot.slane %v2712, %v2725
      %v2727 = vcombine.high %v2719, %v2719
      %v2728 = vcombine.high %v2630, %v2630
      %v2730 = vunpack.c.l.s4 1983009808
      %v2731 = vunpack.c.0.s8 %v2730
      %v2732 = vlaneseq
      %v2733 = vshrl.u32 %v2732, 7
      %v2734 = vsub.s32 %v2731, %v2733
      %v2735 = vrot.slane %v2630, %v2734
      %v2737 = vunpack.c.l.s4 1983009808
      %v2738 = vunpack.c.0.s8 %v2737
      %v2739 = vlaneseq
      %v2740 = vshrl.u32 %v2739, 7
      %v2741 = vsub.s32 %v2738, %v2740
      %v2742 = vrot.slane %v2728, %v2741
      %v2743 = vcombine.high %v2735, %v2735
      %v2744 = vcombine.high %v2742, %v2742
      %v2745 = vcombine.high %v2631, %v2631
      %v2747 = vunpack.c.l.s4 1983009808
      %v2748 = vunpack.c.0.s8 %v2747
      %v2749 = vlaneseq
      %v2750 = vshrl.u32 %v2749, 7
      %v2751 = vsub.s32 %v2748, %v2750
      %v2752 = vrot.slane %v2631, %v2751
      %v2754 = vunpack.c.l.s4 1983009808
      %v2755 = vunpack.c.0.s8 %v2754
      %v2756 = vlaneseq
      %v2757 = vshrl.u32 %v2756, 7
      %v2758 = vsub.s32 %v2755, %v2757
      %v2759 = vrot.slane %v2745, %v2758
      %v2760 = vcombine.high %v2752, %v2752
      %v2761 = vcombine.high %v2759, %v2759
      %v2762 = vcombine.high %v2632, %v2632
      %v2764 = vunpack.c.l.s4 1983009808
      %v2765 = vunpack.c.0.s8 %v2764
      %v2766 = vlaneseq
      %v2767 = vshrl.u32 %v2766, 7
      %v2768 = vsub.s32 %v2765, %v2767
      %v2769 = vrot.slane %v2632, %v2768
      %v2771 = vunpack.c.l.s4 1983009808
      %v2772 = vunpack.c.0.s8 %v2771
      %v2773 = vlaneseq
      %v2774 = vshrl.u32 %v2773, 7
      %v2775 = vsub.s32 %v2772, %v2774
      %v2776 = vrot.slane %v2762, %v2775
      %v2777 = vcombine.high %v2776, %v2776
      %v2778 = vcombine.high %v2633, %v2633
      %v2780 = vunpack.c.l.s4 1983009808
      %v2781 = vunpack.c.0.s8 %v2780
      %v2782 = vlaneseq
      %v2783 = vshrl.u32 %v2782, 7
      %v2784 = vsub.s32 %v2781, %v2783
      %v2785 = vrot.slane %v2633, %v2784
      %v2787 = vunpack.c.l.s4 1983009808
      %v2788 = vunpack.c.0.s8 %v2787
      %v2789 = vlaneseq
      %v2790 = vshrl.u32 %v2789, 7
      %v2791 = vsub.s32 %v2788, %v2790
      %v2792 = vrot.slane %v2778, %v2791
      %v2793 = vcombine.high %v2785, %v2785
      %v2794 = vcombine.high %v2792, %v2792
      %v2795 = vcombine.high %v2634, %v2634
      %v2797 = vunpack.c.l.s4 1983009808
      %v2798 = vunpack.c.0.s8 %v2797
      %v2799 = vlaneseq
      %v2800 = vshrl.u32 %v2799, 7
      %v2801 = vsub.s32 %v2798, %v2800
      %v2802 = vrot.slane %v2634, %v2801
      %v2804 = vunpack.c.l.s4 1983009808
      %v2805 = vunpack.c.0.s8 %v2804
      %v2806 = vlaneseq
      %v2807 = vshrl.u32 %v2806, 7
      %v2808 = vsub.s32 %v2805, %v2807
      %v2809 = vrot.slane %v2795, %v2808
      %v2810 = vcombine.high %v2802, %v2802
      %v2843 = vld [vmem:[%s476] sm:$0xf]
      %v2844 = vld [vmem:[%s476 + $0x4] sm:$0xf]
      %v2845 = vld [vmem:[%s476 + $0x8] sm:$0xf]
      %v2846 = vld [vmem:[%s476 + $0xc] sm:$0xf]
      %v2847 = vld [vmem:[%s476 + $0x10] sm:$0xf]
      %v2848 = vld [vmem:[%s476 + $0x14] sm:$0xf]
      %v2849 = vld [vmem:[%s476 + $0x18] sm:$0xf]
      %v2850 = vld [vmem:[%s476 + $0x1c] sm:$0xf]
      %v2851 = vunpack.c.l.bf16 %v2843
      %v2852 = vunpack.c.l.bf16 %v2844
      %v2853 = vunpack.c.l.bf16 %v2845
      %v2854 = vunpack.c.l.bf16 %v2846
      %v2855 = vunpack.c.l.bf16 %v2847
      %v2856 = vunpack.c.l.bf16 %v2848
      %v2857 = vunpack.c.l.bf16 %v2849
      %v2858 = vunpack.c.l.bf16 %v2850
      %v2867 = vcombine.high %v2851, %v2851
      %v2869 = vunpack.c.l.s4 1983009808
      %v2870 = vunpack.c.0.s8 %v2869
      %v2871 = vlaneseq
      %v2872 = vshrl.u32 %v2871, 7
      %v2873 = vsub.s32 %v2870, %v2872
      %v2874 = vrot.slane %v2851, %v2873
      %v2876 = vunpack.c.l.s4 1983009808
      %v2877 = vunpack.c.0.s8 %v2876
      %v2878 = vlaneseq
      %v2879 = vshrl.u32 %v2878, 7
      %v2880 = vsub.s32 %v2877, %v2879
      %v2881 = vrot.slane %v2867, %v2880
      %v2882 = vcombine.high %v2874, %v2874
      %v2883 = vcombine.high %v2881, %v2881
      %v2884 = vcombine.high %v2852, %v2852
      %v2886 = vunpack.c.l.s4 1983009808
      %v2887 = vunpack.c.0.s8 %v2886
      %v2888 = vlaneseq
      %v2889 = vshrl.u32 %v2888, 7
      %v2890 = vsub.s32 %v2887, %v2889
      %v2891 = vrot.slane %v2852, %v2890
      %v2893 = vunpack.c.l.s4 1983009808
      %v2894 = vunpack.c.0.s8 %v2893
      %v2895 = vlaneseq
      %v2896 = vshrl.u32 %v2895, 7
      %v2897 = vsub.s32 %v2894, %v2896
      %v2898 = vrot.slane %v2884, %v2897
      %v2899 = vcombine.high %v2891, %v2891
      %v2900 = vcombine.high %v2898, %v2898
      %v2901 = vcombine.high %v2853, %v2853
      %v2903 = vunpack.c.l.s4 1983009808
      %v2904 = vunpack.c.0.s8 %v2903
      %v2905 = vlaneseq
      %v2906 = vshrl.u32 %v2905, 7
      %v2907 = vsub.s32 %v2904, %v2906
      %v2908 = vrot.slane %v2853, %v2907
      %v2910 = vunpack.c.l.s4 1983009808
      %v2911 = vunpack.c.0.s8 %v2910
      %v2912 = vlaneseq
      %v2913 = vshrl.u32 %v2912, 7
      %v2914 = vsub.s32 %v2911, %v2913
      %v2915 = vrot.slane %v2901, %v2914
      %v2916 = vcombine.high %v2908, %v2908
      %v2917 = vcombine.high %v2915, %v2915
      %v2918 = vcombine.high %v2854, %v2854
      %v2920 = vunpack.c.l.s4 1983009808
      %v2921 = vunpack.c.0.s8 %v2920
      %v2922 = vlaneseq
      %v2923 = vshrl.u32 %v2922, 7
      %v2924 = vsub.s32 %v2921, %v2923
      %v2925 = vrot.slane %v2854, %v2924
      %v2927 = vunpack.c.l.s4 1983009808
      %v2928 = vunpack.c.0.s8 %v2927
      %v2929 = vlaneseq
      %v2930 = vshrl.u32 %v2929, 7
      %v2931 = vsub.s32 %v2928, %v2930
      %v2932 = vrot.slane %v2918, %v2931
      %v2933 = vcombine.high %v2925, %v2925
      %v2934 = vcombine.high %v2932, %v2932
      %v2935 = vcombine.high %v2855, %v2855
      %v2937 = vunpack.c.l.s4 1983009808
      %v2938 = vunpack.c.0.s8 %v2937
      %v2939 = vlaneseq
      %v2940 = vshrl.u32 %v2939, 7
      %v2941 = vsub.s32 %v2938, %v2940
      %v2942 = vrot.slane %v2855, %v2941
      %v2944 = vunpack.c.l.s4 1983009808
      %v2945 = vunpack.c.0.s8 %v2944
      %v2946 = vlaneseq
      %v2947 = vshrl.u32 %v2946, 7
      %v2948 = vsub.s32 %v2945, %v2947
      %v2949 = vrot.slane %v2935, %v2948
      %v2950 = vcombine.high %v2942, %v2942
      %v2951 = vcombine.high %v2949, %v2949
      %v2952 = vcombine.high %v2856, %v2856
      %v2954 = vunpack.c.l.s4 1983009808
      %v2955 = vunpack.c.0.s8 %v2954
      %v2956 = vlaneseq
      %v2957 = vshrl.u32 %v2956, 7
      %v2958 = vsub.s32 %v2955, %v2957
      %v2959 = vrot.slane %v2856, %v2958
      %v2961 = vunpack.c.l.s4 1983009808
      %v2962 = vunpack.c.0.s8 %v2961
      %v2963 = vlaneseq
      %v2964 = vshrl.u32 %v2963, 7
      %v2965 = vsub.s32 %v2962, %v2964
      %v2966 = vrot.slane %v2952, %v2965
      %v2967 = vcombine.high %v2959, %v2959
      %v2968 = vcombine.high %v2966, %v2966
      %v2969 = vcombine.high %v2857, %v2857
      %v2971 = vunpack.c.l.s4 1983009808
      %v2972 = vunpack.c.0.s8 %v2971
      %v2973 = vlaneseq
      %v2974 = vshrl.u32 %v2973, 7
      %v2975 = vsub.s32 %v2972, %v2974
      %v2976 = vrot.slane %v2857, %v2975
      %v2978 = vunpack.c.l.s4 1983009808
      %v2979 = vunpack.c.0.s8 %v2978
      %v2980 = vlaneseq
      %v2981 = vshrl.u32 %v2980, 7
      %v2982 = vsub.s32 %v2979, %v2981
      %v2983 = vrot.slane %v2969, %v2982
      %v2984 = vcombine.high %v2976, %v2976
      %v2985 = vcombine.high %v2983, %v2983
      %v2986 = vcombine.high %v2858, %v2858
      %v2988 = vunpack.c.l.s4 1983009808
      %v2989 = vunpack.c.0.s8 %v2988
      %v2990 = vlaneseq
      %v2991 = vshrl.u32 %v2990, 7
      %v2992 = vsub.s32 %v2989, %v2991
      %v2993 = vrot.slane %v2858, %v2992
      %v2995 = vunpack.c.l.s4 1983009808
      %v2996 = vunpack.c.0.s8 %v2995
      %v2997 = vlaneseq
      %v2998 = vshrl.u32 %v2997, 7
      %v2999 = vsub.s32 %v2996, %v2998
      %v3000 = vrot.slane %v2986, %v2999
      %v3001 = vcombine.high %v2993, %v2993
      %v3002 = vcombine.high %v3000, %v3000
      %v3035 = vadd.f32 %v2652, %v2874
      %v3036 = vadd.f32 %v2660, %v2882
      %v3037 = vadd.f32 %v2659, %v2881
      %v3038 = vadd.f32 %v2661, %v2883
      %v3039 = vadd.f32 %v2677, %v2891
      %v3040 = vadd.f32 %v2676, %v2899
      %v3041 = vadd.f32 %v2678, %v2898
      %v3042 = vadd.f32 %v2686, %v2900
      %v3043 = vadd.f32 %v2693, %v2908
      %v3044 = vadd.f32 %v2694, %v2916
      %v3045 = vadd.f32 %v2702, %v2915
      %v3046 = vadd.f32 %v2710, %v2917
      %v3047 = vadd.f32 %v2711, %v2925
      %v3048 = vadd.f32 %v2719, %v2933
      %v3049 = vadd.f32 %v2727, %v2932
      %v3050 = vadd.f32 %v2726, %v2934
      %v3051 = vadd.f32 %v2735, %v2942
      %v3052 = vadd.f32 %v2743, %v2950
      %v3053 = vadd.f32 %v2742, %v2949
      %v3054 = vadd.f32 %v2744, %v2951
      %v3055 = vadd.f32 %v2760, %v2959
      %v3056 = vadd.f32 %v2759, %v2967
      %v3057 = vadd.f32 %v2761, %v2966
      %v3058 = vadd.f32 %v2769, %v2968
      %v3059 = vadd.f32 %v2776, %v2976
      %v3060 = vadd.f32 %v2777, %v2984
      %v3061 = vadd.f32 %v2785, %v2983
      %v3062 = vadd.f32 %v2793, %v2985
      %v3063 = vadd.f32 %v2794, %v2993
      %v3064 = vadd.f32 %v2802, %v3001
      %v3065 = vadd.f32 %v2810, %v3000
      %v3066 = vadd.f32 %v2809, %v3002
      %v3067 = vmax.f32 %v3035, 0.0
      %v3068 = vmax.f32 %v3036, 0.0
      %v3069 = vmax.f32 %v3037, 0.0
      %v3070 = vmax.f32 %v3038, 0.0
      %v3071 = vmax.f32 %v3039, 0.0
      %v3072 = vmax.f32 %v3040, 0.0
      %v3073 = vmax.f32 %v3041, 0.0
      %v3074 = vmax.f32 %v3042, 0.0
      %v3075 = vmax.f32 %v3043, 0.0
      %v3076 = vmax.f32 %v3044, 0.0
      %v3077 = vmax.f32 %v3045, 0.0
      %v3078 = vmax.f32 %v3046, 0.0
      %v3079 = vmax.f32 %v3047, 0.0
      %v3080 = vmax.f32 %v3048, 0.0
      %v3081 = vmax.f32 %v3049, 0.0
      %v3082 = vmax.f32 %v3050, 0.0
      %v3083 = vmax.f32 %v3051, 0.0
      %v3084 = vmax.f32 %v3052, 0.0
      %v3085 = vmax.f32 %v3053, 0.0
      %v3086 = vmax.f32 %v3054, 0.0
      %v3087 = vmax.f32 %v3055, 0.0
      %v3088 = vmax.f32 %v3056, 0.0
      %v3089 = vmax.f32 %v3057, 0.0
      %v3090 = vmax.f32 %v3058, 0.0
      %v3091 = vmax.f32 %v3059, 0.0
      %v3092 = vmax.f32 %v3060, 0.0
      %v3093 = vmax.f32 %v3061, 0.0
      %v3094 = vmax.f32 %v3062, 0.0
      %v3095 = vmax.f32 %v3063, 0.0
      %v3096 = vmax.f32 %v3064, 0.0
      %v3097 = vmax.f32 %v3065, 0.0
      %v3098 = vmax.f32 %v3066, 0.0
      %v3131 = vcombine.low %v3067, %v3068
      %v3132 = vcombine.low %v3069, %v3070
      %v3134 = vunpack.c.l.s4 1983009808
      %v3135 = vunpack.c.0.s8 %v3134
      %v3136 = vlaneseq
      %v3137 = vshrl.u32 %v3136, 7
      %v3138 = vsub.s32 %v3135, %v3137
      %v3139 = vrot.slane %v3131, %v3138
      %v3141 = vunpack.c.l.s4 1983009808
      %v3142 = vunpack.c.0.s8 %v3141
      %v3143 = vlaneseq
      %v3144 = vshrl.u32 %v3143, 7
      %v3145 = vsub.s32 %v3142, %v3144
      %v3146 = vrot.slane %v3132, %v3145
      %v3147 = vcombine.low %v3139, %v3146
      %v3148 = vcombine.low %v3071, %v3072
      %v3149 = vcombine.low %v3073, %v3074
      %v3151 = vunpack.c.l.s4 1983009808
      %v3152 = vunpack.c.0.s8 %v3151
      %v3153 = vlaneseq
      %v3154 = vshrl.u32 %v3153, 7
      %v3155 = vsub.s32 %v3152, %v3154
      %v3156 = vrot.slane %v3148, %v3155
      %v3158 = vunpack.c.l.s4 1983009808
      %v3159 = vunpack.c.0.s8 %v3158
      %v3160 = vlaneseq
      %v3161 = vshrl.u32 %v3160, 7
      %v3162 = vsub.s32 %v3159, %v3161
      %v3163 = vrot.slane %v3149, %v3162
      %v3164 = vcombine.low %v3156, %v3163
      %v3165 = vcombine.low %v3075, %v3076
      %v3166 = vcombine.low %v3077, %v3078
      %v3168 = vunpack.c.l.s4 1983009808
      %v3169 = vunpack.c.0.s8 %v3168
      %v3170 = vlaneseq
      %v3171 = vshrl.u32 %v3170, 7
      %v3172 = vsub.s32 %v3169, %v3171
      %v3173 = vrot.slane %v3165, %v3172
      %v3175 = vunpack.c.l.s4 1983009808
      %v3176 = vunpack.c.0.s8 %v3175
      %v3177 = vlaneseq
      %v3178 = vshrl.u32 %v3177, 7
      %v3179 = vsub.s32 %v3176, %v3178
      %v3180 = vrot.slane %v3166, %v3179
      %v3181 = vcombine.low %v3173, %v3180
      %v3182 = vcombine.low %v3079, %v3080
      %v3183 = vcombine.low %v3081, %v3082
      %v3185 = vunpack.c.l.s4 1983009808
      %v3186 = vunpack.c.0.s8 %v3185
      %v3187 = vlaneseq
      %v3188 = vshrl.u32 %v3187, 7
      %v3189 = vsub.s32 %v3186, %v3188
      %v3190 = vrot.slane %v3182, %v3189
      %v3192 = vunpack.c.l.s4 1983009808
      %v3193 = vunpack.c.0.s8 %v3192
      %v3194 = vlaneseq
      %v3195 = vshrl.u32 %v3194, 7
      %v3196 = vsub.s32 %v3193, %v3195
      %v3197 = vrot.slane %v3183, %v3196
      %v3198 = vcombine.low %v3190, %v3197
      %v3199 = vcombine.low %v3083, %v3084
      %v3200 = vcombine.low %v3085, %v3086
      %v3202 = vunpack.c.l.s4 1983009808
      %v3203 = vunpack.c.0.s8 %v3202
      %v3204 = vlaneseq
      %v3205 = vshrl.u32 %v3204, 7
      %v3206 = vsub.s32 %v3203, %v3205
      %v3207 = vrot.slane %v3199, %v3206
      %v3209 = vunpack.c.l.s4 1983009808
      %v3210 = vunpack.c.0.s8 %v3209
      %v3211 = vlaneseq
      %v3212 = vshrl.u32 %v3211, 7
      %v3213 = vsub.s32 %v3210, %v3212
      %v3214 = vrot.slane %v3200, %v3213
      %v3215 = vcombine.low %v3207, %v3214
      %v3216 = vcombine.low %v3087, %v3088
      %v3217 = vcombine.low %v3089, %v3090
      %v3219 = vunpack.c.l.s4 1983009808
      %v3220 = vunpack.c.0.s8 %v3219
      %v3221 = vlaneseq
      %v3222 = vshrl.u32 %v3221, 7
      %v3223 = vsub.s32 %v3220, %v3222
      %v3224 = vrot.slane %v3216, %v3223
      %v3226 = vunpack.c.l.s4 1983009808
      %v3227 = vunpack.c.0.s8 %v3226
      %v3228 = vlaneseq
      %v3229 = vshrl.u32 %v3228, 7
      %v3230 = vsub.s32 %v3227, %v3229
      %v3231 = vrot.slane %v3217, %v3230
      %v3232 = vcombine.low %v3224, %v3231
      %v3233 = vcombine.low %v3091, %v3092
      %v3234 = vcombine.low %v3093, %v3094
      %v3236 = vunpack.c.l.s4 1983009808
      %v3237 = vunpack.c.0.s8 %v3236
      %v3238 = vlaneseq
      %v3239 = vshrl.u32 %v3238, 7
      %v3240 = vsub.s32 %v3237, %v3239
      %v3241 = vrot.slane %v3233, %v3240
      %v3243 = vunpack.c.l.s4 1983009808
      %v3244 = vunpack.c.0.s8 %v3243
      %v3245 = vlaneseq
      %v3246 = vshrl.u32 %v3245, 7
      %v3247 = vsub.s32 %v3244, %v3246
      %v3248 = vrot.slane %v3234, %v3247
      %v3249 = vcombine.low %v3241, %v3248
      %v3250 = vcombine.low %v3095, %v3096
      %v3251 = vcombine.low %v3097, %v3098
      %v3253 = vunpack.c.l.s4 1983009808
      %v3254 = vunpack.c.0.s8 %v3253
      %v3255 = vlaneseq
      %v3256 = vshrl.u32 %v3255, 7
      %v3257 = vsub.s32 %v3254, %v3256
      %v3258 = vrot.slane %v3250, %v3257
      %v3260 = vunpack.c.l.s4 1983009808
      %v3261 = vunpack.c.0.s8 %v3260
      %v3262 = vlaneseq
      %v3263 = vshrl.u32 %v3262, 7
      %v3264 = vsub.s32 %v3261, %v3263
      %v3265 = vrot.slane %v3251, %v3264
      %v3266 = vcombine.low %v3258, %v3265
      %3275 = vst.msk [vmem:[%s485] sm:$0xff] %vm2503, %v3147
      %3276 = vst.msk [vmem:[%s485 + $0x8] sm:$0xff] %vm2503, %v3164
      %3277 = vst.msk [vmem:[%s485 + $0x10] sm:$0xff] %vm2503, %v3181
      %3278 = vst.msk [vmem:[%s485 + $0x18] sm:$0xff] %vm2503, %v3198
      %3279 = vst.msk [vmem:[%s485 + $0x20] sm:$0xff] %vm2503, %v3215
      %3280 = vst.msk [vmem:[%s485 + $0x28] sm:$0xff] %vm2503, %v3232
      %3281 = vst.msk [vmem:[%s485 + $0x30] sm:$0xff] %vm2503, %v3249
      %3282 = vst.msk [vmem:[%s485 + $0x38] sm:$0xff] %vm2503, %v3266
      %p3283 = scmp.lt.s32.totalorder %s23, 1
      %s3284 = scalar_select %p3283, %s23, 1
      %p3285 = scmp.lt.s32.totalorder %s24, 7
      %s3286 = scalar_select %p3285, %s24, 7
      %s3287 = smul.addr %s3286, 8
      %s3288 = smul.addr %s3284, 64
      %s3289 = sadd.s32 %s3287, %s3288
      %s3290 = smul.addr %s3289, 8
      %s3291 = scalar_lea.vmem %s8, %s3290
      // Predicated region
      $region69: #{spatio_temporal_res_block.5} parent=51 // pred_check
        %p3292 = pneg %p259
      $region70: #{spatio_temporal_res_block.5} parent=51 // pred_check_branch
        %3294 = sbr.rel (%p3292) target = $region72
      $region71: #{spatio_temporal_res_block.5} parent=51 // pred_region
        _
      $region72: #{spatio_temporal_res_block.5} parent=51 // pred_fallthru
        _
    $region52: #{spatio_temporal_res_block.5} parent=5 // pred_fallthru
      _
    %p3295 = scmp.le.s32.totalorder 2, %s14
    // Predicated region
    $region73: #{spatio_temporal_res_block.5} parent=5 // pred_check
      %p3296 = pneg %p3295
    $region74: #{spatio_temporal_res_block.5} parent=5 // pred_check_branch
      %3298 = sbr.rel (%p3296) target = $region76
    $region75: #{spatio_temporal_res_block.5} parent=5 // pred_region
      %s3299 = ssub.s32 %s14, 2
      // Predicated region
      $region77: #{spatio_temporal_res_block.5} parent=75 // pred_check
        %p3300 = pneg %p265
      $region78: #{spatio_temporal_res_block.5} parent=75 // pred_check_branch
        %3302 = sbr.rel (%p3300) target = $region80
      $region79: #{spatio_temporal_res_block.5} parent=75 // pred_region
        %p3303 = scmp.lt.s32.totalorder %s25, 1
        %s3304 = scalar_select %p3303, %s25, 1
        %p3305 = scmp.lt.s32.totalorder %s26, 7
        %s3306 = scalar_select %p3305, %s26, 7
        %s3307 = smul.addr %s3306, 8
        %s3308 = smul.addr %s3304, 64
        %s3309 = sadd.s32 %s3307, %s3308
        %s3310 = smul.addr %s3309, 8
        %s3311 = scalar_lea.vmem %s8, %s3310
      $region80: #{spatio_temporal_res_block.5} parent=75 // pred_fallthru
        _
    $region76: #{spatio_temporal_res_block.5} parent=5 // pred_fallthru
      _
  $region6: #{spatio_temporal_res_block.5} parent=0 // loop_footer
    %s18 = sadd.s32 1, %s14
  $region7: #{spatio_temporal_res_block.5} parent=0 // loop_footer_branch
    %13 = sbr.rel target = $region3
  $region8: #{spatio_temporal_res_block.5} parent=0 // loop_exit
    _

</llo_original>
